<compile_context>
chip_gen: v7x
topology: tpu7x:2x2x1
jax: 0.10.0
libtpu: 0.0.40
codegen_flags: <defaults>
</compile_context>

<pallas_src>
import functools

import jax
import jax.numpy as jnp
from jax.experimental import pallas as pl
from jax.experimental.pallas import tpu as pltpu


TEXT_FEAT_DIM = 512    # CLIP text feature dim
POINT_FEAT_DIM = 1024  # dummy point feature dim
PROJ_DIM = 768
TM_MAX = 256           # batch tile (multiple of 8; MXU-friendly on all parts)


def _round_up(n, m):
    return ((n + m - 1) // m) * m


def _choose_tile(b):
    """Pick (tile_m, padded_batch) for a logical batch b."""
    bp8 = _round_up(max(b, 1), 8)
    tm = min(TM_MAX, bp8)
    bp = _round_up(bp8, tm)
    return tm, bp


# ---------------------------------------------------------------------------
# Kernels
# ---------------------------------------------------------------------------
def _fused_proj_kernel(xt_ref, wt_ref, bt_ref, xp_ref, wp_ref, bp_ref,
                       ot_ref, op_ref):
    """Both projections for one batch tile.

    text : (TM, 512)  f32 -> bf16 @ (512, 768)  bf16 + (1, 768) f32
    point: (TM, 1024) f32 -> bf16 @ (1024, 768) bf16 + (1, 768) f32
    bf16 MXU inputs, f32 accumulation, f32 outputs.
    """
    ot_ref[...] = (
        jnp.dot(xt_ref[...].astype(jnp.bfloat16), wt_ref[...],
                preferred_element_type=jnp.float32)
        + bt_ref[...]
    ).astype(ot_ref.dtype)
    op_ref[...] = (
        jnp.dot(xp_ref[...].astype(jnp.bfloat16), wp_ref[...],
                preferred_element_type=jnp.float32)
        + bp_ref[...]
    ).astype(op_ref.dtype)


def _single_proj_kernel(x_ref, w_ref, b_ref, o_ref):
    """y = cast_bf16(x) @ W + b for one batch tile of a single branch."""
    o_ref[...] = (
        jnp.dot(x_ref[...].astype(jnp.bfloat16), w_ref[...],
                preferred_element_type=jnp.float32)
        + b_ref[...]
    ).astype(o_ref.dtype)


# ---------------------------------------------------------------------------
# pallas_call builders (called inside jit; all shapes static at trace time)
# ---------------------------------------------------------------------------
_COMPILER_PARAMS = pltpu.CompilerParams(
    dimension_semantics=("parallel",),           # megacore-shard the batch axis
    vmem_limit_bytes=32 * 1024 * 1024,           # explicit; safe on v5e/v6e/v7x
)


def _fused_proj(x_text, w_text, b_text, x_point, w_point, b_point, tm):
    bp = x_text.shape[0]
    grid = (bp // tm,)
    cost = pl.CostEstimate(
        flops=2 * bp * (TEXT_FEAT_DIM + POINT_FEAT_DIM) * PROJ_DIM,
        transcendentals=0,
        bytes_accessed=(
            (TEXT_FEAT_DIM + POINT_FEAT_DIM) * PROJ_DIM * 2   # bf16 weights
            + bp * (TEXT_FEAT_DIM + POINT_FEAT_DIM) * 4       # f32 activations
            + 2 * bp * PROJ_DIM * 4                           # f32 outputs
            + 2 * PROJ_DIM * 4),                              # biases
    )
    return pl.pallas_call(
        _fused_proj_kernel,
        grid=grid,
        in_specs=[
            pl.BlockSpec((tm, TEXT_FEAT_DIM), lambda i: (i, 0)),
            pl.BlockSpec((TEXT_FEAT_DIM, PROJ_DIM), lambda i: (0, 0)),   # resident
            pl.BlockSpec((1, PROJ_DIM), lambda i: (0, 0)),               # resident
            pl.BlockSpec((tm, POINT_FEAT_DIM), lambda i: (i, 0)),
            pl.BlockSpec((POINT_FEAT_DIM, PROJ_DIM), lambda i: (0, 0)),  # resident
            pl.BlockSpec((1, PROJ_DIM), lambda i: (0, 0)),               # resident
        ],
        out_specs=(
            pl.BlockSpec((tm, PROJ_DIM), lambda i: (i, 0)),
            pl.BlockSpec((tm, PROJ_DIM), lambda i: (i, 0)),
        ),
        out_shape=(
            jax.ShapeDtypeStruct((bp, PROJ_DIM), jnp.float32),
            jax.ShapeDtypeStruct((bp, PROJ_DIM), jnp.float32),
        ),
        compiler_params=_COMPILER_PARAMS,
        cost_estimate=cost,
    )(x_text, w_text, b_text.reshape(1, PROJ_DIM),
      x_point, w_point, b_point.reshape(1, PROJ_DIM))


def _single_proj(x, w, b, tm):
    bp, k = x.shape
    n = w.shape[1]
    grid = (bp // tm,)
    cost = pl.CostEstimate(
        flops=2 * bp * k * n,
        transcendentals=0,
        bytes_accessed=k * n * 2 + bp * k * 4 + bp * n * 4 + n * 4,
    )
    return pl.pallas_call(
        _single_proj_kernel,
        grid=grid,
        in_specs=[
            pl.BlockSpec((tm, k), lambda i: (i, 0)),
            pl.BlockSpec((k, n), lambda i: (0, 0)),    # resident weight
            pl.BlockSpec((1, n), lambda i: (0, 0)),    # resident bias
        ],
        out_specs=pl.BlockSpec((tm, n), lambda i: (i, 0)),
        out_shape=jax.ShapeDtypeStruct((bp, n), jnp.float32),
        compiler_params=_COMPILER_PARAMS,
        cost_estimate=cost,
    )(x, w, b.reshape(1, n))


# ---------------------------------------------------------------------------
# Jitted end-to-end forwards (feature gen + pad + kernel + slice: one program)
# ---------------------------------------------------------------------------
@functools.partial(jax.jit, static_argnames=("n_text", "n_point"))
def _forward_fused(w_text, b_text, w_point, b_point, *, n_text, n_point):
    # TODO(synk): HF CLIP tokenizer + get_text_features have no Pallas
    # equivalent; substitute deterministic synthetic (B, 512) features.
    x_text = jax.random.normal(jax.random.PRNGKey(42),
                               (n_text, TEXT_FEAT_DIM), jnp.float32)
    # Matches torch.randn(batch, 1024) dummy point features, but deterministic.
    x_point = jax.random.normal(jax.random.PRNGKey(7),
                                (n_point, POINT_FEAT_DIM), jnp.float32)
    tm, bp = _choose_tile(max(n_text, n_point))
    xt = jnp.pad(x_text, ((0, bp - n_text), (0, 0)))
    xp = jnp.pad(x_point, ((0, bp - n_point), (0, 0)))
    ot, op = _fused_proj(xt, w_text, b_text, xp, w_point, b_point, tm)
    return ot[:n_text], op[:n_point]


@functools.partial(jax.jit, static_argnames=("n", "feat_dim", "seed"))
def _forward_single(w, b, *, n, feat_dim, seed):
    x = jax.random.normal(jax.random.PRNGKey(seed), (n, feat_dim), jnp.float32)
    tm, bp = _choose_tile(n)
    xpad = jnp.pad(x, ((0, bp - n), (0, 0)))
    o = _single_proj(xpad, w, b, tm)
    return o[:n]


# ---------------------------------------------------------------------------
# Module
# ---------------------------------------------------------------------------
class ULIP2WrapperPallas:
    """JAX/Pallas port of ULIP2Wrapper (synthetic deterministic params)."""

    def __init__(self, key):
        k1, k2, k3, k4 = jax.random.split(key, 4)
        # nn.Linear(512, 768): torch weight is (768, 512); store transposed
        # (K, N) so y = x @ W + b with no transpose.  Weights kept in bf16
        # (MXU native, halves weight DMA).
        self.text_proj_w = (
            jax.random.normal(k1, (TEXT_FEAT_DIM, PROJ_DIM), jnp.float32) * 0.02
        ).astype(jnp.bfloat16)
        self.text_proj_b = jax.random.normal(k2, (PROJ_DIM,), jnp.float32) * 0.02
        # nn.Linear(1024, 768)
        self.point_proj_w = (
            jax.random.normal(k3, (POINT_FEAT_DIM, PROJ_DIM), jnp.float32) * 0.02
        ).astype(jnp.bfloat16)
        self.point_proj_b = jax.random.normal(k4, (PROJ_DIM,), jnp.float32) * 0.02

    # ----- forward -------------------------------------------------------
    def encode_text(self, text_list):
        return _forward_single(self.text_proj_w, self.text_proj_b,
                               n=len(text_list), feat_dim=TEXT_FEAT_DIM, seed=42)

    def encode_point_cloud(self, point_clouds):
        return _forward_single(self.point_proj_w, self.point_proj_b,
                               n=int(point_clouds.shape[0]),
                               feat_dim=POINT_FEAT_DIM, seed=7)

    def __call__(self, text_list=None, point_clouds=None):
        outputs = {}
        if text_list is not None and point_clouds is not None:
            te, pe = _forward_fused(
                self.text_proj_w, self.text_proj_b,
                self.point_proj_w, self.point_proj_b,
                n_text=len(text_list), n_point=int(point_clouds.shape[0]))
            outputs['text_embeddings'] = te
            outputs['point_embeddings'] = pe
        elif text_list is not None:
            outputs['text_embeddings'] = self.encode_text(text_list)
        elif point_clouds is not None:
            outputs['point_embeddings'] = self.encode_point_cloud(point_clouds)
        return outputs


# ---------------------------------------------------------------------------
if __name__ == "__main__":
    key = jax.random.PRNGKey(0)
    model = ULIP2WrapperPallas(key)

    # Small deterministic example inputs.
    text_list = ["a wooden chair", "a round table"]               # batch of 2 prompts
    point_clouds = jax.random.normal(
        jax.random.PRNGKey(1), (2, 64, 3), jnp.float32)            # (B, num_points, 3)

    out = model(text_list=text_list, point_clouds=point_clouds)
    out = jax.block_until_ready(out)

    assert out['text_embeddings'].shape == (2, PROJ_DIM)
    assert out['point_embeddings'].shape == (2, PROJ_DIM)
    assert out['text_embeddings'].dtype == jnp.float32
    assert out['point_embeddings'].dtype == jnp.float32

    # Sanity-check the fused Pallas projections against plain JAX (same bf16
    # MXU inputs, f32 accumulation, f32 bias).
    tfeat = jax.random.normal(jax.random.PRNGKey(42), (2, TEXT_FEAT_DIM),
                              jnp.float32)
    pfeat = jax.random.normal(jax.random.PRNGKey(7), (2, POINT_FEAT_DIM),
                              jnp.float32)
    ref_t = jnp.dot(tfeat.astype(jnp.bfloat16), model.text_proj_w,
                    preferred_element_type=jnp.float32) + model.text_proj_b
    ref_p = jnp.dot(pfeat.astype(jnp.bfloat16), model.point_proj_w,
                    preferred_element_type=jnp.float32) + model.point_proj_b
    assert jnp.allclose(out['text_embeddings'], ref_t, atol=2e-2, rtol=2e-2)
    assert jnp.allclose(out['point_embeddings'], ref_p, atol=2e-2, rtol=2e-2)

    # Also exercise the single-branch paths.
    only_pc = model(point_clouds=point_clouds)
    only_pc = jax.block_until_ready(only_pc)
    assert set(only_pc.keys()) == {'point_embeddings'}
    assert jnp.allclose(only_pc['point_embeddings'], ref_p, atol=2e-2, rtol=2e-2)

    only_txt = model(text_list=text_list)
    only_txt = jax.block_until_ready(only_txt)
    assert set(only_txt.keys()) == {'text_embeddings'}
    assert jnp.allclose(only_txt['text_embeddings'], ref_t, atol=2e-2, rtol=2e-2)

    print("KERNEL_OK")
</pallas_src>

<mosaic_0001>
module attributes {stable_mosaic.version = 11 : i64} {
  func.func @_fused_proj_kernel(%arg0: i32, %arg1: memref<8x512xf32, #tpu.memory_space<vmem>>, %arg2: memref<512x768xbf16, #tpu.memory_space<vmem>>, %arg3: memref<1x768xf32, #tpu.memory_space<vmem>>, %arg4: memref<8x1024xf32, #tpu.memory_space<vmem>>, %arg5: memref<1024x768xbf16, #tpu.memory_space<vmem>>, %arg6: memref<1x768xf32, #tpu.memory_space<vmem>>, %arg7: memref<8x768xf32, #tpu.memory_space<vmem>>, %arg8: memref<8x768xf32, #tpu.memory_space<vmem>>) attributes {dimension_semantics = [#tpu.dimension_semantics<parallel>], iteration_bounds = array<i64: 1>, scalar_prefetch = 0 : i64, scratch_operands = 0 : i64, tpu.core_type = #tpu.core_type<tc>, window_params = [{transform_indices = @transform_0, window_bounds = array<i64: 8, 512>}, {pipeline_mode = #tpu.pipeline_mode<synchronous>, transform_indices = @transform_1, window_bounds = array<i64: 512, 768>}, {pipeline_mode = #tpu.pipeline_mode<synchronous>, transform_indices = @transform_2, window_bounds = array<i64: 1, 768>}, {transform_indices = @transform_3, window_bounds = array<i64: 8, 1024>}, {pipeline_mode = #tpu.pipeline_mode<synchronous>, transform_indices = @transform_4, window_bounds = array<i64: 1024, 768>}, {pipeline_mode = #tpu.pipeline_mode<synchronous>, transform_indices = @transform_5, window_bounds = array<i64: 1, 768>}, {transform_indices = @transform_6, window_bounds = array<i64: 8, 768>}, {transform_indices = @transform_7, window_bounds = array<i64: 8, 768>}]} {
    %c0 = arith.constant 0 : index
    %c0_0 = arith.constant 0 : index
    %0 = vector.load %arg1[%c0, %c0_0] : memref<8x512xf32, #tpu.memory_space<vmem>>, vector<8x512xf32>
    %1 = arith.truncf %0 : vector<8x512xf32> to vector<8x512xbf16>
    %c0_1 = arith.constant 0 : index
    %c0_2 = arith.constant 0 : index
    %2 = vector.load %arg2[%c0_1, %c0_2] : memref<512x768xbf16, #tpu.memory_space<vmem>>, vector<512x768xbf16>
    %cst = arith.constant dense<0.000000e+00> : vector<8x768xf32>
    %3 = tpu.matmul %1, %2, %cst {dimension_numbers = #tpu.dot_dimension_numbers<[1], [0], [0], [1], [0, 0, 1, 1], [], []>} : vector<8x512xbf16>, vector<512x768xbf16>, vector<8x768xf32> -> vector<8x768xf32>
    %c0_3 = arith.constant 0 : index
    %c0_4 = arith.constant 0 : index
    %4 = vector.load %arg3[%c0_3, %c0_4] : memref<1x768xf32, #tpu.memory_space<vmem>>, vector<1x768xf32>
    %5 = vector.broadcast %4 : vector<1x768xf32> to vector<8x768xf32>
    %6 = arith.addf %3, %5 : vector<8x768xf32>
    %c0_5 = arith.constant 0 : index
    %c0_6 = arith.constant 0 : index
    %7 = vector.load %arg7[%c0_5, %c0_6] : memref<8x768xf32, #tpu.memory_space<vmem>>, vector<8x768xf32>
    tpu.vector_store %arg7[%c0_5, %c0_6], %6 {strides = array<i32>} : memref<8x768xf32, #tpu.memory_space<vmem>>, vector<8x768xf32>,
    %c0_7 = arith.constant 0 : index
    %c0_8 = arith.constant 0 : index
    %8 = vector.load %arg4[%c0_7, %c0_8] : memref<8x1024xf32, #tpu.memory_space<vmem>>, vector<8x1024xf32>
    %9 = arith.truncf %8 : vector<8x1024xf32> to vector<8x1024xbf16>
    %c0_9 = arith.constant 0 : index
    %c0_10 = arith.constant 0 : index
    %10 = vector.load %arg5[%c0_9, %c0_10] : memref<1024x768xbf16, #tpu.memory_space<vmem>>, vector<1024x768xbf16>
    %cst_11 = arith.constant dense<0.000000e+00> : vector<8x768xf32>
    %11 = tpu.matmul %9, %10, %cst_11 {dimension_numbers = #tpu.dot_dimension_numbers<[1], [0], [0], [1], [0, 0, 1, 1], [], []>} : vector<8x1024xbf16>, vector<1024x768xbf16>, vector<8x768xf32> -> vector<8x768xf32>
    %c0_12 = arith.constant 0 : index
    %c0_13 = arith.constant 0 : index
    %12 = vector.load %arg6[%c0_12, %c0_13] : memref<1x768xf32, #tpu.memory_space<vmem>>, vector<1x768xf32>
    %13 = vector.broadcast %12 : vector<1x768xf32> to vector<8x768xf32>
    %14 = arith.addf %11, %13 : vector<8x768xf32>
    %c0_14 = arith.constant 0 : index
    %c0_15 = arith.constant 0 : index
    %15 = vector.load %arg8[%c0_14, %c0_15] : memref<8x768xf32, #tpu.memory_space<vmem>>, vector<8x768xf32>
    tpu.vector_store %arg8[%c0_14, %c0_15], %14 {strides = array<i32>} : memref<8x768xf32, #tpu.memory_space<vmem>>, vector<8x768xf32>,
    return
  }
  func.func @transform_0(%arg0: i32) -> (i32, i32) {
    %c0_i32 = arith.constant 0 : i32
    %c0_i32_0 = arith.constant 0 : i32
    return %arg0, %c0_i32 : i32, i32
  }
  func.func @transform_1(%arg0: i32) -> (i32, i32) {
    %c0_i32 = arith.constant 0 : i32
    %c0_i32_0 = arith.constant 0 : i32
    %c0_i32_1 = arith.constant 0 : i32
    return %c0_i32, %c0_i32_0 : i32, i32
  }
  func.func @transform_2(%arg0: i32) -> (i32, i32) {
    %c0_i32 = arith.constant 0 : i32
    %c0_i32_0 = arith.constant 0 : i32
    %c0_i32_1 = arith.constant 0 : i32
    return %c0_i32, %c0_i32_0 : i32, i32
  }
  func.func @transform_3(%arg0: i32) -> (i32, i32) {
    %c0_i32 = arith.constant 0 : i32
    %c0_i32_0 = arith.constant 0 : i32
    return %arg0, %c0_i32 : i32, i32
  }
  func.func @transform_4(%arg0: i32) -> (i32, i32) {
    %c0_i32 = arith.constant 0 : i32
    %c0_i32_0 = arith.constant 0 : i32
    %c0_i32_1 = arith.constant 0 : i32
    return %c0_i32, %c0_i32_0 : i32, i32
  }
  func.func @transform_5(%arg0: i32) -> (i32, i32) {
    %c0_i32 = arith.constant 0 : i32
    %c0_i32_0 = arith.constant 0 : i32
    %c0_i32_1 = arith.constant 0 : i32
    return %c0_i32, %c0_i32_0 : i32, i32
  }
  func.func @transform_6(%arg0: i32) -> (i32, i32) {
    %c0_i32 = arith.constant 0 : i32
    %c0_i32_0 = arith.constant 0 : i32
    return %arg0, %c0_i32 : i32, i32
  }
  func.func @transform_7(%arg0: i32) -> (i32, i32) {
    %c0_i32 = arith.constant 0 : i32
    %c0_i32_0 = arith.constant 0 : i32
    return %arg0, %c0_i32 : i32, i32
  }
}

</mosaic_0001>

<llo_original>
// kernel: _forward_fused.1
$region0: #{_forward_fused.1}
  #allocation0 [shape = 'u32[]', space=smem, size = 0x4, offset = 0x4, fixed_abs, tag = 'smem constant byte address 0x4 - core index']
  #allocation1 [shape = 'u32[144,128]{1,0:T(1,128)}', space=vmem, size = 0x12000, scoped, tag = 'internal scratch']
  %s0 = inlined_call_operand.vmem [shape: f32[8,512], index: 0, kind: input, shape index: {}]
  %s1 = inlined_call_operand.hbm [shape: bf16[512,768], index: 1, kind: input, shape index: {}]
  %s2 = inlined_call_operand.vmem [shape: f32[1,768], index: 2, kind: input, shape index: {}]
  %s3 = inlined_call_operand.vmem [shape: f32[8,1024], index: 3, kind: input, shape index: {}]
  %s4 = inlined_call_operand.hbm [shape: bf16[1024,768], index: 4, kind: input, shape index: {}]
  %s5 = inlined_call_operand.vmem [shape: f32[1,768], index: 5, kind: input, shape index: {}]
  %s6 = inlined_call_operand.vmem [shape: f32[8,768], index: 6, kind: output, shape index: {0}]
  %s7 = inlined_call_operand.vmem [shape: f32[8,768], index: 7, kind: output, shape index: {1}]
  %8 = xla_tuple %s6, %s7
  %s9 = sld [smem:[#allocation0]]
  $region50: #{_forward_fused.1} parent=0
    _
  %s11 = ssub.s32 1, %s9
  %s12 = scalar_select 0, %s11, %s9
  $region1: #{_forward_fused.1} parent=0
    #allocation2 [shape = 'u8[786432]{0}', space=vmem, size = 0xc0000, scoped, tag = 'input window, operand 1, single buffered']
    #allocation3 [shape = 's32[1]{0}', space=sflag, size = 0x4, scoped, tag = 'scoped memory for _forward_fused.1']
    #allocation4 [shape = 'u8[1572864]{0}', space=vmem, size = 0x180000, scoped, tag = 'input window, operand 4, single buffered']
    #allocation5 [shape = 's32[1]{0}', space=sflag, size = 0x4, scoped, tag = 'scoped memory for _forward_fused.1']
    %13 = vsyncpa [#allocation3], 0
    %14 = vsyncpa [#allocation5], 0
    // Predicated region
    $region2: #{_forward_fused.1} parent=1 // pred_check
      _
    $region3: #{_forward_fused.1} parent=1 // pred_check_branch
      %16 = sbr.rel (0) target = $region5
    $region4: #{_forward_fused.1} parent=1 // pred_region
      _
    $region5: #{_forward_fused.1} parent=1 // pred_fallthru
      _
    // Predicated region
    $region6: #{_forward_fused.1} parent=1 // pred_check
      _
    $region7: #{_forward_fused.1} parent=1 // pred_check_branch
      %18 = sbr.rel (0) target = $region9
    $region8: #{_forward_fused.1} parent=1 // pred_region
      %s20 = ssub.s32 24576, 24576
      %21 = vsyncadd [#allocation3], %s20
      %s22 = sshll.u32 [#allocation2], 4
      %s23 = int_to_ptr.vmem [resolvable:$true] %s22
      %28 = dma.hbm_to_vmem [thread:$0]  %s1, 24576, %s23, [#allocation3], 384, 384, 24
    $region9: #{_forward_fused.1} parent=1 // pred_fallthru
      _
    // Predicated region
    $region10: #{_forward_fused.1} parent=1 // pred_check
      _
    $region11: #{_forward_fused.1} parent=1 // pred_check_branch
      %30 = sbr.rel (0) target = $region13
    $region12: #{_forward_fused.1} parent=1 // pred_region
      _
    $region13: #{_forward_fused.1} parent=1 // pred_fallthru
      _
    // Predicated region
    $region14: #{_forward_fused.1} parent=1 // pred_check
      _
    $region15: #{_forward_fused.1} parent=1 // pred_check_branch
      %32 = sbr.rel (0) target = $region17
    $region16: #{_forward_fused.1} parent=1 // pred_region
      _
    $region17: #{_forward_fused.1} parent=1 // pred_fallthru
      _
    // Predicated region
    $region18: #{_forward_fused.1} parent=1 // pred_check
      _
    $region19: #{_forward_fused.1} parent=1 // pred_check_branch
      %34 = sbr.rel (0) target = $region21
    $region20: #{_forward_fused.1} parent=1 // pred_region
      %s36 = ssub.s32 49152, 49152
      %37 = vsyncadd [#allocation5], %s36
      %s38 = sshll.u32 [#allocation4], 4
      %s39 = int_to_ptr.vmem [resolvable:$true] %s38
      %44 = dma.hbm_to_vmem [thread:$0]  %s4, 49152, %s39, [#allocation5], 384, 384, 24
    $region21: #{_forward_fused.1} parent=1 // pred_fallthru
      _
    // Predicated region
    $region22: #{_forward_fused.1} parent=1 // pred_check
      _
    $region23: #{_forward_fused.1} parent=1 // pred_check_branch
      %46 = sbr.rel (0) target = $region25
    $region24: #{_forward_fused.1} parent=1 // pred_region
      _
    $region25: #{_forward_fused.1} parent=1 // pred_fallthru
      _
    // Predicated region
    $region26: #{_forward_fused.1} parent=1 // pred_check
      _
    $region27: #{_forward_fused.1} parent=1 // pred_check_branch
      %48 = sbr.rel (0) target = $region29
    $region28: #{_forward_fused.1} parent=1 // pred_region
      %49 = dma.done [#allocation3], 24576
    $region29: #{_forward_fused.1} parent=1 // pred_fallthru
      _
    // Predicated region
    $region30: #{_forward_fused.1} parent=1 // pred_check
      _
    $region31: #{_forward_fused.1} parent=1 // pred_check_branch
      %51 = sbr.rel (0) target = $region33
    $region32: #{_forward_fused.1} parent=1 // pred_region
      %52 = dma.done [#allocation5], 49152
    $region33: #{_forward_fused.1} parent=1 // pred_fallthru
      _
    %v53 = vld [vmem:[%s0] sm:$0xff]
    %v54 = vld [vmem:[%s0 + $0x8] sm:$0xff]
    %v55 = vld [vmem:[%s0 + $0x10] sm:$0xff]
    %v56 = vld [vmem:[%s0 + $0x18] sm:$0xff]
    %v57 = vpack.c.bf16 %v53, %v53
    %v58 = vpack.c.bf16 %v54, %v54
    %v59 = vpack.c.bf16 %v55, %v55
    %v60 = vpack.c.bf16 %v56, %v56
    %v61 = vld [vmem:[#allocation2] sm:$0xff]
    %v62 = vld [vmem:[#allocation2 + $0x8] sm:$0xff]
    %v63 = vld [vmem:[#allocation2 + $0x10] sm:$0xff]
    %v64 = vld [vmem:[#allocation2 + $0x18] sm:$0xff]
    %v65 = vld [vmem:[#allocation2 + $0x20] sm:$0xff]
    %v66 = vld [vmem:[#allocation2 + $0x28] sm:$0xff]
    %v67 = vld [vmem:[#allocation2 + $0x30] sm:$0xff]
    %v68 = vld [vmem:[#allocation2 + $0x38] sm:$0xff]
    %v69 = vld [vmem:[#allocation2 + $0x40] sm:$0xff]
    %v70 = vld [vmem:[#allocation2 + $0x48] sm:$0xff]
    %v71 = vld [vmem:[#allocation2 + $0x50] sm:$0xff]
    %v72 = vld [vmem:[#allocation2 + $0x58] sm:$0xff]
    %v73 = vld [vmem:[#allocation2 + $0x60] sm:$0xff]
    %v74 = vld [vmem:[#allocation2 + $0x68] sm:$0xff]
    %v75 = vld [vmem:[#allocation2 + $0x70] sm:$0xff]
    %v76 = vld [vmem:[#allocation2 + $0x78] sm:$0xff]
    %v77 = vld [vmem:[#allocation2 + $0x80] sm:$0xff]
    %v78 = vld [vmem:[#allocation2 + $0x88] sm:$0xff]
    %v79 = vld [vmem:[#allocation2 + $0x90] sm:$0xff]
    %v80 = vld [vmem:[#allocation2 + $0x98] sm:$0xff]
    %v81 = vld [vmem:[#allocation2 + $0xa0] sm:$0xff]
    %v82 = vld [vmem:[#allocation2 + $0xa8] sm:$0xff]
    %v83 = vld [vmem:[#allocation2 + $0xb0] sm:$0xff]
    %v84 = vld [vmem:[#allocation2 + $0xb8] sm:$0xff]
    %v85 = vld [vmem:[#allocation2 + $0xc0] sm:$0xff]
    %v86 = vld [vmem:[#allocation2 + $0xc8] sm:$0xff]
    %v87 = vld [vmem:[#allocation2 + $0xd0] sm:$0xff]
    %v88 = vld [vmem:[#allocation2 + $0xd8] sm:$0xff]
    %v89 = vld [vmem:[#allocation2 + $0xe0] sm:$0xff]
    %v90 = vld [vmem:[#allocation2 + $0xe8] sm:$0xff]
    %v91 = vld [vmem:[#allocation2 + $0xf0] sm:$0xff]
    %v92 = vld [vmem:[#allocation2 + $0xf8] sm:$0xff]
    %v93 = vld [vmem:[#allocation2 + $0x100] sm:$0xff]
    %v94 = vld [vmem:[#allocation2 + $0x108] sm:$0xff]
    %v95 = vld [vmem:[#allocation2 + $0x110] sm:$0xff]
    %v96 = vld [vmem:[#allocation2 + $0x118] sm:$0xff]
    %v97 = vld [vmem:[#allocation2 + $0x120] sm:$0xff]
    %v98 = vld [vmem:[#allocation2 + $0x128] sm:$0xff]
    %v99 = vld [vmem:[#allocation2 + $0x130] sm:$0xff]
    %v100 = vld [vmem:[#allocation2 + $0x138] sm:$0xff]
    %v101 = vld [vmem:[#allocation2 + $0x140] sm:$0xff]
    %v102 = vld [vmem:[#allocation2 + $0x148] sm:$0xff]
    %v103 = vld [vmem:[#allocation2 + $0x150] sm:$0xff]
    %v104 = vld [vmem:[#allocation2 + $0x158] sm:$0xff]
    %v105 = vld [vmem:[#allocation2 + $0x160] sm:$0xff]
    %v106 = vld [vmem:[#allocation2 + $0x168] sm:$0xff]
    %v107 = vld [vmem:[#allocation2 + $0x170] sm:$0xff]
    %v108 = vld [vmem:[#allocation2 + $0x178] sm:$0xff]
    %v109 = vld [vmem:[#allocation2 + $0x180] sm:$0xff]
    %v110 = vld [vmem:[#allocation2 + $0x188] sm:$0xff]
    %v111 = vld [vmem:[#allocation2 + $0x190] sm:$0xff]
    %v112 = vld [vmem:[#allocation2 + $0x198] sm:$0xff]
    %v113 = vld [vmem:[#allocation2 + $0x1a0] sm:$0xff]
    %v114 = vld [vmem:[#allocation2 + $0x1a8] sm:$0xff]
    %v115 = vld [vmem:[#allocation2 + $0x1b0] sm:$0xff]
    %v116 = vld [vmem:[#allocation2 + $0x1b8] sm:$0xff]
    %v117 = vld [vmem:[#allocation2 + $0x1c0] sm:$0xff]
    %v118 = vld [vmem:[#allocation2 + $0x1c8] sm:$0xff]
    %v119 = vld [vmem:[#allocation2 + $0x1d0] sm:$0xff]
    %v120 = vld [vmem:[#allocation2 + $0x1d8] sm:$0xff]
    %v121 = vld [vmem:[#allocation2 + $0x1e0] sm:$0xff]
    %v122 = vld [vmem:[#allocation2 + $0x1e8] sm:$0xff]
    %v123 = vld [vmem:[#allocation2 + $0x1f0] sm:$0xff]
    %v124 = vld [vmem:[#allocation2 + $0x1f8] sm:$0xff]
    %v125 = vld [vmem:[#allocation2 + $0x200] sm:$0xff]
    %v126 = vld [vmem:[#allocation2 + $0x208] sm:$0xff]
    %v127 = vld [vmem:[#allocation2 + $0x210] sm:$0xff]
    %v128 = vld [vmem:[#allocation2 + $0x218] sm:$0xff]
    %v129 = vld [vmem:[#allocation2 + $0x220] sm:$0xff]
    %v130 = vld [vmem:[#allocation2 + $0x228] sm:$0xff]
    %v131 = vld [vmem:[#allocation2 + $0x230] sm:$0xff]
    %v132 = vld [vmem:[#allocation2 + $0x238] sm:$0xff]
    %v133 = vld [vmem:[#allocation2 + $0x240] sm:$0xff]
    %v134 = vld [vmem:[#allocation2 + $0x248] sm:$0xff]
    %v135 = vld [vmem:[#allocation2 + $0x250] sm:$0xff]
    %v136 = vld [vmem:[#allocation2 + $0x258] sm:$0xff]
    %v137 = vld [vmem:[#allocation2 + $0x260] sm:$0xff]
    %v138 = vld [vmem:[#allocation2 + $0x268] sm:$0xff]
    %v139 = vld [vmem:[#allocation2 + $0x270] sm:$0xff]
    %v140 = vld [vmem:[#allocation2 + $0x278] sm:$0xff]
    %v141 = vld [vmem:[#allocation2 + $0x280] sm:$0xff]
    %v142 = vld [vmem:[#allocation2 + $0x288] sm:$0xff]
    %v143 = vld [vmem:[#allocation2 + $0x290] sm:$0xff]
    %v144 = vld [vmem:[#allocation2 + $0x298] sm:$0xff]
    %v145 = vld [vmem:[#allocation2 + $0x2a0] sm:$0xff]
    %v146 = vld [vmem:[#allocation2 + $0x2a8] sm:$0xff]
    %v147 = vld [vmem:[#allocation2 + $0x2b0] sm:$0xff]
    %v148 = vld [vmem:[#allocation2 + $0x2b8] sm:$0xff]
    %v149 = vld [vmem:[#allocation2 + $0x2c0] sm:$0xff]
    %v150 = vld [vmem:[#allocation2 + $0x2c8] sm:$0xff]
    %v151 = vld [vmem:[#allocation2 + $0x2d0] sm:$0xff]
    %v152 = vld [vmem:[#allocation2 + $0x2d8] sm:$0xff]
    %v153 = vld [vmem:[#allocation2 + $0x2e0] sm:$0xff]
    %v154 = vld [vmem:[#allocation2 + $0x2e8] sm:$0xff]
    %v155 = vld [vmem:[#allocation2 + $0x2f0] sm:$0xff]
    %v156 = vld [vmem:[#allocation2 + $0x2f8] sm:$0xff]
    %v157 = vld [vmem:[#allocation2 + $0x300] sm:$0xff]
    %v158 = vld [vmem:[#allocation2 + $0x308] sm:$0xff]
    %v159 = vld [vmem:[#allocation2 + $0x310] sm:$0xff]
    %v160 = vld [vmem:[#allocation2 + $0x318] sm:$0xff]
    %v161 = vld [vmem:[#allocation2 + $0x320] sm:$0xff]
    %v162 = vld [vmem:[#allocation2 + $0x328] sm:$0xff]
    %v163 = vld [vmem:[#allocation2 + $0x330] sm:$0xff]
    %v164 = vld [vmem:[#allocation2 + $0x338] sm:$0xff]
    %v165 = vld [vmem:[#allocation2 + $0x340] sm:$0xff]
    %v166 = vld [vmem:[#allocation2 + $0x348] sm:$0xff]
    %v167 = vld [vmem:[#allocation2 + $0x350] sm:$0xff]
    %v168 = vld [vmem:[#allocation2 + $0x358] sm:$0xff]
    %v169 = vld [vmem:[#allocation2 + $0x360] sm:$0xff]
    %v170 = vld [vmem:[#allocation2 + $0x368] sm:$0xff]
    %v171 = vld [vmem:[#allocation2 + $0x370] sm:$0xff]
    %v172 = vld [vmem:[#allocation2 + $0x378] sm:$0xff]
    %v173 = vld [vmem:[#allocation2 + $0x380] sm:$0xff]
    %v174 = vld [vmem:[#allocation2 + $0x388] sm:$0xff]
    %v175 = vld [vmem:[#allocation2 + $0x390] sm:$0xff]
    %v176 = vld [vmem:[#allocation2 + $0x398] sm:$0xff]
    %v177 = vld [vmem:[#allocation2 + $0x3a0] sm:$0xff]
    %v178 = vld [vmem:[#allocation2 + $0x3a8] sm:$0xff]
    %v179 = vld [vmem:[#allocation2 + $0x3b0] sm:$0xff]
    %v180 = vld [vmem:[#allocation2 + $0x3b8] sm:$0xff]
    %v181 = vld [vmem:[#allocation2 + $0x3c0] sm:$0xff]
    %v182 = vld [vmem:[#allocation2 + $0x3c8] sm:$0xff]
    %v183 = vld [vmem:[#allocation2 + $0x3d0] sm:$0xff]
    %v184 = vld [vmem:[#allocation2 + $0x3d8] sm:$0xff]
    %v185 = vld [vmem:[#allocation2 + $0x3e0] sm:$0xff]
    %v186 = vld [vmem:[#allocation2 + $0x3e8] sm:$0xff]
    %v187 = vld [vmem:[#allocation2 + $0x3f0] sm:$0xff]
    %v188 = vld [vmem:[#allocation2 + $0x3f8] sm:$0xff]
    %v189 = vld [vmem:[#allocation2 + $0x400] sm:$0xff]
    %v190 = vld [vmem:[#allocation2 + $0x408] sm:$0xff]
    %v191 = vld [vmem:[#allocation2 + $0x410] sm:$0xff]
    %v192 = vld [vmem:[#allocation2 + $0x418] sm:$0xff]
    %v193 = vld [vmem:[#allocation2 + $0x420] sm:$0xff]
    %v194 = vld [vmem:[#allocation2 + $0x428] sm:$0xff]
    %v195 = vld [vmem:[#allocation2 + $0x430] sm:$0xff]
    %v196 = vld [vmem:[#allocation2 + $0x438] sm:$0xff]
    %v197 = vld [vmem:[#allocation2 + $0x440] sm:$0xff]
    %v198 = vld [vmem:[#allocation2 + $0x448] sm:$0xff]
    %v199 = vld [vmem:[#allocation2 + $0x450] sm:$0xff]
    %v200 = vld [vmem:[#allocation2 + $0x458] sm:$0xff]
    %v201 = vld [vmem:[#allocation2 + $0x460] sm:$0xff]
    %v202 = vld [vmem:[#allocation2 + $0x468] sm:$0xff]
    %v203 = vld [vmem:[#allocation2 + $0x470] sm:$0xff]
    %v204 = vld [vmem:[#allocation2 + $0x478] sm:$0xff]
    %v205 = vld [vmem:[#allocation2 + $0x480] sm:$0xff]
    %v206 = vld [vmem:[#allocation2 + $0x488] sm:$0xff]
    %v207 = vld [vmem:[#allocation2 + $0x490] sm:$0xff]
    %v208 = vld [vmem:[#allocation2 + $0x498] sm:$0xff]
    %v209 = vld [vmem:[#allocation2 + $0x4a0] sm:$0xff]
    %v210 = vld [vmem:[#allocation2 + $0x4a8] sm:$0xff]
    %v211 = vld [vmem:[#allocation2 + $0x4b0] sm:$0xff]
    %v212 = vld [vmem:[#allocation2 + $0x4b8] sm:$0xff]
    %v213 = vld [vmem:[#allocation2 + $0x4c0] sm:$0xff]
    %v214 = vld [vmem:[#allocation2 + $0x4c8] sm:$0xff]
    %v215 = vld [vmem:[#allocation2 + $0x4d0] sm:$0xff]
    %v216 = vld [vmem:[#allocation2 + $0x4d8] sm:$0xff]
    %v217 = vld [vmem:[#allocation2 + $0x4e0] sm:$0xff]
    %v218 = vld [vmem:[#allocation2 + $0x4e8] sm:$0xff]
    %v219 = vld [vmem:[#allocation2 + $0x4f0] sm:$0xff]
    %v220 = vld [vmem:[#allocation2 + $0x4f8] sm:$0xff]
    %v221 = vld [vmem:[#allocation2 + $0x500] sm:$0xff]
    %v222 = vld [vmem:[#allocation2 + $0x508] sm:$0xff]
    %v223 = vld [vmem:[#allocation2 + $0x510] sm:$0xff]
    %v224 = vld [vmem:[#allocation2 + $0x518] sm:$0xff]
    %v225 = vld [vmem:[#allocation2 + $0x520] sm:$0xff]
    %v226 = vld [vmem:[#allocation2 + $0x528] sm:$0xff]
    %v227 = vld [vmem:[#allocation2 + $0x530] sm:$0xff]
    %v228 = vld [vmem:[#allocation2 + $0x538] sm:$0xff]
    %v229 = vld [vmem:[#allocation2 + $0x540] sm:$0xff]
    %v230 = vld [vmem:[#allocation2 + $0x548] sm:$0xff]
    %v231 = vld [vmem:[#allocation2 + $0x550] sm:$0xff]
    %v232 = vld [vmem:[#allocation2 + $0x558] sm:$0xff]
    %v233 = vld [vmem:[#allocation2 + $0x560] sm:$0xff]
    %v234 = vld [vmem:[#allocation2 + $0x568] sm:$0xff]
    %v235 = vld [vmem:[#allocation2 + $0x570] sm:$0xff]
    %v236 = vld [vmem:[#allocation2 + $0x578] sm:$0xff]
    %v237 = vld [vmem:[#allocation2 + $0x580] sm:$0xff]
    %v238 = vld [vmem:[#allocation2 + $0x588] sm:$0xff]
    %v239 = vld [vmem:[#allocation2 + $0x590] sm:$0xff]
    %v240 = vld [vmem:[#allocation2 + $0x598] sm:$0xff]
    %v241 = vld [vmem:[#allocation2 + $0x5a0] sm:$0xff]
    %v242 = vld [vmem:[#allocation2 + $0x5a8] sm:$0xff]
    %v243 = vld [vmem:[#allocation2 + $0x5b0] sm:$0xff]
    %v244 = vld [vmem:[#allocation2 + $0x5b8] sm:$0xff]
    %v245 = vld [vmem:[#allocation2 + $0x5c0] sm:$0xff]
    %v246 = vld [vmem:[#allocation2 + $0x5c8] sm:$0xff]
    %v247 = vld [vmem:[#allocation2 + $0x5d0] sm:$0xff]
    %v248 = vld [vmem:[#allocation2 + $0x5d8] sm:$0xff]
    %v249 = vld [vmem:[#allocation2 + $0x5e0] sm:$0xff]
    %v250 = vld [vmem:[#allocation2 + $0x5e8] sm:$0xff]
    %v251 = vld [vmem:[#allocation2 + $0x5f0] sm:$0xff]
    %v252 = vld [vmem:[#allocation2 + $0x5f8] sm:$0xff]
    %v253 = vld [vmem:[%s2] sm:$0x3f]
    %v255 = vlaneseq
    %v256 = vshrl.u32 %v255, 7
    %v257 = vsub.s32 0, %v256
    %v258 = vrot.slane %v253, %v257
    %v259 = vlaneseq
    %v260 = vshrl.u32 %v259, 7
    %v261 = vsub.s32 1, %v260
    %v262 = vrot.slane %v253, %v261
    %v263 = vlaneseq
    %v264 = vshrl.u32 %v263, 7
    %v265 = vsub.s32 2, %v264
    %v266 = vrot.slane %v253, %v265
    %v267 = vlaneseq
    %v268 = vshrl.u32 %v267, 7
    %v269 = vsub.s32 3, %v268
    %v270 = vrot.slane %v253, %v269
    %v271 = vlaneseq
    %v272 = vshrl.u32 %v271, 7
    %v273 = vsub.s32 4, %v272
    %v274 = vrot.slane %v253, %v273
    %v275 = vlaneseq
    %v276 = vshrl.u32 %v275, 7
    %v277 = vsub.s32 5, %v276
    %v278 = vrot.slane %v253, %v277
    %v477 = vunpack.c.l.b16 %v61
    %v478 = vunpack.c.h.b16 %v61
    %v479 = vunpack.c.l.b16 %v62
    %v480 = vunpack.c.h.b16 %v62
    %v481 = vunpack.c.l.b16 %v63
    %v482 = vunpack.c.h.b16 %v63
    %v483 = vunpack.c.l.b16 %v64
    %v484 = vunpack.c.h.b16 %v64
    %v485 = vunpack.c.l.b16 %v65
    %v486 = vunpack.c.h.b16 %v65
    %v487 = vunpack.c.l.b16 %v66
    %v488 = vunpack.c.h.b16 %v66
    %v489 = vunpack.c.l.b16 %v67
    %v490 = vunpack.c.h.b16 %v67
    %v491 = vunpack.c.l.b16 %v68
    %v492 = vunpack.c.h.b16 %v68
    %v493 = vunpack.c.l.b16 %v69
    %v494 = vunpack.c.h.b16 %v69
    %v495 = vunpack.c.l.b16 %v70
    %v496 = vunpack.c.h.b16 %v70
    %v497 = vunpack.c.l.b16 %v71
    %v498 = vunpack.c.h.b16 %v71
    %v499 = vunpack.c.l.b16 %v72
    %v500 = vunpack.c.h.b16 %v72
    %v501 = vunpack.c.l.b16 %v73
    %v502 = vunpack.c.h.b16 %v73
    %v503 = vunpack.c.l.b16 %v74
    %v504 = vunpack.c.h.b16 %v74
    %v505 = vunpack.c.l.b16 %v75
    %v506 = vunpack.c.h.b16 %v75
    %v507 = vunpack.c.l.b16 %v76
    %v508 = vunpack.c.h.b16 %v76
    %v509 = vunpack.c.l.b16 %v77
    %v510 = vunpack.c.h.b16 %v77
    %v511 = vunpack.c.l.b16 %v78
    %v512 = vunpack.c.h.b16 %v78
    %v513 = vunpack.c.l.b16 %v79
    %v514 = vunpack.c.h.b16 %v79
    %v515 = vunpack.c.l.b16 %v80
    %v516 = vunpack.c.h.b16 %v80
    %v517 = vunpack.c.l.b16 %v81
    %v518 = vunpack.c.h.b16 %v81
    %v519 = vunpack.c.l.b16 %v82
    %v520 = vunpack.c.h.b16 %v82
    %v521 = vunpack.c.l.b16 %v83
    %v522 = vunpack.c.h.b16 %v83
    %v523 = vunpack.c.l.b16 %v84
    %v524 = vunpack.c.h.b16 %v84
    %v525 = vunpack.c.l.b16 %v85
    %v526 = vunpack.c.h.b16 %v85
    %v527 = vunpack.c.l.b16 %v86
    %v528 = vunpack.c.h.b16 %v86
    %v529 = vunpack.c.l.b16 %v87
    %v530 = vunpack.c.h.b16 %v87
    %v531 = vunpack.c.l.b16 %v88
    %v532 = vunpack.c.h.b16 %v88
    %v533 = vunpack.c.l.b16 %v89
    %v534 = vunpack.c.h.b16 %v89
    %v535 = vunpack.c.l.b16 %v90
    %v536 = vunpack.c.h.b16 %v90
    %v537 = vunpack.c.l.b16 %v91
    %v538 = vunpack.c.h.b16 %v91
    %v539 = vunpack.c.l.b16 %v92
    %v540 = vunpack.c.h.b16 %v92
    %v541 = vunpack.c.l.b16 %v93
    %v542 = vunpack.c.h.b16 %v93
    %v543 = vunpack.c.l.b16 %v94
    %v544 = vunpack.c.h.b16 %v94
    %v545 = vunpack.c.l.b16 %v95
    %v546 = vunpack.c.h.b16 %v95
    %v547 = vunpack.c.l.b16 %v96
    %v548 = vunpack.c.h.b16 %v96
    %v549 = vunpack.c.l.b16 %v97
    %v550 = vunpack.c.h.b16 %v97
    %v551 = vunpack.c.l.b16 %v98
    %v552 = vunpack.c.h.b16 %v98
    %v553 = vunpack.c.l.b16 %v99
    %v554 = vunpack.c.h.b16 %v99
    %v555 = vunpack.c.l.b16 %v100
    %v556 = vunpack.c.h.b16 %v100
    %v557 = vunpack.c.l.b16 %v101
    %v558 = vunpack.c.h.b16 %v101
    %v559 = vunpack.c.l.b16 %v102
    %v560 = vunpack.c.h.b16 %v102
    %v561 = vunpack.c.l.b16 %v103
    %v562 = vunpack.c.h.b16 %v103
    %v563 = vunpack.c.l.b16 %v104
    %v564 = vunpack.c.h.b16 %v104
    %v565 = vunpack.c.l.b16 %v105
    %v566 = vunpack.c.h.b16 %v105
    %v567 = vunpack.c.l.b16 %v106
    %v568 = vunpack.c.h.b16 %v106
    %v569 = vunpack.c.l.b16 %v107
    %v570 = vunpack.c.h.b16 %v107
    %v571 = vunpack.c.l.b16 %v108
    %v572 = vunpack.c.h.b16 %v108
    %v573 = vunpack.c.l.b16 %v109
    %v574 = vunpack.c.h.b16 %v109
    %v575 = vunpack.c.l.b16 %v110
    %v576 = vunpack.c.h.b16 %v110
    %v577 = vunpack.c.l.b16 %v111
    %v578 = vunpack.c.h.b16 %v111
    %v579 = vunpack.c.l.b16 %v112
    %v580 = vunpack.c.h.b16 %v112
    %v581 = vunpack.c.l.b16 %v113
    %v582 = vunpack.c.h.b16 %v113
    %v583 = vunpack.c.l.b16 %v114
    %v584 = vunpack.c.h.b16 %v114
    %v585 = vunpack.c.l.b16 %v115
    %v586 = vunpack.c.h.b16 %v115
    %v587 = vunpack.c.l.b16 %v116
    %v588 = vunpack.c.h.b16 %v116
    %v589 = vunpack.c.l.b16 %v117
    %v590 = vunpack.c.h.b16 %v117
    %v591 = vunpack.c.l.b16 %v118
    %v592 = vunpack.c.h.b16 %v118
    %v593 = vunpack.c.l.b16 %v119
    %v594 = vunpack.c.h.b16 %v119
    %v595 = vunpack.c.l.b16 %v120
    %v596 = vunpack.c.h.b16 %v120
    %v597 = vunpack.c.l.b16 %v121
    %v598 = vunpack.c.h.b16 %v121
    %v599 = vunpack.c.l.b16 %v122
    %v600 = vunpack.c.h.b16 %v122
    %v601 = vunpack.c.l.b16 %v123
    %v602 = vunpack.c.h.b16 %v123
    %v603 = vunpack.c.l.b16 %v124
    %v604 = vunpack.c.h.b16 %v124
    %v605 = vunpack.c.l.b16 %v125
    %v606 = vunpack.c.h.b16 %v125
    %v607 = vunpack.c.l.b16 %v126
    %v608 = vunpack.c.h.b16 %v126
    %v609 = vunpack.c.l.b16 %v127
    %v610 = vunpack.c.h.b16 %v127
    %v611 = vunpack.c.l.b16 %v128
    %v612 = vunpack.c.h.b16 %v128
    %v613 = vunpack.c.l.b16 %v129
    %v614 = vunpack.c.h.b16 %v129
    %v615 = vunpack.c.l.b16 %v130
    %v616 = vunpack.c.h.b16 %v130
    %v617 = vunpack.c.l.b16 %v131
    %v618 = vunpack.c.h.b16 %v131
    %v619 = vunpack.c.l.b16 %v132
    %v620 = vunpack.c.h.b16 %v132
    %v621 = vunpack.c.l.b16 %v133
    %v622 = vunpack.c.h.b16 %v133
    %v623 = vunpack.c.l.b16 %v134
    %v624 = vunpack.c.h.b16 %v134
    %v625 = vunpack.c.l.b16 %v135
    %v626 = vunpack.c.h.b16 %v135
    %v627 = vunpack.c.l.b16 %v136
    %v628 = vunpack.c.h.b16 %v136
    %v629 = vunpack.c.l.b16 %v137
    %v630 = vunpack.c.h.b16 %v137
    %v631 = vunpack.c.l.b16 %v138
    %v632 = vunpack.c.h.b16 %v138
    %v633 = vunpack.c.l.b16 %v139
    %v634 = vunpack.c.h.b16 %v139
    %v635 = vunpack.c.l.b16 %v140
    %v636 = vunpack.c.h.b16 %v140
    %v637 = vunpack.c.l.b16 %v141
    %v638 = vunpack.c.h.b16 %v141
    %v639 = vunpack.c.l.b16 %v142
    %v640 = vunpack.c.h.b16 %v142
    %v641 = vunpack.c.l.b16 %v143
    %v642 = vunpack.c.h.b16 %v143
    %v643 = vunpack.c.l.b16 %v144
    %v644 = vunpack.c.h.b16 %v144
    %v645 = vunpack.c.l.b16 %v145
    %v646 = vunpack.c.h.b16 %v145
    %v647 = vunpack.c.l.b16 %v146
    %v648 = vunpack.c.h.b16 %v146
    %v649 = vunpack.c.l.b16 %v147
    %v650 = vunpack.c.h.b16 %v147
    %v651 = vunpack.c.l.b16 %v148
    %v652 = vunpack.c.h.b16 %v148
    %v653 = vunpack.c.l.b16 %v149
    %v654 = vunpack.c.h.b16 %v149
    %v655 = vunpack.c.l.b16 %v150
    %v656 = vunpack.c.h.b16 %v150
    %v657 = vunpack.c.l.b16 %v151
    %v658 = vunpack.c.h.b16 %v151
    %v659 = vunpack.c.l.b16 %v152
    %v660 = vunpack.c.h.b16 %v152
    %v661 = vunpack.c.l.b16 %v153
    %v662 = vunpack.c.h.b16 %v153
    %v663 = vunpack.c.l.b16 %v154
    %v664 = vunpack.c.h.b16 %v154
    %v665 = vunpack.c.l.b16 %v155
    %v666 = vunpack.c.h.b16 %v155
    %v667 = vunpack.c.l.b16 %v156
    %v668 = vunpack.c.h.b16 %v156
    %v669 = vunpack.c.l.b16 %v157
    %v670 = vunpack.c.h.b16 %v157
    %v671 = vunpack.c.l.b16 %v158
    %v672 = vunpack.c.h.b16 %v158
    %v673 = vunpack.c.l.b16 %v159
    %v674 = vunpack.c.h.b16 %v159
    %v675 = vunpack.c.l.b16 %v160
    %v676 = vunpack.c.h.b16 %v160
    %v677 = vunpack.c.l.b16 %v161
    %v678 = vunpack.c.h.b16 %v161
    %v679 = vunpack.c.l.b16 %v162
    %v680 = vunpack.c.h.b16 %v162
    %v681 = vunpack.c.l.b16 %v163
    %v682 = vunpack.c.h.b16 %v163
    %v683 = vunpack.c.l.b16 %v164
    %v684 = vunpack.c.h.b16 %v164
    %v685 = vunpack.c.l.b16 %v165
    %v686 = vunpack.c.h.b16 %v165
    %v687 = vunpack.c.l.b16 %v166
    %v688 = vunpack.c.h.b16 %v166
    %v689 = vunpack.c.l.b16 %v167
    %v690 = vunpack.c.h.b16 %v167
    %v691 = vunpack.c.l.b16 %v168
    %v692 = vunpack.c.h.b16 %v168
    %v693 = vunpack.c.l.b16 %v169
    %v694 = vunpack.c.h.b16 %v169
    %v695 = vunpack.c.l.b16 %v170
    %v696 = vunpack.c.h.b16 %v170
    %v697 = vunpack.c.l.b16 %v171
    %v698 = vunpack.c.h.b16 %v171
    %v699 = vunpack.c.l.b16 %v172
    %v700 = vunpack.c.h.b16 %v172
    %v701 = vunpack.c.l.b16 %v173
    %v702 = vunpack.c.h.b16 %v173
    %v703 = vunpack.c.l.b16 %v174
    %v704 = vunpack.c.h.b16 %v174
    %v705 = vunpack.c.l.b16 %v175
    %v706 = vunpack.c.h.b16 %v175
    %v707 = vunpack.c.l.b16 %v176
    %v708 = vunpack.c.h.b16 %v176
    %v709 = vunpack.c.l.b16 %v177
    %v710 = vunpack.c.h.b16 %v177
    %v711 = vunpack.c.l.b16 %v178
    %v712 = vunpack.c.h.b16 %v178
    %v713 = vunpack.c.l.b16 %v179
    %v714 = vunpack.c.h.b16 %v179
    %v715 = vunpack.c.l.b16 %v180
    %v716 = vunpack.c.h.b16 %v180
    %v717 = vunpack.c.l.b16 %v181
    %v718 = vunpack.c.h.b16 %v181
    %v719 = vunpack.c.l.b16 %v182
    %v720 = vunpack.c.h.b16 %v182
    %v721 = vunpack.c.l.b16 %v183
    %v722 = vunpack.c.h.b16 %v183
    %v723 = vunpack.c.l.b16 %v184
    %v724 = vunpack.c.h.b16 %v184
    %v725 = vunpack.c.l.b16 %v185
    %v726 = vunpack.c.h.b16 %v185
    %v727 = vunpack.c.l.b16 %v186
    %v728 = vunpack.c.h.b16 %v186
    %v729 = vunpack.c.l.b16 %v187
    %v730 = vunpack.c.h.b16 %v187
    %v731 = vunpack.c.l.b16 %v188
    %v732 = vunpack.c.h.b16 %v188
    %v733 = vunpack.c.l.b16 %v189
    %v734 = vunpack.c.h.b16 %v189
    %v735 = vunpack.c.l.b16 %v190
    %v736 = vunpack.c.h.b16 %v190
    %v737 = vunpack.c.l.b16 %v191
    %v738 = vunpack.c.h.b16 %v191
    %v739 = vunpack.c.l.b16 %v192
    %v740 = vunpack.c.h.b16 %v192
    %v741 = vunpack.c.l.b16 %v193
    %v742 = vunpack.c.h.b16 %v193
    %v743 = vunpack.c.l.b16 %v194
    %v744 = vunpack.c.h.b16 %v194
    %v745 = vunpack.c.l.b16 %v195
    %v746 = vunpack.c.h.b16 %v195
    %v747 = vunpack.c.l.b16 %v196
    %v748 = vunpack.c.h.b16 %v196
    %v749 = vunpack.c.l.b16 %v197
    %v750 = vunpack.c.h.b16 %v197
    %v751 = vunpack.c.l.b16 %v198
    %v752 = vunpack.c.h.b16 %v198
    %v753 = vunpack.c.l.b16 %v199
    %v754 = vunpack.c.h.b16 %v199
    %v755 = vunpack.c.l.b16 %v200
    %v756 = vunpack.c.h.b16 %v200
    %v757 = vunpack.c.l.b16 %v201
    %v758 = vunpack.c.h.b16 %v201
    %v759 = vunpack.c.l.b16 %v202
    %v760 = vunpack.c.h.b16 %v202
    %v761 = vunpack.c.l.b16 %v203
    %v762 = vunpack.c.h.b16 %v203
    %v763 = vunpack.c.l.b16 %v204
    %v764 = vunpack.c.h.b16 %v204
    %v765 = vunpack.c.l.b16 %v205
    %v766 = vunpack.c.h.b16 %v205
    %v767 = vunpack.c.l.b16 %v206
    %v768 = vunpack.c.h.b16 %v206
    %v769 = vunpack.c.l.b16 %v207
    %v770 = vunpack.c.h.b16 %v207
    %v771 = vunpack.c.l.b16 %v208
    %v772 = vunpack.c.h.b16 %v208
    %v773 = vunpack.c.l.b16 %v209
    %v774 = vunpack.c.h.b16 %v209
    %v775 = vunpack.c.l.b16 %v210
    %v776 = vunpack.c.h.b16 %v210
    %v777 = vunpack.c.l.b16 %v211
    %v778 = vunpack.c.h.b16 %v211
    %v779 = vunpack.c.l.b16 %v212
    %v780 = vunpack.c.h.b16 %v212
    %v781 = vunpack.c.l.b16 %v213
    %v782 = vunpack.c.h.b16 %v213
    %v783 = vunpack.c.l.b16 %v214
    %v784 = vunpack.c.h.b16 %v214
    %v785 = vunpack.c.l.b16 %v215
    %v786 = vunpack.c.h.b16 %v215
    %v787 = vunpack.c.l.b16 %v216
    %v788 = vunpack.c.h.b16 %v216
    %v789 = vunpack.c.l.b16 %v217
    %v790 = vunpack.c.h.b16 %v217
    %v791 = vunpack.c.l.b16 %v218
    %v792 = vunpack.c.h.b16 %v218
    %v793 = vunpack.c.l.b16 %v219
    %v794 = vunpack.c.h.b16 %v219
    %v795 = vunpack.c.l.b16 %v220
    %v796 = vunpack.c.h.b16 %v220
    %v797 = vunpack.c.l.b16 %v221
    %v798 = vunpack.c.h.b16 %v221
    %v799 = vunpack.c.l.b16 %v222
    %v800 = vunpack.c.h.b16 %v222
    %v801 = vunpack.c.l.b16 %v223
    %v802 = vunpack.c.h.b16 %v223
    %v803 = vunpack.c.l.b16 %v224
    %v804 = vunpack.c.h.b16 %v224
    %v805 = vunpack.c.l.b16 %v225
    %v806 = vunpack.c.h.b16 %v225
    %v807 = vunpack.c.l.b16 %v226
    %v808 = vunpack.c.h.b16 %v226
    %v809 = vunpack.c.l.b16 %v227
    %v810 = vunpack.c.h.b16 %v227
    %v811 = vunpack.c.l.b16 %v228
    %v812 = vunpack.c.h.b16 %v228
    %v813 = vunpack.c.l.b16 %v229
    %v814 = vunpack.c.h.b16 %v229
    %v815 = vunpack.c.l.b16 %v230
    %v816 = vunpack.c.h.b16 %v230
    %v817 = vunpack.c.l.b16 %v231
    %v818 = vunpack.c.h.b16 %v231
    %v819 = vunpack.c.l.b16 %v232
    %v820 = vunpack.c.h.b16 %v232
    %v821 = vunpack.c.l.b16 %v233
    %v822 = vunpack.c.h.b16 %v233
    %v823 = vunpack.c.l.b16 %v234
    %v824 = vunpack.c.h.b16 %v234
    %v825 = vunpack.c.l.b16 %v235
    %v826 = vunpack.c.h.b16 %v235
    %v827 = vunpack.c.l.b16 %v236
    %v828 = vunpack.c.h.b16 %v236
    %v829 = vunpack.c.l.b16 %v237
    %v830 = vunpack.c.h.b16 %v237
    %v831 = vunpack.c.l.b16 %v238
    %v832 = vunpack.c.h.b16 %v238
    %v833 = vunpack.c.l.b16 %v239
    %v834 = vunpack.c.h.b16 %v239
    %v835 = vunpack.c.l.b16 %v240
    %v836 = vunpack.c.h.b16 %v240
    %v837 = vunpack.c.l.b16 %v241
    %v838 = vunpack.c.h.b16 %v241
    %v839 = vunpack.c.l.b16 %v242
    %v840 = vunpack.c.h.b16 %v242
    %v841 = vunpack.c.l.b16 %v243
    %v842 = vunpack.c.h.b16 %v243
    %v843 = vunpack.c.l.b16 %v244
    %v844 = vunpack.c.h.b16 %v244
    %v845 = vunpack.c.l.b16 %v245
    %v846 = vunpack.c.h.b16 %v245
    %v847 = vunpack.c.l.b16 %v246
    %v848 = vunpack.c.h.b16 %v246
    %v849 = vunpack.c.l.b16 %v247
    %v850 = vunpack.c.h.b16 %v247
    %v851 = vunpack.c.l.b16 %v248
    %v852 = vunpack.c.h.b16 %v248
    %v853 = vunpack.c.l.b16 %v249
    %v854 = vunpack.c.h.b16 %v249
    %v855 = vunpack.c.l.b16 %v250
    %v856 = vunpack.c.h.b16 %v250
    %v857 = vunpack.c.l.b16 %v251
    %v858 = vunpack.c.h.b16 %v251
    %v859 = vunpack.c.l.b16 %v252
    %v860 = vunpack.c.h.b16 %v252
    %v861 = vpack.c.b16 %v483, %v477
    %v862 = vpack.c.b16 %v484, %v478
    %v863 = vpack.c.b16 %v485, %v479
    %v864 = vpack.c.b16 %v486, %v480
    %v865 = vpack.c.b16 %v487, %v481
    %v866 = vpack.c.b16 %v488, %v482
    %v867 = vpack.c.b16 %v495, %v489
    %v868 = vpack.c.b16 %v496, %v490
    %v869 = vpack.c.b16 %v497, %v491
    %v870 = vpack.c.b16 %v498, %v492
    %v871 = vpack.c.b16 %v499, %v493
    %v872 = vpack.c.b16 %v500, %v494
    %v873 = vpack.c.b16 %v507, %v501
    %v874 = vpack.c.b16 %v508, %v502
    %v875 = vpack.c.b16 %v509, %v503
    %v876 = vpack.c.b16 %v510, %v504
    %v877 = vpack.c.b16 %v511, %v505
    %v878 = vpack.c.b16 %v512, %v506
    %v879 = vpack.c.b16 %v519, %v513
    %v880 = vpack.c.b16 %v520, %v514
    %v881 = vpack.c.b16 %v521, %v515
    %v882 = vpack.c.b16 %v522, %v516
    %v883 = vpack.c.b16 %v523, %v517
    %v884 = vpack.c.b16 %v524, %v518
    %v885 = vpack.c.b16 %v531, %v525
    %v886 = vpack.c.b16 %v532, %v526
    %v887 = vpack.c.b16 %v533, %v527
    %v888 = vpack.c.b16 %v534, %v528
    %v889 = vpack.c.b16 %v535, %v529
    %v890 = vpack.c.b16 %v536, %v530
    %v891 = vpack.c.b16 %v543, %v537
    %v892 = vpack.c.b16 %v544, %v538
    %v893 = vpack.c.b16 %v545, %v539
    %v894 = vpack.c.b16 %v546, %v540
    %v895 = vpack.c.b16 %v547, %v541
    %v896 = vpack.c.b16 %v548, %v542
    %v897 = vpack.c.b16 %v555, %v549
    %v898 = vpack.c.b16 %v556, %v550
    %v899 = vpack.c.b16 %v557, %v551
    %v900 = vpack.c.b16 %v558, %v552
    %v901 = vpack.c.b16 %v559, %v553
    %v902 = vpack.c.b16 %v560, %v554
    %v903 = vpack.c.b16 %v567, %v561
    %v904 = vpack.c.b16 %v568, %v562
    %v905 = vpack.c.b16 %v569, %v563
    %v906 = vpack.c.b16 %v570, %v564
    %v907 = vpack.c.b16 %v571, %v565
    %v908 = vpack.c.b16 %v572, %v566
    %v909 = vpack.c.b16 %v579, %v573
    %v910 = vpack.c.b16 %v580, %v574
    %v911 = vpack.c.b16 %v581, %v575
    %v912 = vpack.c.b16 %v582, %v576
    %v913 = vpack.c.b16 %v583, %v577
    %v914 = vpack.c.b16 %v584, %v578
    %v915 = vpack.c.b16 %v591, %v585
    %v916 = vpack.c.b16 %v592, %v586
    %v917 = vpack.c.b16 %v593, %v587
    %v918 = vpack.c.b16 %v594, %v588
    %v919 = vpack.c.b16 %v595, %v589
    %v920 = vpack.c.b16 %v596, %v590
    %v921 = vpack.c.b16 %v603, %v597
    %v922 = vpack.c.b16 %v604, %v598
    %v923 = vpack.c.b16 %v605, %v599
    %v924 = vpack.c.b16 %v606, %v600
    %v925 = vpack.c.b16 %v607, %v601
    %v926 = vpack.c.b16 %v608, %v602
    %v927 = vpack.c.b16 %v615, %v609
    %v928 = vpack.c.b16 %v616, %v610
    %v929 = vpack.c.b16 %v617, %v611
    %v930 = vpack.c.b16 %v618, %v612
    %v931 = vpack.c.b16 %v619, %v613
    %v932 = vpack.c.b16 %v620, %v614
    %v933 = vpack.c.b16 %v627, %v621
    %v934 = vpack.c.b16 %v628, %v622
    %v935 = vpack.c.b16 %v629, %v623
    %v936 = vpack.c.b16 %v630, %v624
    %v937 = vpack.c.b16 %v631, %v625
    %v938 = vpack.c.b16 %v632, %v626
    %v939 = vpack.c.b16 %v639, %v633
    %v940 = vpack.c.b16 %v640, %v634
    %v941 = vpack.c.b16 %v641, %v635
    %v942 = vpack.c.b16 %v642, %v636
    %v943 = vpack.c.b16 %v643, %v637
    %v944 = vpack.c.b16 %v644, %v638
    %v945 = vpack.c.b16 %v651, %v645
    %v946 = vpack.c.b16 %v652, %v646
    %v947 = vpack.c.b16 %v653, %v647
    %v948 = vpack.c.b16 %v654, %v648
    %v949 = vpack.c.b16 %v655, %v649
    %v950 = vpack.c.b16 %v656, %v650
    %v951 = vpack.c.b16 %v663, %v657
    %v952 = vpack.c.b16 %v664, %v658
    %v953 = vpack.c.b16 %v665, %v659
    %v954 = vpack.c.b16 %v666, %v660
    %v955 = vpack.c.b16 %v667, %v661
    %v956 = vpack.c.b16 %v668, %v662
    %v957 = vpack.c.b16 %v675, %v669
    %v958 = vpack.c.b16 %v676, %v670
    %v959 = vpack.c.b16 %v677, %v671
    %v960 = vpack.c.b16 %v678, %v672
    %v961 = vpack.c.b16 %v679, %v673
    %v962 = vpack.c.b16 %v680, %v674
    %v963 = vpack.c.b16 %v687, %v681
    %v964 = vpack.c.b16 %v688, %v682
    %v965 = vpack.c.b16 %v689, %v683
    %v966 = vpack.c.b16 %v690, %v684
    %v967 = vpack.c.b16 %v691, %v685
    %v968 = vpack.c.b16 %v692, %v686
    %v969 = vpack.c.b16 %v699, %v693
    %v970 = vpack.c.b16 %v700, %v694
    %v971 = vpack.c.b16 %v701, %v695
    %v972 = vpack.c.b16 %v702, %v696
    %v973 = vpack.c.b16 %v703, %v697
    %v974 = vpack.c.b16 %v704, %v698
    %v975 = vpack.c.b16 %v711, %v705
    %v976 = vpack.c.b16 %v712, %v706
    %v977 = vpack.c.b16 %v713, %v707
    %v978 = vpack.c.b16 %v714, %v708
    %v979 = vpack.c.b16 %v715, %v709
    %v980 = vpack.c.b16 %v716, %v710
    %v981 = vpack.c.b16 %v723, %v717
    %v982 = vpack.c.b16 %v724, %v718
    %v983 = vpack.c.b16 %v725, %v719
    %v984 = vpack.c.b16 %v726, %v720
    %v985 = vpack.c.b16 %v727, %v721
    %v986 = vpack.c.b16 %v728, %v722
    %v987 = vpack.c.b16 %v735, %v729
    %v988 = vpack.c.b16 %v736, %v730
    %v989 = vpack.c.b16 %v737, %v731
    %v990 = vpack.c.b16 %v738, %v732
    %v991 = vpack.c.b16 %v739, %v733
    %v992 = vpack.c.b16 %v740, %v734
    %v993 = vpack.c.b16 %v747, %v741
    %v994 = vpack.c.b16 %v748, %v742
    %v995 = vpack.c.b16 %v749, %v743
    %v996 = vpack.c.b16 %v750, %v744
    %v997 = vpack.c.b16 %v751, %v745
    %v998 = vpack.c.b16 %v752, %v746
    %v999 = vpack.c.b16 %v759, %v753
    %v1000 = vpack.c.b16 %v760, %v754
    %v1001 = vpack.c.b16 %v761, %v755
    %v1002 = vpack.c.b16 %v762, %v756
    %v1003 = vpack.c.b16 %v763, %v757
    %v1004 = vpack.c.b16 %v764, %v758
    %v1005 = vpack.c.b16 %v771, %v765
    %v1006 = vpack.c.b16 %v772, %v766
    %v1007 = vpack.c.b16 %v773, %v767
    %v1008 = vpack.c.b16 %v774, %v768
    %v1009 = vpack.c.b16 %v775, %v769
    %v1010 = vpack.c.b16 %v776, %v770
    %v1011 = vpack.c.b16 %v783, %v777
    %v1012 = vpack.c.b16 %v784, %v778
    %v1013 = vpack.c.b16 %v785, %v779
    %v1014 = vpack.c.b16 %v786, %v780
    %v1015 = vpack.c.b16 %v787, %v781
    %v1016 = vpack.c.b16 %v788, %v782
    %v1017 = vpack.c.b16 %v795, %v789
    %v1018 = vpack.c.b16 %v796, %v790
    %v1019 = vpack.c.b16 %v797, %v791
    %v1020 = vpack.c.b16 %v798, %v792
    %v1021 = vpack.c.b16 %v799, %v793
    %v1022 = vpack.c.b16 %v800, %v794
    %v1023 = vpack.c.b16 %v807, %v801
    %v1024 = vpack.c.b16 %v808, %v802
    %v1025 = vpack.c.b16 %v809, %v803
    %v1026 = vpack.c.b16 %v810, %v804
    %v1027 = vpack.c.b16 %v811, %v805
    %v1028 = vpack.c.b16 %v812, %v806
    %v1029 = vpack.c.b16 %v819, %v813
    %v1030 = vpack.c.b16 %v820, %v814
    %v1031 = vpack.c.b16 %v821, %v815
    %v1032 = vpack.c.b16 %v822, %v816
    %v1033 = vpack.c.b16 %v823, %v817
    %v1034 = vpack.c.b16 %v824, %v818
    %v1035 = vpack.c.b16 %v831, %v825
    %v1036 = vpack.c.b16 %v832, %v826
    %v1037 = vpack.c.b16 %v833, %v827
    %v1038 = vpack.c.b16 %v834, %v828
    %v1039 = vpack.c.b16 %v835, %v829
    %v1040 = vpack.c.b16 %v836, %v830
    %v1041 = vpack.c.b16 %v843, %v837
    %v1042 = vpack.c.b16 %v844, %v838
    %v1043 = vpack.c.b16 %v845, %v839
    %v1044 = vpack.c.b16 %v846, %v840
    %v1045 = vpack.c.b16 %v847, %v841
    %v1046 = vpack.c.b16 %v848, %v842
    %v1047 = vpack.c.b16 %v855, %v849
    %v1048 = vpack.c.b16 %v856, %v850
    %v1049 = vpack.c.b16 %v857, %v851
    %v1050 = vpack.c.b16 %v858, %v852
    %v1051 = vpack.c.b16 %v859, %v853
    %v1052 = vpack.c.b16 %v860, %v854
    %1245 = vmatprep.subr.bf16.mxu0 %v862
    %1246 = vmatpush1.bf16.msra.mxu0 %v861
    %1247 = vmatprep.subr.bf16.mxu0 %v868
    %1248 = vmatpush1.bf16.msra.mxu0 %v867
    %1249 = vmatprep.subr.bf16.mxu0 %v874
    %1250 = vmatpush1.bf16.msra.mxu0 %v873
    %1251 = vmatprep.subr.bf16.mxu0 %v880
    %1252 = vmatpush1.bf16.msra.mxu0 %v879
    %1253 = vmatprep.subr.bf16.mxu0 %v886
    %1254 = vmatpush1.bf16.msra.mxu0 %v885
    %1255 = vmatprep.subr.bf16.mxu0 %v892
    %1256 = vmatpush1.bf16.msra.mxu0 %v891
    %1257 = vmatprep.subr.bf16.mxu0 %v898
    %1258 = vmatpush1.bf16.msra.mxu0 %v897
    %1259 = vmatprep.subr.bf16.mxu0 %v904
    %1260 = vmatpush1.bf16.msra.mxu0 %v903
    %1261 = vmatprep.subr.bf16.mxu0 %v910
    %1262 = vmatpush1.bf16.msra.mxu0 %v909
    %1263 = vmatprep.subr.bf16.mxu0 %v916
    %1264 = vmatpush1.bf16.msra.mxu0 %v915
    %1265 = vmatprep.subr.bf16.mxu0 %v922
    %1266 = vmatpush1.bf16.msra.mxu0 %v921
    %1267 = vmatprep.subr.bf16.mxu0 %v928
    %1268 = vmatpush1.bf16.msra.mxu0 %v927
    %1269 = vmatprep.subr.bf16.mxu0 %v934
    %1270 = vmatpush1.bf16.msra.mxu0 %v933
    %1271 = vmatprep.subr.bf16.mxu0 %v940
    %1272 = vmatpush1.bf16.msra.mxu0 %v939
    %1273 = vmatprep.subr.bf16.mxu0 %v946
    %1274 = vmatpush1.bf16.msra.mxu0 %v945
    %1275 = vmatprep.subr.bf16.mxu0 %v952
    %1276 = vmatpush1.bf16.msra.mxu0 %v951
    %1277 = vmatprep.mubr.bf16.mxu0 %v58
    %1278 = vmatmul.mubr.bf16.gmra.mrb[0].mxu0 %v57
    %v1279 = vpop.f32.mrb[0].mxu0
    %v1280 = vadd.f32 %v258, %v1279
    %v1281 = vpop.f32.mrb[0].mxu0
    %v1282 = vadd.f32 %v262, %v1281
    %v1283 = vpop.f32.mrb[0].mxu0
    %v1284 = vpop.f32.mrb[0].mxu0
    %1285 = vdwg.mxu0
    %1286 = vmatprep.subr.bf16.mxu0 %v958
    %1287 = vmatpush1.bf16.msra.mxu0 %v957
    %1288 = vmatprep.subr.bf16.mxu0 %v964
    %1289 = vmatpush1.bf16.msra.mxu0 %v963
    %1290 = vmatprep.subr.bf16.mxu0 %v970
    %1291 = vmatpush1.bf16.msra.mxu0 %v969
    %1292 = vmatprep.subr.bf16.mxu0 %v976
    %1293 = vmatpush1.bf16.msra.mxu0 %v975
    %1294 = vmatprep.subr.bf16.mxu0 %v982
    %1295 = vmatpush1.bf16.msra.mxu0 %v981
    %1296 = vmatprep.subr.bf16.mxu0 %v988
    %1297 = vmatpush1.bf16.msra.mxu0 %v987
    %1298 = vmatprep.subr.bf16.mxu0 %v994
    %1299 = vmatpush1.bf16.msra.mxu0 %v993
    %1300 = vmatprep.subr.bf16.mxu0 %v1000
    %1301 = vmatpush1.bf16.msra.mxu0 %v999
    %1302 = vmatprep.subr.bf16.mxu0 %v1006
    %1303 = vmatpush1.bf16.msra.mxu0 %v1005
    %1304 = vmatprep.subr.bf16.mxu0 %v1012
    %1305 = vmatpush1.bf16.msra.mxu0 %v1011
    %1306 = vmatprep.subr.bf16.mxu0 %v1018
    %1307 = vmatpush1.bf16.msra.mxu0 %v1017
    %1308 = vmatprep.subr.bf16.mxu0 %v1024
    %1309 = vmatpush1.bf16.msra.mxu0 %v1023
    %1310 = vmatprep.subr.bf16.mxu0 %v1030
    %1311 = vmatpush1.bf16.msra.mxu0 %v1029
    %1312 = vmatprep.subr.bf16.mxu0 %v1036
    %1313 = vmatpush1.bf16.msra.mxu0 %v1035
    %1314 = vmatprep.subr.bf16.mxu0 %v1042
    %1315 = vmatpush1.bf16.msra.mxu0 %v1041
    %1316 = vmatprep.subr.bf16.mxu0 %v1048
    %1317 = vmatpush1.bf16.msra.mxu0 %v1047
    %1318 = vmatprep.mubr.bf16.mxu0 %v60
    %1319 = vmatmul.mubr.bf16.gmra.mrb[0].mxu0 %v59
    %v1320 = vpop.f32.mrb[0].mxu0
    %v1321 = vadd.f32 %v1280, %v1320
    %v1322 = vpop.f32.mrb[0].mxu0
    %v1323 = vadd.f32 %v1282, %v1322
    %v1324 = vpop.f32.mrb[0].mxu0
    %v1325 = vpop.f32.mrb[0].mxu0
    %1326 = vdwg.mxu0
    %1327 = vmatprep.subr.bf16.mxu0 %v864
    %1328 = vmatpush1.bf16.msra.mxu0 %v863
    %1329 = vmatprep.subr.bf16.mxu0 %v870
    %1330 = vmatpush1.bf16.msra.mxu0 %v869
    %1331 = vmatprep.subr.bf16.mxu0 %v876
    %1332 = vmatpush1.bf16.msra.mxu0 %v875
    %1333 = vmatprep.subr.bf16.mxu0 %v882
    %1334 = vmatpush1.bf16.msra.mxu0 %v881
    %1335 = vmatprep.subr.bf16.mxu0 %v888
    %1336 = vmatpush1.bf16.msra.mxu0 %v887
    %1337 = vmatprep.subr.bf16.mxu0 %v894
    %1338 = vmatpush1.bf16.msra.mxu0 %v893
    %1339 = vmatprep.subr.bf16.mxu0 %v900
    %1340 = vmatpush1.bf16.msra.mxu0 %v899
    %1341 = vmatprep.subr.bf16.mxu0 %v906
    %1342 = vmatpush1.bf16.msra.mxu0 %v905
    %1343 = vmatprep.subr.bf16.mxu0 %v912
    %1344 = vmatpush1.bf16.msra.mxu0 %v911
    %1345 = vmatprep.subr.bf16.mxu0 %v918
    %1346 = vmatpush1.bf16.msra.mxu0 %v917
    %1347 = vmatprep.subr.bf16.mxu0 %v924
    %1348 = vmatpush1.bf16.msra.mxu0 %v923
    %1349 = vmatprep.subr.bf16.mxu0 %v930
    %1350 = vmatpush1.bf16.msra.mxu0 %v929
    %1351 = vmatprep.subr.bf16.mxu0 %v936
    %1352 = vmatpush1.bf16.msra.mxu0 %v935
    %1353 = vmatprep.subr.bf16.mxu0 %v942
    %1354 = vmatpush1.bf16.msra.mxu0 %v941
    %1355 = vmatprep.subr.bf16.mxu0 %v948
    %1356 = vmatpush1.bf16.msra.mxu0 %v947
    %1357 = vmatprep.subr.bf16.mxu0 %v954
    %1358 = vmatpush1.bf16.msra.mxu0 %v953
    %1359 = vmatprep.mubr.bf16.mxu0 %v58
    %1360 = vmatmul.mubr.bf16.gmra.mrb[0].mxu0 %v57
    %v1361 = vpop.f32.mrb[0].mxu0
    %v1362 = vadd.f32 %v266, %v1361
    %v1363 = vpop.f32.mrb[0].mxu0
    %v1364 = vadd.f32 %v270, %v1363
    %v1365 = vpop.f32.mrb[0].mxu0
    %v1366 = vpop.f32.mrb[0].mxu0
    %1367 = vdwg.mxu0
    %1368 = vmatprep.subr.bf16.mxu0 %v960
    %1369 = vmatpush1.bf16.msra.mxu0 %v959
    %1370 = vmatprep.subr.bf16.mxu0 %v966
    %1371 = vmatpush1.bf16.msra.mxu0 %v965
    %1372 = vmatprep.subr.bf16.mxu0 %v972
    %1373 = vmatpush1.bf16.msra.mxu0 %v971
    %1374 = vmatprep.subr.bf16.mxu0 %v978
    %1375 = vmatpush1.bf16.msra.mxu0 %v977
    %1376 = vmatprep.subr.bf16.mxu0 %v984
    %1377 = vmatpush1.bf16.msra.mxu0 %v983
    %1378 = vmatprep.subr.bf16.mxu0 %v990
    %1379 = vmatpush1.bf16.msra.mxu0 %v989
    %1380 = vmatprep.subr.bf16.mxu0 %v996
    %1381 = vmatpush1.bf16.msra.mxu0 %v995
    %1382 = vmatprep.subr.bf16.mxu0 %v1002
    %1383 = vmatpush1.bf16.msra.mxu0 %v1001
    %1384 = vmatprep.subr.bf16.mxu0 %v1008
    %1385 = vmatpush1.bf16.msra.mxu0 %v1007
    %1386 = vmatprep.subr.bf16.mxu0 %v1014
    %1387 = vmatpush1.bf16.msra.mxu0 %v1013
    %1388 = vmatprep.subr.bf16.mxu0 %v1020
    %1389 = vmatpush1.bf16.msra.mxu0 %v1019
    %1390 = vmatprep.subr.bf16.mxu0 %v1026
    %1391 = vmatpush1.bf16.msra.mxu0 %v1025
    %1392 = vmatprep.subr.bf16.mxu0 %v1032
    %1393 = vmatpush1.bf16.msra.mxu0 %v1031
    %1394 = vmatprep.subr.bf16.mxu0 %v1038
    %1395 = vmatpush1.bf16.msra.mxu0 %v1037
    %1396 = vmatprep.subr.bf16.mxu0 %v1044
    %1397 = vmatpush1.bf16.msra.mxu0 %v1043
    %1398 = vmatprep.subr.bf16.mxu0 %v1050
    %1399 = vmatpush1.bf16.msra.mxu0 %v1049
    %1400 = vmatprep.mubr.bf16.mxu0 %v60
    %1401 = vmatmul.mubr.bf16.gmra.mrb[0].mxu0 %v59
    %v1402 = vpop.f32.mrb[0].mxu0
    %v1403 = vadd.f32 %v1362, %v1402
    %v1404 = vpop.f32.mrb[0].mxu0
    %v1405 = vadd.f32 %v1364, %v1404
    %v1406 = vpop.f32.mrb[0].mxu0
    %v1407 = vpop.f32.mrb[0].mxu0
    %1408 = vdwg.mxu0
    %1409 = vmatprep.subr.bf16.mxu0 %v866
    %1410 = vmatpush1.bf16.msra.mxu0 %v865
    %1411 = vmatprep.subr.bf16.mxu0 %v872
    %1412 = vmatpush1.bf16.msra.mxu0 %v871
    %1413 = vmatprep.subr.bf16.mxu0 %v878
    %1414 = vmatpush1.bf16.msra.mxu0 %v877
    %1415 = vmatprep.subr.bf16.mxu0 %v884
    %1416 = vmatpush1.bf16.msra.mxu0 %v883
    %1417 = vmatprep.subr.bf16.mxu0 %v890
    %1418 = vmatpush1.bf16.msra.mxu0 %v889
    %1419 = vmatprep.subr.bf16.mxu0 %v896
    %1420 = vmatpush1.bf16.msra.mxu0 %v895
    %1421 = vmatprep.subr.bf16.mxu0 %v902
    %1422 = vmatpush1.bf16.msra.mxu0 %v901
    %1423 = vmatprep.subr.bf16.mxu0 %v908
    %1424 = vmatpush1.bf16.msra.mxu0 %v907
    %1425 = vmatprep.subr.bf16.mxu0 %v914
    %1426 = vmatpush1.bf16.msra.mxu0 %v913
    %1427 = vmatprep.subr.bf16.mxu0 %v920
    %1428 = vmatpush1.bf16.msra.mxu0 %v919
    %1429 = vmatprep.subr.bf16.mxu0 %v926
    %1430 = vmatpush1.bf16.msra.mxu0 %v925
    %1431 = vmatprep.subr.bf16.mxu0 %v932
    %1432 = vmatpush1.bf16.msra.mxu0 %v931
    %1433 = vmatprep.subr.bf16.mxu0 %v938
    %1434 = vmatpush1.bf16.msra.mxu0 %v937
    %1435 = vmatprep.subr.bf16.mxu0 %v944
    %1436 = vmatpush1.bf16.msra.mxu0 %v943
    %1437 = vmatprep.subr.bf16.mxu0 %v950
    %1438 = vmatpush1.bf16.msra.mxu0 %v949
    %1439 = vmatprep.subr.bf16.mxu0 %v956
    %1440 = vmatpush1.bf16.msra.mxu0 %v955
    %1441 = vmatprep.mubr.bf16.mxu0 %v58
    %1442 = vmatmul.mubr.bf16.gmra.mrb[0].mxu0 %v57
    %v1443 = vpop.f32.mrb[0].mxu0
    %v1444 = vadd.f32 %v274, %v1443
    %v1445 = vpop.f32.mrb[0].mxu0
    %v1446 = vadd.f32 %v278, %v1445
    %v1447 = vpop.f32.mrb[0].mxu0
    %v1448 = vpop.f32.mrb[0].mxu0
    %1449 = vdwg.mxu0
    %1450 = vmatprep.subr.bf16.mxu0 %v962
    %1451 = vmatpush1.bf16.msra.mxu0 %v961
    %1452 = vmatprep.subr.bf16.mxu0 %v968
    %1453 = vmatpush1.bf16.msra.mxu0 %v967
    %1454 = vmatprep.subr.bf16.mxu0 %v974
    %1455 = vmatpush1.bf16.msra.mxu0 %v973
    %1456 = vmatprep.subr.bf16.mxu0 %v980
    %1457 = vmatpush1.bf16.msra.mxu0 %v979
    %1458 = vmatprep.subr.bf16.mxu0 %v986
    %1459 = vmatpush1.bf16.msra.mxu0 %v985
    %1460 = vmatprep.subr.bf16.mxu0 %v992
    %1461 = vmatpush1.bf16.msra.mxu0 %v991
    %1462 = vmatprep.subr.bf16.mxu0 %v998
    %1463 = vmatpush1.bf16.msra.mxu0 %v997
    %1464 = vmatprep.subr.bf16.mxu0 %v1004
    %1465 = vmatpush1.bf16.msra.mxu0 %v1003
    %1466 = vmatprep.subr.bf16.mxu0 %v1010
    %1467 = vmatpush1.bf16.msra.mxu0 %v1009
    %1468 = vmatprep.subr.bf16.mxu0 %v1016
    %1469 = vmatpush1.bf16.msra.mxu0 %v1015
    %1470 = vmatprep.subr.bf16.mxu0 %v1022
    %1471 = vmatpush1.bf16.msra.mxu0 %v1021
    %1472 = vmatprep.subr.bf16.mxu0 %v1028
    %1473 = vmatpush1.bf16.msra.mxu0 %v1027
    %1474 = vmatprep.subr.bf16.mxu0 %v1034
    %1475 = vmatpush1.bf16.msra.mxu0 %v1033
    %1476 = vmatprep.subr.bf16.mxu0 %v1040
    %1477 = vmatpush1.bf16.msra.mxu0 %v1039
    %1478 = vmatprep.subr.bf16.mxu0 %v1046
    %1479 = vmatpush1.bf16.msra.mxu0 %v1045
    %1480 = vmatprep.subr.bf16.mxu0 %v1052
    %1481 = vmatpush1.bf16.msra.mxu0 %v1051
    %1482 = vmatprep.mubr.bf16.mxu0 %v60
    %1483 = vmatmul.mubr.bf16.gmra.mrb[0].mxu0 %v59
    %v1484 = vpop.f32.mrb[0].mxu0
    %v1485 = vadd.f32 %v1444, %v1484
    %v1486 = vpop.f32.mrb[0].mxu0
    %v1487 = vadd.f32 %v1446, %v1486
    %v1488 = vpop.f32.mrb[0].mxu0
    %v1489 = vpop.f32.mrb[0].mxu0
    %1490 = vdwg.mxu0
    %1491 = vst [vmem:[%s6] sm:$0xff] %v1321
    %1492 = vst [vmem:[%s6 + $0x8] sm:$0xff] %v1323
    %1493 = vst [vmem:[%s6 + $0x10] sm:$0xff] %v1403
    %1494 = vst [vmem:[%s6 + $0x18] sm:$0xff] %v1405
    %1495 = vst [vmem:[%s6 + $0x20] sm:$0xff] %v1485
    %1496 = vst [vmem:[%s6 + $0x28] sm:$0xff] %v1487
    %v1497 = vld [vmem:[%s3] sm:$0xff]
    %v1498 = vld [vmem:[%s3 + $0x8] sm:$0xff]
    %v1499 = vld [vmem:[%s3 + $0x10] sm:$0xff]
    %v1500 = vld [vmem:[%s3 + $0x18] sm:$0xff]
    %v1501 = vld [vmem:[%s3 + $0x20] sm:$0xff]
    %v1502 = vld [vmem:[%s3 + $0x28] sm:$0xff]
    %v1503 = vld [vmem:[%s3 + $0x30] sm:$0xff]
    %v1504 = vld [vmem:[%s3 + $0x38] sm:$0xff]
    %v1505 = vpack.c.bf16 %v1497, %v1497
    %v1506 = vpack.c.bf16 %v1498, %v1498
    %v1507 = vpack.c.bf16 %v1499, %v1499
    %v1508 = vpack.c.bf16 %v1500, %v1500
    %v1509 = vpack.c.bf16 %v1501, %v1501
    %v1510 = vpack.c.bf16 %v1502, %v1502
    %v1511 = vpack.c.bf16 %v1503, %v1503
    %v1512 = vpack.c.bf16 %v1504, %v1504
    %v1513 = vld [vmem:[#allocation4] sm:$0xff]
    %v1514 = vld [vmem:[#allocation4 + $0x8] sm:$0xff]
    %v1515 = vld [vmem:[#allocation4 + $0x10] sm:$0xff]
    %v1516 = vld [vmem:[#allocation4 + $0x18] sm:$0xff]
    %v1517 = vld [vmem:[#allocation4 + $0x20] sm:$0xff]
    %v1518 = vld [vmem:[#allocation4 + $0x28] sm:$0xff]
    %v1519 = vld [vmem:[#allocation4 + $0x30] sm:$0xff]
    %v1520 = vld [vmem:[#allocation4 + $0x38] sm:$0xff]
    %v1521 = vld [vmem:[#allocation4 + $0x40] sm:$0xff]
    %v1522 = vld [vmem:[#allocation4 + $0x48] sm:$0xff]
    %v1523 = vld [vmem:[#allocation4 + $0x50] sm:$0xff]
    %v1524 = vld [vmem:[#allocation4 + $0x58] sm:$0xff]
    %v1525 = vld [vmem:[#allocation4 + $0x60] sm:$0xff]
    %v1526 = vld [vmem:[#allocation4 + $0x68] sm:$0xff]
    %v1527 = vld [vmem:[#allocation4 + $0x70] sm:$0xff]
    %v1528 = vld [vmem:[#allocation4 + $0x78] sm:$0xff]
    %v1529 = vld [vmem:[#allocation4 + $0x80] sm:$0xff]
    %v1530 = vld [vmem:[#allocation4 + $0x88] sm:$0xff]
    %v1531 = vld [vmem:[#allocation4 + $0x90] sm:$0xff]
    %v1532 = vld [vmem:[#allocation4 + $0x98] sm:$0xff]
    %v1533 = vld [vmem:[#allocation4 + $0xa0] sm:$0xff]
    %v1534 = vld [vmem:[#allocation4 + $0xa8] sm:$0xff]
    %v1535 = vld [vmem:[#allocation4 + $0xb0] sm:$0xff]
    %v1536 = vld [vmem:[#allocation4 + $0xb8] sm:$0xff]
    %v1537 = vld [vmem:[#allocation4 + $0xc0] sm:$0xff]
    %v1538 = vld [vmem:[#allocation4 + $0xc8] sm:$0xff]
    %v1539 = vld [vmem:[#allocation4 + $0xd0] sm:$0xff]
    %v1540 = vld [vmem:[#allocation4 + $0xd8] sm:$0xff]
    %v1541 = vld [vmem:[#allocation4 + $0xe0] sm:$0xff]
    %v1542 = vld [vmem:[#allocation4 + $0xe8] sm:$0xff]
    %v1543 = vld [vmem:[#allocation4 + $0xf0] sm:$0xff]
    %v1544 = vld [vmem:[#allocation4 + $0xf8] sm:$0xff]
    %v1545 = vld [vmem:[#allocation4 + $0x100] sm:$0xff]
    %v1546 = vld [vmem:[#allocation4 + $0x108] sm:$0xff]
    %v1547 = vld [vmem:[#allocation4 + $0x110] sm:$0xff]
    %v1548 = vld [vmem:[#allocation4 + $0x118] sm:$0xff]
    %v1549 = vld [vmem:[#allocation4 + $0x120] sm:$0xff]
    %v1550 = vld [vmem:[#allocation4 + $0x128] sm:$0xff]
    %v1551 = vld [vmem:[#allocation4 + $0x130] sm:$0xff]
    %v1552 = vld [vmem:[#allocation4 + $0x138] sm:$0xff]
    %v1553 = vld [vmem:[#allocation4 + $0x140] sm:$0xff]
    %v1554 = vld [vmem:[#allocation4 + $0x148] sm:$0xff]
    %v1555 = vld [vmem:[#allocation4 + $0x150] sm:$0xff]
    %v1556 = vld [vmem:[#allocation4 + $0x158] sm:$0xff]
    %v1557 = vld [vmem:[#allocation4 + $0x160] sm:$0xff]
    %v1558 = vld [vmem:[#allocation4 + $0x168] sm:$0xff]
    %v1559 = vld [vmem:[#allocation4 + $0x170] sm:$0xff]
    %v1560 = vld [vmem:[#allocation4 + $0x178] sm:$0xff]
    %v1561 = vld [vmem:[#allocation4 + $0x180] sm:$0xff]
    %v1562 = vld [vmem:[#allocation4 + $0x188] sm:$0xff]
    %v1563 = vld [vmem:[#allocation4 + $0x190] sm:$0xff]
    %v1564 = vld [vmem:[#allocation4 + $0x198] sm:$0xff]
    %v1565 = vld [vmem:[#allocation4 + $0x1a0] sm:$0xff]
    %v1566 = vld [vmem:[#allocation4 + $0x1a8] sm:$0xff]
    %v1567 = vld [vmem:[#allocation4 + $0x1b0] sm:$0xff]
    %v1568 = vld [vmem:[#allocation4 + $0x1b8] sm:$0xff]
    %v1569 = vld [vmem:[#allocation4 + $0x1c0] sm:$0xff]
    %v1570 = vld [vmem:[#allocation4 + $0x1c8] sm:$0xff]
    %v1571 = vld [vmem:[#allocation4 + $0x1d0] sm:$0xff]
    %v1572 = vld [vmem:[#allocation4 + $0x1d8] sm:$0xff]
    %v1573 = vld [vmem:[#allocation4 + $0x1e0] sm:$0xff]
    %v1574 = vld [vmem:[#allocation4 + $0x1e8] sm:$0xff]
    %v1575 = vld [vmem:[#allocation4 + $0x1f0] sm:$0xff]
    %v1576 = vld [vmem:[#allocation4 + $0x1f8] sm:$0xff]
    %v1577 = vld [vmem:[#allocation4 + $0x200] sm:$0xff]
    %v1578 = vld [vmem:[#allocation4 + $0x208] sm:$0xff]
    %v1579 = vld [vmem:[#allocation4 + $0x210] sm:$0xff]
    %v1580 = vld [vmem:[#allocation4 + $0x218] sm:$0xff]
    %v1581 = vld [vmem:[#allocation4 + $0x220] sm:$0xff]
    %v1582 = vld [vmem:[#allocation4 + $0x228] sm:$0xff]
    %v1583 = vld [vmem:[#allocation4 + $0x230] sm:$0xff]
    %v1584 = vld [vmem:[#allocation4 + $0x238] sm:$0xff]
    %v1585 = vld [vmem:[#allocation4 + $0x240] sm:$0xff]
    %v1586 = vld [vmem:[#allocation4 + $0x248] sm:$0xff]
    %v1587 = vld [vmem:[#allocation4 + $0x250] sm:$0xff]
    %v1588 = vld [vmem:[#allocation4 + $0x258] sm:$0xff]
    %v1589 = vld [vmem:[#allocation4 + $0x260] sm:$0xff]
    %v1590 = vld [vmem:[#allocation4 + $0x268] sm:$0xff]
    %v1591 = vld [vmem:[#allocation4 + $0x270] sm:$0xff]
    %v1592 = vld [vmem:[#allocation4 + $0x278] sm:$0xff]
    %v1593 = vld [vmem:[#allocation4 + $0x280] sm:$0xff]
    %v1594 = vld [vmem:[#allocation4 + $0x288] sm:$0xff]
    %v1595 = vld [vmem:[#allocation4 + $0x290] sm:$0xff]
    %v1596 = vld [vmem:[#allocation4 + $0x298] sm:$0xff]
    %v1597 = vld [vmem:[#allocation4 + $0x2a0] sm:$0xff]
    %v1598 = vld [vmem:[#allocation4 + $0x2a8] sm:$0xff]
    %v1599 = vld [vmem:[#allocation4 + $0x2b0] sm:$0xff]
    %v1600 = vld [vmem:[#allocation4 + $0x2b8] sm:$0xff]
    %v1601 = vld [vmem:[#allocation4 + $0x2c0] sm:$0xff]
    %v1602 = vld [vmem:[#allocation4 + $0x2c8] sm:$0xff]
    %v1603 = vld [vmem:[#allocation4 + $0x2d0] sm:$0xff]
    %v1604 = vld [vmem:[#allocation4 + $0x2d8] sm:$0xff]
    %v1605 = vld [vmem:[#allocation4 + $0x2e0] sm:$0xff]
    %v1606 = vld [vmem:[#allocation4 + $0x2e8] sm:$0xff]
    %v1607 = vld [vmem:[#allocation4 + $0x2f0] sm:$0xff]
    %v1608 = vld [vmem:[#allocation4 + $0x2f8] sm:$0xff]
    %v1609 = vld [vmem:[#allocation4 + $0x300] sm:$0xff]
    %v1610 = vld [vmem:[#allocation4 + $0x308] sm:$0xff]
    %v1611 = vld [vmem:[#allocation4 + $0x310] sm:$0xff]
    %v1612 = vld [vmem:[#allocation4 + $0x318] sm:$0xff]
    %v1613 = vld [vmem:[#allocation4 + $0x320] sm:$0xff]
    %v1614 = vld [vmem:[#allocation4 + $0x328] sm:$0xff]
    %v1615 = vld [vmem:[#allocation4 + $0x330] sm:$0xff]
    %v1616 = vld [vmem:[#allocation4 + $0x338] sm:$0xff]
    %v1617 = vld [vmem:[#allocation4 + $0x340] sm:$0xff]
    %v1618 = vld [vmem:[#allocation4 + $0x348] sm:$0xff]
    %v1619 = vld [vmem:[#allocation4 + $0x350] sm:$0xff]
    %v1620 = vld [vmem:[#allocation4 + $0x358] sm:$0xff]
    %v1621 = vld [vmem:[#allocation4 + $0x360] sm:$0xff]
    %v1622 = vld [vmem:[#allocation4 + $0x368] sm:$0xff]
    %v1623 = vld [vmem:[#allocation4 + $0x370] sm:$0xff]
    %v1624 = vld [vmem:[#allocation4 + $0x378] sm:$0xff]
    %v1625 = vld [vmem:[#allocation4 + $0x380] sm:$0xff]
    %v1626 = vld [vmem:[#allocation4 + $0x388] sm:$0xff]
    %v1627 = vld [vmem:[#allocation4 + $0x390] sm:$0xff]
    %v1628 = vld [vmem:[#allocation4 + $0x398] sm:$0xff]
    %v1629 = vld [vmem:[#allocation4 + $0x3a0] sm:$0xff]
    %v1630 = vld [vmem:[#allocation4 + $0x3a8] sm:$0xff]
    %v1631 = vld [vmem:[#allocation4 + $0x3b0] sm:$0xff]
    %v1632 = vld [vmem:[#allocation4 + $0x3b8] sm:$0xff]
    %v1633 = vld [vmem:[#allocation4 + $0x3c0] sm:$0xff]
    %v1634 = vld [vmem:[#allocation4 + $0x3c8] sm:$0xff]
    %v1635 = vld [vmem:[#allocation4 + $0x3d0] sm:$0xff]
    %v1636 = vld [vmem:[#allocation4 + $0x3d8] sm:$0xff]
    %v1637 = vld [vmem:[#allocation4 + $0x3e0] sm:$0xff]
    %v1638 = vld [vmem:[#allocation4 + $0x3e8] sm:$0xff]
    %v1639 = vld [vmem:[#allocation4 + $0x3f0] sm:$0xff]
    %v1640 = vld [vmem:[#allocation4 + $0x3f8] sm:$0xff]
    %v1641 = vld [vmem:[#allocation4 + $0x400] sm:$0xff]
    %v1642 = vld [vmem:[#allocation4 + $0x408] sm:$0xff]
    %v1643 = vld [vmem:[#allocation4 + $0x410] sm:$0xff]
    %v1644 = vld [vmem:[#allocation4 + $0x418] sm:$0xff]
    %v1645 = vld [vmem:[#allocation4 + $0x420] sm:$0xff]
    %v1646 = vld [vmem:[#allocation4 + $0x428] sm:$0xff]
    %v1647 = vld [vmem:[#allocation4 + $0x430] sm:$0xff]
    %v1648 = vld [vmem:[#allocation4 + $0x438] sm:$0xff]
    %v1649 = vld [vmem:[#allocation4 + $0x440] sm:$0xff]
    %v1650 = vld [vmem:[#allocation4 + $0x448] sm:$0xff]
    %v1651 = vld [vmem:[#allocation4 + $0x450] sm:$0xff]
    %v1652 = vld [vmem:[#allocation4 + $0x458] sm:$0xff]
    %v1653 = vld [vmem:[#allocation4 + $0x460] sm:$0xff]
    %v1654 = vld [vmem:[#allocation4 + $0x468] sm:$0xff]
    %v1655 = vld [vmem:[#allocation4 + $0x470] sm:$0xff]
    %v1656 = vld [vmem:[#allocation4 + $0x478] sm:$0xff]
    %v1657 = vld [vmem:[#allocation4 + $0x480] sm:$0xff]
    %v1658 = vld [vmem:[#allocation4 + $0x488] sm:$0xff]
    %v1659 = vld [vmem:[#allocation4 + $0x490] sm:$0xff]
    %v1660 = vld [vmem:[#allocation4 + $0x498] sm:$0xff]
    %v1661 = vld [vmem:[#allocation4 + $0x4a0] sm:$0xff]
    %v1662 = vld [vmem:[#allocation4 + $0x4a8] sm:$0xff]
    %v1663 = vld [vmem:[#allocation4 + $0x4b0] sm:$0xff]
    %v1664 = vld [vmem:[#allocation4 + $0x4b8] sm:$0xff]
    %v1665 = vld [vmem:[#allocation4 + $0x4c0] sm:$0xff]
    %v1666 = vld [vmem:[#allocation4 + $0x4c8] sm:$0xff]
    %v1667 = vld [vmem:[#allocation4 + $0x4d0] sm:$0xff]
    %v1668 = vld [vmem:[#allocation4 + $0x4d8] sm:$0xff]
    %v1669 = vld [vmem:[#allocation4 + $0x4e0] sm:$0xff]
    %v1670 = vld [vmem:[#allocation4 + $0x4e8] sm:$0xff]
    %v1671 = vld [vmem:[#allocation4 + $0x4f0] sm:$0xff]
    %v1672 = vld [vmem:[#allocation4 + $0x4f8] sm:$0xff]
    %v1673 = vld [vmem:[#allocation4 + $0x500] sm:$0xff]
    %v1674 = vld [vmem:[#allocation4 + $0x508] sm:$0xff]
    %v1675 = vld [vmem:[#allocation4 + $0x510] sm:$0xff]
    %v1676 = vld [vmem:[#allocation4 + $0x518] sm:$0xff]
    %v1677 = vld [vmem:[#allocation4 + $0x520] sm:$0xff]
    %v1678 = vld [vmem:[#allocation4 + $0x528] sm:$0xff]
    %v1679 = vld [vmem:[#allocation4 + $0x530] sm:$0xff]
    %v1680 = vld [vmem:[#allocation4 + $0x538] sm:$0xff]
    %v1681 = vld [vmem:[#allocation4 + $0x540] sm:$0xff]
    %v1682 = vld [vmem:[#allocation4 + $0x548] sm:$0xff]
    %v1683 = vld [vmem:[#allocation4 + $0x550] sm:$0xff]
    %v1684 = vld [vmem:[#allocation4 + $0x558] sm:$0xff]
    %v1685 = vld [vmem:[#allocation4 + $0x560] sm:$0xff]
    %v1686 = vld [vmem:[#allocation4 + $0x568] sm:$0xff]
    %v1687 = vld [vmem:[#allocation4 + $0x570] sm:$0xff]
    %v1688 = vld [vmem:[#allocation4 + $0x578] sm:$0xff]
    %v1689 = vld [vmem:[#allocation4 + $0x580] sm:$0xff]
    %v1690 = vld [vmem:[#allocation4 + $0x588] sm:$0xff]
    %v1691 = vld [vmem:[#allocation4 + $0x590] sm:$0xff]
    %v1692 = vld [vmem:[#allocation4 + $0x598] sm:$0xff]
    %v1693 = vld [vmem:[#allocation4 + $0x5a0] sm:$0xff]
    %v1694 = vld [vmem:[#allocation4 + $0x5a8] sm:$0xff]
    %v1695 = vld [vmem:[#allocation4 + $0x5b0] sm:$0xff]
    %v1696 = vld [vmem:[#allocation4 + $0x5b8] sm:$0xff]
    %v1697 = vld [vmem:[#allocation4 + $0x5c0] sm:$0xff]
    %v1698 = vld [vmem:[#allocation4 + $0x5c8] sm:$0xff]
    %v1699 = vld [vmem:[#allocation4 + $0x5d0] sm:$0xff]
    %v1700 = vld [vmem:[#allocation4 + $0x5d8] sm:$0xff]
    %v1701 = vld [vmem:[#allocation4 + $0x5e0] sm:$0xff]
    %v1702 = vld [vmem:[#allocation4 + $0x5e8] sm:$0xff]
    %v1703 = vld [vmem:[#allocation4 + $0x5f0] sm:$0xff]
    %v1704 = vld [vmem:[#allocation4 + $0x5f8] sm:$0xff]
    %v1705 = vld [vmem:[#allocation4 + $0x600] sm:$0xff]
    %v1706 = vld [vmem:[#allocation4 + $0x608] sm:$0xff]
    %v1707 = vld [vmem:[#allocation4 + $0x610] sm:$0xff]
    %v1708 = vld [vmem:[#allocation4 + $0x618] sm:$0xff]
    %v1709 = vld [vmem:[#allocation4 + $0x620] sm:$0xff]
    %v1710 = vld [vmem:[#allocation4 + $0x628] sm:$0xff]
    %v1711 = vld [vmem:[#allocation4 + $0x630] sm:$0xff]
    %v1712 = vld [vmem:[#allocation4 + $0x638] sm:$0xff]
    %v1713 = vld [vmem:[#allocation4 + $0x640] sm:$0xff]
    %v1714 = vld [vmem:[#allocation4 + $0x648] sm:$0xff]
    %v1715 = vld [vmem:[#allocation4 + $0x650] sm:$0xff]
    %v1716 = vld [vmem:[#allocation4 + $0x658] sm:$0xff]
    %v1717 = vld [vmem:[#allocation4 + $0x660] sm:$0xff]
    %v1718 = vld [vmem:[#allocation4 + $0x668] sm:$0xff]
    %v1719 = vld [vmem:[#allocation4 + $0x670] sm:$0xff]
    %v1720 = vld [vmem:[#allocation4 + $0x678] sm:$0xff]
    %v1721 = vld [vmem:[#allocation4 + $0x680] sm:$0xff]
    %v1722 = vld [vmem:[#allocation4 + $0x688] sm:$0xff]
    %v1723 = vld [vmem:[#allocation4 + $0x690] sm:$0xff]
    %v1724 = vld [vmem:[#allocation4 + $0x698] sm:$0xff]
    %v1725 = vld [vmem:[#allocation4 + $0x6a0] sm:$0xff]
    %v1726 = vld [vmem:[#allocation4 + $0x6a8] sm:$0xff]
    %v1727 = vld [vmem:[#allocation4 + $0x6b0] sm:$0xff]
    %v1728 = vld [vmem:[#allocation4 + $0x6b8] sm:$0xff]
    %v1729 = vld [vmem:[#allocation4 + $0x6c0] sm:$0xff]
    %v1730 = vld [vmem:[#allocation4 + $0x6c8] sm:$0xff]
    %v1731 = vld [vmem:[#allocation4 + $0x6d0] sm:$0xff]
    %v1732 = vld [vmem:[#allocation4 + $0x6d8] sm:$0xff]
    %v1733 = vld [vmem:[#allocation4 + $0x6e0] sm:$0xff]
    %v1734 = vld [vmem:[#allocation4 + $0x6e8] sm:$0xff]
    %v1735 = vld [vmem:[#allocation4 + $0x6f0] sm:$0xff]
    %v1736 = vld [vmem:[#allocation4 + $0x6f8] sm:$0xff]
    %v1737 = vld [vmem:[#allocation4 + $0x700] sm:$0xff]
    %v1738 = vld [vmem:[#allocation4 + $0x708] sm:$0xff]
    %v1739 = vld [vmem:[#allocation4 + $0x710] sm:$0xff]
    %v1740 = vld [vmem:[#allocation4 + $0x718] sm:$0xff]
    %v1741 = vld [vmem:[#allocation4 + $0x720] sm:$0xff]
    %v1742 = vld [vmem:[#allocation4 + $0x728] sm:$0xff]
    %v1743 = vld [vmem:[#allocation4 + $0x730] sm:$0xff]
    %v1744 = vld [vmem:[#allocation4 + $0x738] sm:$0xff]
    %v1745 = vld [vmem:[#allocation4 + $0x740] sm:$0xff]
    %v1746 = vld [vmem:[#allocation4 + $0x748] sm:$0xff]
    %v1747 = vld [vmem:[#allocation4 + $0x750] sm:$0xff]
    %v1748 = vld [vmem:[#allocation4 + $0x758] sm:$0xff]
    %v1749 = vld [vmem:[#allocation4 + $0x760] sm:$0xff]
    %v1750 = vld [vmem:[#allocation4 + $0x768] sm:$0xff]
    %v1751 = vld [vmem:[#allocation4 + $0x770] sm:$0xff]
    %v1752 = vld [vmem:[#allocation4 + $0x778] sm:$0xff]
    %v1753 = vld [vmem:[#allocation4 + $0x780] sm:$0xff]
    %v1754 = vld [vmem:[#allocation4 + $0x788] sm:$0xff]
    %v1755 = vld [vmem:[#allocation4 + $0x790] sm:$0xff]
    %v1756 = vld [vmem:[#allocation4 + $0x798] sm:$0xff]
    %v1757 = vld [vmem:[#allocation4 + $0x7a0] sm:$0xff]
    %v1758 = vld [vmem:[#allocation4 + $0x7a8] sm:$0xff]
    %v1759 = vld [vmem:[#allocation4 + $0x7b0] sm:$0xff]
    %v1760 = vld [vmem:[#allocation4 + $0x7b8] sm:$0xff]
    %v1761 = vld [vmem:[#allocation4 + $0x7c0] sm:$0xff]
    %v1762 = vld [vmem:[#allocation4 + $0x7c8] sm:$0xff]
    %v1763 = vld [vmem:[#allocation4 + $0x7d0] sm:$0xff]
    %v1764 = vld [vmem:[#allocation4 + $0x7d8] sm:$0xff]
    %v1765 = vld [vmem:[#allocation4 + $0x7e0] sm:$0xff]
    %v1766 = vld [vmem:[#allocation4 + $0x7e8] sm:$0xff]
    %v1767 = vld [vmem:[#allocation4 + $0x7f0] sm:$0xff]
    %v1768 = vld [vmem:[#allocation4 + $0x7f8] sm:$0xff]
    %v1769 = vld [vmem:[#allocation4 + $0x800] sm:$0xff]
    %v1770 = vld [vmem:[#allocation4 + $0x808] sm:$0xff]
    %v1771 = vld [vmem:[#allocation4 + $0x810] sm:$0xff]
    %v1772 = vld [vmem:[#allocation4 + $0x818] sm:$0xff]
    %v1773 = vld [vmem:[#allocation4 + $0x820] sm:$0xff]
    %v1774 = vld [vmem:[#allocation4 + $0x828] sm:$0xff]
    %v1775 = vld [vmem:[#allocation4 + $0x830] sm:$0xff]
    %v1776 = vld [vmem:[#allocation4 + $0x838] sm:$0xff]
    %v1777 = vld [vmem:[#allocation4 + $0x840] sm:$0xff]
    %v1778 = vld [vmem:[#allocation4 + $0x848] sm:$0xff]
    %v1779 = vld [vmem:[#allocation4 + $0x850] sm:$0xff]
    %v1780 = vld [vmem:[#allocation4 + $0x858] sm:$0xff]
    %v1781 = vld [vmem:[#allocation4 + $0x860] sm:$0xff]
    %v1782 = vld [vmem:[#allocation4 + $0x868] sm:$0xff]
    %v1783 = vld [vmem:[#allocation4 + $0x870] sm:$0xff]
    %v1784 = vld [vmem:[#allocation4 + $0x878] sm:$0xff]
    %v1785 = vld [vmem:[#allocation4 + $0x880] sm:$0xff]
    %v1786 = vld [vmem:[#allocation4 + $0x888] sm:$0xff]
    %v1787 = vld [vmem:[#allocation4 + $0x890] sm:$0xff]
    %v1788 = vld [vmem:[#allocation4 + $0x898] sm:$0xff]
    %v1789 = vld [vmem:[#allocation4 + $0x8a0] sm:$0xff]
    %v1790 = vld [vmem:[#allocation4 + $0x8a8] sm:$0xff]
    %v1791 = vld [vmem:[#allocation4 + $0x8b0] sm:$0xff]
    %v1792 = vld [vmem:[#allocation4 + $0x8b8] sm:$0xff]
    %v1793 = vld [vmem:[#allocation4 + $0x8c0] sm:$0xff]
    %v1794 = vld [vmem:[#allocation4 + $0x8c8] sm:$0xff]
    %v1795 = vld [vmem:[#allocation4 + $0x8d0] sm:$0xff]
    %v1796 = vld [vmem:[#allocation4 + $0x8d8] sm:$0xff]
    %v1797 = vld [vmem:[#allocation4 + $0x8e0] sm:$0xff]
    %v1798 = vld [vmem:[#allocation4 + $0x8e8] sm:$0xff]
    %v1799 = vld [vmem:[#allocation4 + $0x8f0] sm:$0xff]
    %v1800 = vld [vmem:[#allocation4 + $0x8f8] sm:$0xff]
    %v1801 = vld [vmem:[#allocation4 + $0x900] sm:$0xff]
    %v1802 = vld [vmem:[#allocation4 + $0x908] sm:$0xff]
    %v1803 = vld [vmem:[#allocation4 + $0x910] sm:$0xff]
    %v1804 = vld [vmem:[#allocation4 + $0x918] sm:$0xff]
    %v1805 = vld [vmem:[#allocation4 + $0x920] sm:$0xff]
    %v1806 = vld [vmem:[#allocation4 + $0x928] sm:$0xff]
    %v1807 = vld [vmem:[#allocation4 + $0x930] sm:$0xff]
    %v1808 = vld [vmem:[#allocation4 + $0x938] sm:$0xff]
    %v1809 = vld [vmem:[#allocation4 + $0x940] sm:$0xff]
    %v1810 = vld [vmem:[#allocation4 + $0x948] sm:$0xff]
    %v1811 = vld [vmem:[#allocation4 + $0x950] sm:$0xff]
    %v1812 = vld [vmem:[#allocation4 + $0x958] sm:$0xff]
    %v1813 = vld [vmem:[#allocation4 + $0x960] sm:$0xff]
    %v1814 = vld [vmem:[#allocation4 + $0x968] sm:$0xff]
    %v1815 = vld [vmem:[#allocation4 + $0x970] sm:$0xff]
    %v1816 = vld [vmem:[#allocation4 + $0x978] sm:$0xff]
    %v1817 = vld [vmem:[#allocation4 + $0x980] sm:$0xff]
    %v1818 = vld [vmem:[#allocation4 + $0x988] sm:$0xff]
    %v1819 = vld [vmem:[#allocation4 + $0x990] sm:$0xff]
    %v1820 = vld [vmem:[#allocation4 + $0x998] sm:$0xff]
    %v1821 = vld [vmem:[#allocation4 + $0x9a0] sm:$0xff]
    %v1822 = vld [vmem:[#allocation4 + $0x9a8] sm:$0xff]
    %v1823 = vld [vmem:[#allocation4 + $0x9b0] sm:$0xff]
    %v1824 = vld [vmem:[#allocation4 + $0x9b8] sm:$0xff]
    %v1825 = vld [vmem:[#allocation4 + $0x9c0] sm:$0xff]
    %v1826 = vld [vmem:[#allocation4 + $0x9c8] sm:$0xff]
    %v1827 = vld [vmem:[#allocation4 + $0x9d0] sm:$0xff]
    %v1828 = vld [vmem:[#allocation4 + $0x9d8] sm:$0xff]
    %v1829 = vld [vmem:[#allocation4 + $0x9e0] sm:$0xff]
    %v1830 = vld [vmem:[#allocation4 + $0x9e8] sm:$0xff]
    %v1831 = vld [vmem:[#allocation4 + $0x9f0] sm:$0xff]
    %v1832 = vld [vmem:[#allocation4 + $0x9f8] sm:$0xff]
    %v1833 = vld [vmem:[#allocation4 + $0xa00] sm:$0xff]
    %v1834 = vld [vmem:[#allocation4 + $0xa08] sm:$0xff]
    %v1835 = vld [vmem:[#allocation4 + $0xa10] sm:$0xff]
    %v1836 = vld [vmem:[#allocation4 + $0xa18] sm:$0xff]
    %v1837 = vld [vmem:[#allocation4 + $0xa20] sm:$0xff]
    %v1838 = vld [vmem:[#allocation4 + $0xa28] sm:$0xff]
    %v1839 = vld [vmem:[#allocation4 + $0xa30] sm:$0xff]
    %v1840 = vld [vmem:[#allocation4 + $0xa38] sm:$0xff]
    %v1841 = vld [vmem:[#allocation4 + $0xa40] sm:$0xff]
    %v1842 = vld [vmem:[#allocation4 + $0xa48] sm:$0xff]
    %v1843 = vld [vmem:[#allocation4 + $0xa50] sm:$0xff]
    %v1844 = vld [vmem:[#allocation4 + $0xa58] sm:$0xff]
    %v1845 = vld [vmem:[#allocation4 + $0xa60] sm:$0xff]
    %v1846 = vld [vmem:[#allocation4 + $0xa68] sm:$0xff]
    %v1847 = vld [vmem:[#allocation4 + $0xa70] sm:$0xff]
    %v1848 = vld [vmem:[#allocation4 + $0xa78] sm:$0xff]
    %v1849 = vld [vmem:[#allocation4 + $0xa80] sm:$0xff]
    %v1850 = vld [vmem:[#allocation4 + $0xa88] sm:$0xff]
    %v1851 = vld [vmem:[#allocation4 + $0xa90] sm:$0xff]
    %v1852 = vld [vmem:[#allocation4 + $0xa98] sm:$0xff]
    %v1853 = vld [vmem:[#allocation4 + $0xaa0] sm:$0xff]
    %v1854 = vld [vmem:[#allocation4 + $0xaa8] sm:$0xff]
    %v1855 = vld [vmem:[#allocation4 + $0xab0] sm:$0xff]
    %v1856 = vld [vmem:[#allocation4 + $0xab8] sm:$0xff]
    %v1857 = vld [vmem:[#allocation4 + $0xac0] sm:$0xff]
    %v1858 = vld [vmem:[#allocation4 + $0xac8] sm:$0xff]
    %v1859 = vld [vmem:[#allocation4 + $0xad0] sm:$0xff]
    %v1860 = vld [vmem:[#allocation4 + $0xad8] sm:$0xff]
    %v1861 = vld [vmem:[#allocation4 + $0xae0] sm:$0xff]
    %v1862 = vld [vmem:[#allocation4 + $0xae8] sm:$0xff]
    %v1863 = vld [vmem:[#allocation4 + $0xaf0] sm:$0xff]
    %v1864 = vld [vmem:[#allocation4 + $0xaf8] sm:$0xff]
    %v1865 = vld [vmem:[#allocation4 + $0xb00] sm:$0xff]
    %v1866 = vld [vmem:[#allocation4 + $0xb08] sm:$0xff]
    %v1867 = vld [vmem:[#allocation4 + $0xb10] sm:$0xff]
    %v1868 = vld [vmem:[#allocation4 + $0xb18] sm:$0xff]
    %v1869 = vld [vmem:[#allocation4 + $0xb20] sm:$0xff]
    %v1870 = vld [vmem:[#allocation4 + $0xb28] sm:$0xff]
    %v1871 = vld [vmem:[#allocation4 + $0xb30] sm:$0xff]
    %v1872 = vld [vmem:[#allocation4 + $0xb38] sm:$0xff]
    %v1873 = vld [vmem:[#allocation4 + $0xb40] sm:$0xff]
    %v1874 = vld [vmem:[#allocation4 + $0xb48] sm:$0xff]
    %v1875 = vld [vmem:[#allocation4 + $0xb50] sm:$0xff]
    %v1876 = vld [vmem:[#allocation4 + $0xb58] sm:$0xff]
    %v1877 = vld [vmem:[#allocation4 + $0xb60] sm:$0xff]
    %v1878 = vld [vmem:[#allocation4 + $0xb68] sm:$0xff]
    %v1879 = vld [vmem:[#allocation4 + $0xb70] sm:$0xff]
    %v1880 = vld [vmem:[#allocation4 + $0xb78] sm:$0xff]
    %v1881 = vld [vmem:[#allocation4 + $0xb80] sm:$0xff]
    %v1882 = vld [vmem:[#allocation4 + $0xb88] sm:$0xff]
    %v1883 = vld [vmem:[#allocation4 + $0xb90] sm:$0xff]
    %v1884 = vld [vmem:[#allocation4 + $0xb98] sm:$0xff]
    %v1885 = vld [vmem:[#allocation4 + $0xba0] sm:$0xff]
    %v1886 = vld [vmem:[#allocation4 + $0xba8] sm:$0xff]
    %v1887 = vld [vmem:[#allocation4 + $0xbb0] sm:$0xff]
    %v1888 = vld [vmem:[#allocation4 + $0xbb8] sm:$0xff]
    %v1889 = vld [vmem:[#allocation4 + $0xbc0] sm:$0xff]
    %v1890 = vld [vmem:[#allocation4 + $0xbc8] sm:$0xff]
    %v1891 = vld [vmem:[#allocation4 + $0xbd0] sm:$0xff]
    %v1892 = vld [vmem:[#allocation4 + $0xbd8] sm:$0xff]
    %v1893 = vld [vmem:[#allocation4 + $0xbe0] sm:$0xff]
    %v1894 = vld [vmem:[#allocation4 + $0xbe8] sm:$0xff]
    %v1895 = vld [vmem:[#allocation4 + $0xbf0] sm:$0xff]
    %v1896 = vld [vmem:[#allocation4 + $0xbf8] sm:$0xff]
    %v1897 = vld [vmem:[%s5] sm:$0x3f]
    %v1899 = vlaneseq
    %v1900 = vshrl.u32 %v1899, 7
    %v1901 = vsub.s32 0, %v1900
    %v1902 = vrot.slane %v1897, %v1901
    %v1903 = vlaneseq
    %v1904 = vshrl.u32 %v1903, 7
    %v1905 = vsub.s32 1, %v1904
    %v1906 = vrot.slane %v1897, %v1905
    %v1907 = vlaneseq
    %v1908 = vshrl.u32 %v1907, 7
    %v1909 = vsub.s32 2, %v1908
    %v1910 = vrot.slane %v1897, %v1909
    %v1911 = vlaneseq
    %v1912 = vshrl.u32 %v1911, 7
    %v1913 = vsub.s32 3, %v1912
    %v1914 = vrot.slane %v1897, %v1913
    %v1915 = vlaneseq
    %v1916 = vshrl.u32 %v1915, 7
    %v1917 = vsub.s32 4, %v1916
    %v1918 = vrot.slane %v1897, %v1917
    %v1919 = vlaneseq
    %v1920 = vshrl.u32 %v1919, 7
    %v1921 = vsub.s32 5, %v1920
    %v1922 = vrot.slane %v1897, %v1921
    %v2313 = vunpack.c.l.b16 %v1513
    %v2314 = vunpack.c.h.b16 %v1513
    %v2315 = vunpack.c.l.b16 %v1514
    %v2316 = vunpack.c.h.b16 %v1514
    %v2317 = vunpack.c.l.b16 %v1515
    %v2318 = vunpack.c.h.b16 %v1515
    %v2319 = vunpack.c.l.b16 %v1516
    %v2320 = vunpack.c.h.b16 %v1516
    %v2321 = vunpack.c.l.b16 %v1517
    %v2322 = vunpack.c.h.b16 %v1517
    %v2323 = vunpack.c.l.b16 %v1518
    %v2324 = vunpack.c.h.b16 %v1518
    %v2325 = vunpack.c.l.b16 %v1519
    %v2326 = vunpack.c.h.b16 %v1519
    %v2327 = vunpack.c.l.b16 %v1520
    %v2328 = vunpack.c.h.b16 %v1520
    %v2329 = vunpack.c.l.b16 %v1521
    %v2330 = vunpack.c.h.b16 %v1521
    %v2331 = vunpack.c.l.b16 %v1522
    %v2332 = vunpack.c.h.b16 %v1522
    %v2333 = vunpack.c.l.b16 %v1523
    %v2334 = vunpack.c.h.b16 %v1523
    %v2335 = vunpack.c.l.b16 %v1524
    %v2336 = vunpack.c.h.b16 %v1524
    %v2337 = vunpack.c.l.b16 %v1525
    %v2338 = vunpack.c.h.b16 %v1525
    %v2339 = vunpack.c.l.b16 %v1526
    %v2340 = vunpack.c.h.b16 %v1526
    %v2341 = vunpack.c.l.b16 %v1527
    %v2342 = vunpack.c.h.b16 %v1527
    %v2343 = vunpack.c.l.b16 %v1528
    %v2344 = vunpack.c.h.b16 %v1528
    %v2345 = vunpack.c.l.b16 %v1529
    %v2346 = vunpack.c.h.b16 %v1529
    %v2347 = vunpack.c.l.b16 %v1530
    %v2348 = vunpack.c.h.b16 %v1530
    %v2349 = vunpack.c.l.b16 %v1531
    %v2350 = vunpack.c.h.b16 %v1531
    %v2351 = vunpack.c.l.b16 %v1532
    %v2352 = vunpack.c.h.b16 %v1532
    %v2353 = vunpack.c.l.b16 %v1533
    %v2354 = vunpack.c.h.b16 %v1533
    %v2355 = vunpack.c.l.b16 %v1534
    %v2356 = vunpack.c.h.b16 %v1534
    %v2357 = vunpack.c.l.b16 %v1535
    %v2358 = vunpack.c.h.b16 %v1535
    %v2359 = vunpack.c.l.b16 %v1536
    %v2360 = vunpack.c.h.b16 %v1536
    %v2361 = vunpack.c.l.b16 %v1537
    %v2362 = vunpack.c.h.b16 %v1537
    %v2363 = vunpack.c.l.b16 %v1538
    %v2364 = vunpack.c.h.b16 %v1538
    %v2365 = vunpack.c.l.b16 %v1539
    %v2366 = vunpack.c.h.b16 %v1539
    %v2367 = vunpack.c.l.b16 %v1540
    %v2368 = vunpack.c.h.b16 %v1540
    %v2369 = vunpack.c.l.b16 %v1541
    %v2370 = vunpack.c.h.b16 %v1541
    %v2371 = vunpack.c.l.b16 %v1542
    %v2372 = vunpack.c.h.b16 %v1542
    %v2373 = vunpack.c.l.b16 %v1543
    %v2374 = vunpack.c.h.b16 %v1543
    %v2375 = vunpack.c.l.b16 %v1544
    %v2376 = vunpack.c.h.b16 %v1544
    %v2377 = vunpack.c.l.b16 %v1545
    %v2378 = vunpack.c.h.b16 %v1545
    %v2379 = vunpack.c.l.b16 %v1546
    %v2380 = vunpack.c.h.b16 %v1546
    %v2381 = vunpack.c.l.b16 %v1547
    %v2382 = vunpack.c.h.b16 %v1547
    %v2383 = vunpack.c.l.b16 %v1548
    %v2384 = vunpack.c.h.b16 %v1548
    %v2385 = vunpack.c.l.b16 %v1549
    %v2386 = vunpack.c.h.b16 %v1549
    %v2387 = vunpack.c.l.b16 %v1550
    %v2388 = vunpack.c.h.b16 %v1550
    %v2389 = vunpack.c.l.b16 %v1551
    %v2390 = vunpack.c.h.b16 %v1551
    %v2391 = vunpack.c.l.b16 %v1552
    %v2392 = vunpack.c.h.b16 %v1552
    %v2393 = vunpack.c.l.b16 %v1553
    %v2394 = vunpack.c.h.b16 %v1553
    %v2395 = vunpack.c.l.b16 %v1554
    %v2396 = vunpack.c.h.b16 %v1554
    %v2397 = vunpack.c.l.b16 %v1555
    %v2398 = vunpack.c.h.b16 %v1555
    %v2399 = vunpack.c.l.b16 %v1556
    %v2400 = vunpack.c.h.b16 %v1556
    %v2401 = vunpack.c.l.b16 %v1557
    %v2402 = vunpack.c.h.b16 %v1557
    %v2403 = vunpack.c.l.b16 %v1558
    %v2404 = vunpack.c.h.b16 %v1558
    %v2405 = vunpack.c.l.b16 %v1559
    %v2406 = vunpack.c.h.b16 %v1559
    %v2407 = vunpack.c.l.b16 %v1560
    %v2408 = vunpack.c.h.b16 %v1560
    %v2409 = vunpack.c.l.b16 %v1561
    %v2410 = vunpack.c.h.b16 %v1561
    %v2411 = vunpack.c.l.b16 %v1562
    %v2412 = vunpack.c.h.b16 %v1562
    %v2413 = vunpack.c.l.b16 %v1563
    %v2414 = vunpack.c.h.b16 %v1563
    %v2415 = vunpack.c.l.b16 %v1564
    %v2416 = vunpack.c.h.b16 %v1564
    %v2417 = vunpack.c.l.b16 %v1565
    %v2418 = vunpack.c.h.b16 %v1565
    %v2419 = vunpack.c.l.b16 %v1566
    %v2420 = vunpack.c.h.b16 %v1566
    %v2421 = vunpack.c.l.b16 %v1567
    %v2422 = vunpack.c.h.b16 %v1567
    %v2423 = vunpack.c.l.b16 %v1568
    %v2424 = vunpack.c.h.b16 %v1568
    %v2425 = vunpack.c.l.b16 %v1569
    %v2426 = vunpack.c.h.b16 %v1569
    %v2427 = vunpack.c.l.b16 %v1570
    %v2428 = vunpack.c.h.b16 %v1570
    %v2429 = vunpack.c.l.b16 %v1571
    %v2430 = vunpack.c.h.b16 %v1571
    %v2431 = vunpack.c.l.b16 %v1572
    %v2432 = vunpack.c.h.b16 %v1572
    %v2433 = vunpack.c.l.b16 %v1573
    %v2434 = vunpack.c.h.b16 %v1573
    %v2435 = vunpack.c.l.b16 %v1574
    %v2436 = vunpack.c.h.b16 %v1574
    %v2437 = vunpack.c.l.b16 %v1575
    %v2438 = vunpack.c.h.b16 %v1575
    %v2439 = vunpack.c.l.b16 %v1576
    %v2440 = vunpack.c.h.b16 %v1576
    %v2441 = vunpack.c.l.b16 %v1577
    %v2442 = vunpack.c.h.b16 %v1577
    %v2443 = vunpack.c.l.b16 %v1578
    %v2444 = vunpack.c.h.b16 %v1578
    %v2445 = vunpack.c.l.b16 %v1579
    %v2446 = vunpack.c.h.b16 %v1579
    %v2447 = vunpack.c.l.b16 %v1580
    %v2448 = vunpack.c.h.b16 %v1580
    %v2449 = vunpack.c.l.b16 %v1581
    %v2450 = vunpack.c.h.b16 %v1581
    %v2451 = vunpack.c.l.b16 %v1582
    %v2452 = vunpack.c.h.b16 %v1582
    %v2453 = vunpack.c.l.b16 %v1583
    %v2454 = vunpack.c.h.b16 %v1583
    %v2455 = vunpack.c.l.b16 %v1584
    %v2456 = vunpack.c.h.b16 %v1584
    %v2457 = vunpack.c.l.b16 %v1585
    %v2458 = vunpack.c.h.b16 %v1585
    %v2459 = vunpack.c.l.b16 %v1586
    %v2460 = vunpack.c.h.b16 %v1586
    %v2461 = vunpack.c.l.b16 %v1587
    %v2462 = vunpack.c.h.b16 %v1587
    %v2463 = vunpack.c.l.b16 %v1588
    %v2464 = vunpack.c.h.b16 %v1588
    %v2465 = vunpack.c.l.b16 %v1589
    %v2466 = vunpack.c.h.b16 %v1589
    %v2467 = vunpack.c.l.b16 %v1590
    %v2468 = vunpack.c.h.b16 %v1590
    %v2469 = vunpack.c.l.b16 %v1591
    %v2470 = vunpack.c.h.b16 %v1591
    %v2471 = vunpack.c.l.b16 %v1592
    %v2472 = vunpack.c.h.b16 %v1592
    %v2473 = vunpack.c.l.b16 %v1593
    %v2474 = vunpack.c.h.b16 %v1593
    %v2475 = vunpack.c.l.b16 %v1594
    %v2476 = vunpack.c.h.b16 %v1594
    %v2477 = vunpack.c.l.b16 %v1595
    %v2478 = vunpack.c.h.b16 %v1595
    %v2479 = vunpack.c.l.b16 %v1596
    %v2480 = vunpack.c.h.b16 %v1596
    %v2481 = vunpack.c.l.b16 %v1597
    %v2482 = vunpack.c.h.b16 %v1597
    %v2483 = vunpack.c.l.b16 %v1598
    %v2484 = vunpack.c.h.b16 %v1598
    %v2485 = vunpack.c.l.b16 %v1599
    %v2486 = vunpack.c.h.b16 %v1599
    %v2487 = vunpack.c.l.b16 %v1600
    %v2488 = vunpack.c.h.b16 %v1600
    %v2489 = vunpack.c.l.b16 %v1601
    %v2490 = vunpack.c.h.b16 %v1601
    %v2491 = vunpack.c.l.b16 %v1602
    %v2492 = vunpack.c.h.b16 %v1602
    %v2493 = vunpack.c.l.b16 %v1603
    %v2494 = vunpack.c.h.b16 %v1603
    %v2495 = vunpack.c.l.b16 %v1604
    %v2496 = vunpack.c.h.b16 %v1604
    %v2497 = vunpack.c.l.b16 %v1605
    %v2498 = vunpack.c.h.b16 %v1605
    %v2499 = vunpack.c.l.b16 %v1606
    %v2500 = vunpack.c.h.b16 %v1606
    %v2501 = vunpack.c.l.b16 %v1607
    %v2502 = vunpack.c.h.b16 %v1607
    %v2503 = vunpack.c.l.b16 %v1608
    %v2504 = vunpack.c.h.b16 %v1608
    %v2505 = vunpack.c.l.b16 %v1609
    %v2506 = vunpack.c.h.b16 %v1609
    %v2507 = vunpack.c.l.b16 %v1610
    %v2508 = vunpack.c.h.b16 %v1610
    %v2509 = vunpack.c.l.b16 %v1611
    %v2510 = vunpack.c.h.b16 %v1611
    %v2511 = vunpack.c.l.b16 %v1612
    %v2512 = vunpack.c.h.b16 %v1612
    %v2513 = vunpack.c.l.b16 %v1613
    %v2514 = vunpack.c.h.b16 %v1613
    %v2515 = vunpack.c.l.b16 %v1614
    %v2516 = vunpack.c.h.b16 %v1614
    %v2517 = vunpack.c.l.b16 %v1615
    %v2518 = vunpack.c.h.b16 %v1615
    %v2519 = vunpack.c.l.b16 %v1616
    %v2520 = vunpack.c.h.b16 %v1616
    %v2521 = vunpack.c.l.b16 %v1617
    %v2522 = vunpack.c.h.b16 %v1617
    %v2523 = vunpack.c.l.b16 %v1618
    %v2524 = vunpack.c.h.b16 %v1618
    %v2525 = vunpack.c.l.b16 %v1619
    %v2526 = vunpack.c.h.b16 %v1619
    %v2527 = vunpack.c.l.b16 %v1620
    %v2528 = vunpack.c.h.b16 %v1620
    %v2529 = vunpack.c.l.b16 %v1621
    %v2530 = vunpack.c.h.b16 %v1621
    %v2531 = vunpack.c.l.b16 %v1622
    %v2532 = vunpack.c.h.b16 %v1622
    %v2533 = vunpack.c.l.b16 %v1623
    %v2534 = vunpack.c.h.b16 %v1623
    %v2535 = vunpack.c.l.b16 %v1624
    %v2536 = vunpack.c.h.b16 %v1624
    %v2537 = vunpack.c.l.b16 %v1625
    %v2538 = vunpack.c.h.b16 %v1625
    %v2539 = vunpack.c.l.b16 %v1626
    %v2540 = vunpack.c.h.b16 %v1626
    %v2541 = vunpack.c.l.b16 %v1627
    %v2542 = vunpack.c.h.b16 %v1627
    %v2543 = vunpack.c.l.b16 %v1628
    %v2544 = vunpack.c.h.b16 %v1628
    %v2545 = vunpack.c.l.b16 %v1629
    %v2546 = vunpack.c.h.b16 %v1629
    %v2547 = vunpack.c.l.b16 %v1630
    %v2548 = vunpack.c.h.b16 %v1630
    %v2549 = vunpack.c.l.b16 %v1631
    %v2550 = vunpack.c.h.b16 %v1631
    %v2551 = vunpack.c.l.b16 %v1632
    %v2552 = vunpack.c.h.b16 %v1632
    %v2553 = vunpack.c.l.b16 %v1633
    %v2554 = vunpack.c.h.b16 %v1633
    %v2555 = vunpack.c.l.b16 %v1634
    %v2556 = vunpack.c.h.b16 %v1634
    %v2557 = vunpack.c.l.b16 %v1635
    %v2558 = vunpack.c.h.b16 %v1635
    %v2559 = vunpack.c.l.b16 %v1636
    %v2560 = vunpack.c.h.b16 %v1636
    %v2561 = vunpack.c.l.b16 %v1637
    %v2562 = vunpack.c.h.b16 %v1637
    %v2563 = vunpack.c.l.b16 %v1638
    %v2564 = vunpack.c.h.b16 %v1638
    %v2565 = vunpack.c.l.b16 %v1639
    %v2566 = vunpack.c.h.b16 %v1639
    %v2567 = vunpack.c.l.b16 %v1640
    %v2568 = vunpack.c.h.b16 %v1640
    %v2569 = vunpack.c.l.b16 %v1641
    %v2570 = vunpack.c.h.b16 %v1641
    %v2571 = vunpack.c.l.b16 %v1642
    %v2572 = vunpack.c.h.b16 %v1642
    %v2573 = vunpack.c.l.b16 %v1643
    %v2574 = vunpack.c.h.b16 %v1643
    %v2575 = vunpack.c.l.b16 %v1644
    %v2576 = vunpack.c.h.b16 %v1644
    %v2577 = vunpack.c.l.b16 %v1645
    %v2578 = vunpack.c.h.b16 %v1645
    %v2579 = vunpack.c.l.b16 %v1646
    %v2580 = vunpack.c.h.b16 %v1646
    %v2581 = vunpack.c.l.b16 %v1647
    %v2582 = vunpack.c.h.b16 %v1647
    %v2583 = vunpack.c.l.b16 %v1648
    %v2584 = vunpack.c.h.b16 %v1648
    %v2585 = vunpack.c.l.b16 %v1649
    %v2586 = vunpack.c.h.b16 %v1649
    %v2587 = vunpack.c.l.b16 %v1650
    %v2588 = vunpack.c.h.b16 %v1650
    %v2589 = vunpack.c.l.b16 %v1651
    %v2590 = vunpack.c.h.b16 %v1651
    %v2591 = vunpack.c.l.b16 %v1652
    %v2592 = vunpack.c.h.b16 %v1652
    %v2593 = vunpack.c.l.b16 %v1653
    %v2594 = vunpack.c.h.b16 %v1653
    %v2595 = vunpack.c.l.b16 %v1654
    %v2596 = vunpack.c.h.b16 %v1654
    %v2597 = vunpack.c.l.b16 %v1655
    %v2598 = vunpack.c.h.b16 %v1655
    %v2599 = vunpack.c.l.b16 %v1656
    %v2600 = vunpack.c.h.b16 %v1656
    %v2601 = vunpack.c.l.b16 %v1657
    %v2602 = vunpack.c.h.b16 %v1657
    %v2603 = vunpack.c.l.b16 %v1658
    %v2604 = vunpack.c.h.b16 %v1658
    %v2605 = vunpack.c.l.b16 %v1659
    %v2606 = vunpack.c.h.b16 %v1659
    %v2607 = vunpack.c.l.b16 %v1660
    %v2608 = vunpack.c.h.b16 %v1660
    %v2609 = vunpack.c.l.b16 %v1661
    %v2610 = vunpack.c.h.b16 %v1661
    %v2611 = vunpack.c.l.b16 %v1662
    %v2612 = vunpack.c.h.b16 %v1662
    %v2613 = vunpack.c.l.b16 %v1663
    %v2614 = vunpack.c.h.b16 %v1663
    %v2615 = vunpack.c.l.b16 %v1664
    %v2616 = vunpack.c.h.b16 %v1664
    %v2617 = vunpack.c.l.b16 %v1665
    %v2618 = vunpack.c.h.b16 %v1665
    %v2619 = vunpack.c.l.b16 %v1666
    %v2620 = vunpack.c.h.b16 %v1666
    %v2621 = vunpack.c.l.b16 %v1667
    %v2622 = vunpack.c.h.b16 %v1667
    %v2623 = vunpack.c.l.b16 %v1668
    %v2624 = vunpack.c.h.b16 %v1668
    %v2625 = vunpack.c.l.b16 %v1669
    %v2626 = vunpack.c.h.b16 %v1669
    %v2627 = vunpack.c.l.b16 %v1670
    %v2628 = vunpack.c.h.b16 %v1670
    %v2629 = vunpack.c.l.b16 %v1671
    %v2630 = vunpack.c.h.b16 %v1671
    %v2631 = vunpack.c.l.b16 %v1672
    %v2632 = vunpack.c.h.b16 %v1672
    %v2633 = vunpack.c.l.b16 %v1673
    %v2634 = vunpack.c.h.b16 %v1673
    %v2635 = vunpack.c.l.b16 %v1674
    %v2636 = vunpack.c.h.b16 %v1674
    %v2637 = vunpack.c.l.b16 %v1675
    %v2638 = vunpack.c.h.b16 %v1675
    %v2639 = vunpack.c.l.b16 %v1676
    %v2640 = vunpack.c.h.b16 %v1676
    %v2641 = vunpack.c.l.b16 %v1677
    %v2642 = vunpack.c.h.b16 %v1677
    %v2643 = vunpack.c.l.b16 %v1678
    %v2644 = vunpack.c.h.b16 %v1678
    %v2645 = vunpack.c.l.b16 %v1679
    %v2646 = vunpack.c.h.b16 %v1679
    %v2647 = vunpack.c.l.b16 %v1680
    %v2648 = vunpack.c.h.b16 %v1680
    %v2649 = vunpack.c.l.b16 %v1681
    %v2650 = vunpack.c.h.b16 %v1681
    %v2651 = vunpack.c.l.b16 %v1682
    %v2652 = vunpack.c.h.b16 %v1682
    %v2653 = vunpack.c.l.b16 %v1683
    %v2654 = vunpack.c.h.b16 %v1683
    %v2655 = vunpack.c.l.b16 %v1684
    %v2656 = vunpack.c.h.b16 %v1684
    %v2657 = vunpack.c.l.b16 %v1685
    %v2658 = vunpack.c.h.b16 %v1685
    %v2659 = vunpack.c.l.b16 %v1686
    %v2660 = vunpack.c.h.b16 %v1686
    %v2661 = vunpack.c.l.b16 %v1687
    %v2662 = vunpack.c.h.b16 %v1687
    %v2663 = vunpack.c.l.b16 %v1688
    %v2664 = vunpack.c.h.b16 %v1688
    %v2665 = vunpack.c.l.b16 %v1689
    %v2666 = vunpack.c.h.b16 %v1689
    %v2667 = vunpack.c.l.b16 %v1690
    %v2668 = vunpack.c.h.b16 %v1690
    %v2669 = vunpack.c.l.b16 %v1691
    %v2670 = vunpack.c.h.b16 %v1691
    %v2671 = vunpack.c.l.b16 %v1692
    %v2672 = vunpack.c.h.b16 %v1692
    %v2673 = vunpack.c.l.b16 %v1693
    %v2674 = vunpack.c.h.b16 %v1693
    %v2675 = vunpack.c.l.b16 %v1694
    %v2676 = vunpack.c.h.b16 %v1694
    %v2677 = vunpack.c.l.b16 %v1695
    %v2678 = vunpack.c.h.b16 %v1695
    %v2679 = vunpack.c.l.b16 %v1696
    %v2680 = vunpack.c.h.b16 %v1696
    %v2681 = vunpack.c.l.b16 %v1697
    %v2682 = vunpack.c.h.b16 %v1697
    %v2683 = vunpack.c.l.b16 %v1698
    %v2684 = vunpack.c.h.b16 %v1698
    %v2685 = vunpack.c.l.b16 %v1699
    %v2686 = vunpack.c.h.b16 %v1699
    %v2687 = vunpack.c.l.b16 %v1700
    %v2688 = vunpack.c.h.b16 %v1700
    %v2689 = vunpack.c.l.b16 %v1701
    %v2690 = vunpack.c.h.b16 %v1701
    %v2691 = vunpack.c.l.b16 %v1702
    %v2692 = vunpack.c.h.b16 %v1702
    %v2693 = vunpack.c.l.b16 %v1703
    %v2694 = vunpack.c.h.b16 %v1703
    %v2695 = vunpack.c.l.b16 %v1704
    %v2696 = vunpack.c.h.b16 %v1704
    %v2697 = vunpack.c.l.b16 %v1705
    %v2698 = vunpack.c.h.b16 %v1705
    %v2699 = vunpack.c.l.b16 %v1706
    %v2700 = vunpack.c.h.b16 %v1706
    %v2701 = vunpack.c.l.b16 %v1707
    %v2702 = vunpack.c.h.b16 %v1707
    %v2703 = vunpack.c.l.b16 %v1708
    %v2704 = vunpack.c.h.b16 %v1708
    %v2705 = vunpack.c.l.b16 %v1709
    %v2706 = vunpack.c.h.b16 %v1709
    %v2707 = vunpack.c.l.b16 %v1710
    %v2708 = vunpack.c.h.b16 %v1710
    %v2709 = vunpack.c.l.b16 %v1711
    %v2710 = vunpack.c.h.b16 %v1711
    %v2711 = vunpack.c.l.b16 %v1712
    %v2712 = vunpack.c.h.b16 %v1712
    %v2713 = vunpack.c.l.b16 %v1713
    %v2714 = vunpack.c.h.b16 %v1713
    %v2715 = vunpack.c.l.b16 %v1714
    %v2716 = vunpack.c.h.b16 %v1714
    %v2717 = vunpack.c.l.b16 %v1715
    %v2718 = vunpack.c.h.b16 %v1715
    %v2719 = vunpack.c.l.b16 %v1716
    %v2720 = vunpack.c.h.b16 %v1716
    %v2721 = vunpack.c.l.b16 %v1717
    %v2722 = vunpack.c.h.b16 %v1717
    %v2723 = vunpack.c.l.b16 %v1718
    %v2724 = vunpack.c.h.b16 %v1718
    %v2725 = vunpack.c.l.b16 %v1719
    %v2726 = vunpack.c.h.b16 %v1719
    %v2727 = vunpack.c.l.b16 %v1720
    %v2728 = vunpack.c.h.b16 %v1720
    %v2729 = vunpack.c.l.b16 %v1721
    %v2730 = vunpack.c.h.b16 %v1721
    %v2731 = vunpack.c.l.b16 %v1722
    %v2732 = vunpack.c.h.b16 %v1722
    %v2733 = vunpack.c.l.b16 %v1723
    %v2734 = vunpack.c.h.b16 %v1723
    %v2735 = vunpack.c.l.b16 %v1724
    %v2736 = vunpack.c.h.b16 %v1724
    %v2737 = vunpack.c.l.b16 %v1725
    %v2738 = vunpack.c.h.b16 %v1725
    %v2739 = vunpack.c.l.b16 %v1726
    %v2740 = vunpack.c.h.b16 %v1726
    %v2741 = vunpack.c.l.b16 %v1727
    %v2742 = vunpack.c.h.b16 %v1727
    %v2743 = vunpack.c.l.b16 %v1728
    %v2744 = vunpack.c.h.b16 %v1728
    %v2745 = vunpack.c.l.b16 %v1729
    %v2746 = vunpack.c.h.b16 %v1729
    %v2747 = vunpack.c.l.b16 %v1730
    %v2748 = vunpack.c.h.b16 %v1730
    %v2749 = vunpack.c.l.b16 %v1731
    %v2750 = vunpack.c.h.b16 %v1731
    %v2751 = vunpack.c.l.b16 %v1732
    %v2752 = vunpack.c.h.b16 %v1732
    %v2753 = vunpack.c.l.b16 %v1733
    %v2754 = vunpack.c.h.b16 %v1733
    %v2755 = vunpack.c.l.b16 %v1734
    %v2756 = vunpack.c.h.b16 %v1734
    %v2757 = vunpack.c.l.b16 %v1735
    %v2758 = vunpack.c.h.b16 %v1735
    %v2759 = vunpack.c.l.b16 %v1736
    %v2760 = vunpack.c.h.b16 %v1736
    %v2761 = vunpack.c.l.b16 %v1737
    %v2762 = vunpack.c.h.b16 %v1737
    %v2763 = vunpack.c.l.b16 %v1738
    %v2764 = vunpack.c.h.b16 %v1738
    %v2765 = vunpack.c.l.b16 %v1739
    %v2766 = vunpack.c.h.b16 %v1739
    %v2767 = vunpack.c.l.b16 %v1740
    %v2768 = vunpack.c.h.b16 %v1740
    %v2769 = vunpack.c.l.b16 %v1741
    %v2770 = vunpack.c.h.b16 %v1741
    %v2771 = vunpack.c.l.b16 %v1742
    %v2772 = vunpack.c.h.b16 %v1742
    %v2773 = vunpack.c.l.b16 %v1743
    %v2774 = vunpack.c.h.b16 %v1743
    %v2775 = vunpack.c.l.b16 %v1744
    %v2776 = vunpack.c.h.b16 %v1744
    %v2777 = vunpack.c.l.b16 %v1745
    %v2778 = vunpack.c.h.b16 %v1745
    %v2779 = vunpack.c.l.b16 %v1746
    %v2780 = vunpack.c.h.b16 %v1746
    %v2781 = vunpack.c.l.b16 %v1747
    %v2782 = vunpack.c.h.b16 %v1747
    %v2783 = vunpack.c.l.b16 %v1748
    %v2784 = vunpack.c.h.b16 %v1748
    %v2785 = vunpack.c.l.b16 %v1749
    %v2786 = vunpack.c.h.b16 %v1749
    %v2787 = vunpack.c.l.b16 %v1750
    %v2788 = vunpack.c.h.b16 %v1750
    %v2789 = vunpack.c.l.b16 %v1751
    %v2790 = vunpack.c.h.b16 %v1751
    %v2791 = vunpack.c.l.b16 %v1752
    %v2792 = vunpack.c.h.b16 %v1752
    %v2793 = vunpack.c.l.b16 %v1753
    %v2794 = vunpack.c.h.b16 %v1753
    %v2795 = vunpack.c.l.b16 %v1754
    %v2796 = vunpack.c.h.b16 %v1754
    %v2797 = vunpack.c.l.b16 %v1755
    %v2798 = vunpack.c.h.b16 %v1755
    %v2799 = vunpack.c.l.b16 %v1756
    %v2800 = vunpack.c.h.b16 %v1756
    %v2801 = vunpack.c.l.b16 %v1757
    %v2802 = vunpack.c.h.b16 %v1757
    %v2803 = vunpack.c.l.b16 %v1758
    %v2804 = vunpack.c.h.b16 %v1758
    %v2805 = vunpack.c.l.b16 %v1759
    %v2806 = vunpack.c.h.b16 %v1759
    %v2807 = vunpack.c.l.b16 %v1760
    %v2808 = vunpack.c.h.b16 %v1760
    %v2809 = vunpack.c.l.b16 %v1761
    %v2810 = vunpack.c.h.b16 %v1761
    %v2811 = vunpack.c.l.b16 %v1762
    %v2812 = vunpack.c.h.b16 %v1762
    %v2813 = vunpack.c.l.b16 %v1763
    %v2814 = vunpack.c.h.b16 %v1763
    %v2815 = vunpack.c.l.b16 %v1764
    %v2816 = vunpack.c.h.b16 %v1764
    %v2817 = vunpack.c.l.b16 %v1765
    %v2818 = vunpack.c.h.b16 %v1765
    %v2819 = vunpack.c.l.b16 %v1766
    %v2820 = vunpack.c.h.b16 %v1766
    %v2821 = vunpack.c.l.b16 %v1767
    %v2822 = vunpack.c.h.b16 %v1767
    %v2823 = vunpack.c.l.b16 %v1768
    %v2824 = vunpack.c.h.b16 %v1768
    %v2825 = vunpack.c.l.b16 %v1769
    %v2826 = vunpack.c.h.b16 %v1769
    %v2827 = vunpack.c.l.b16 %v1770
    %v2828 = vunpack.c.h.b16 %v1770
    %v2829 = vunpack.c.l.b16 %v1771
    %v2830 = vunpack.c.h.b16 %v1771
    %v2831 = vunpack.c.l.b16 %v1772
    %v2832 = vunpack.c.h.b16 %v1772
    %v2833 = vunpack.c.l.b16 %v1773
    %v2834 = vunpack.c.h.b16 %v1773
    %v2835 = vunpack.c.l.b16 %v1774
    %v2836 = vunpack.c.h.b16 %v1774
    %v2837 = vunpack.c.l.b16 %v1775
    %v2838 = vunpack.c.h.b16 %v1775
    %v2839 = vunpack.c.l.b16 %v1776
    %v2840 = vunpack.c.h.b16 %v1776
    %v2841 = vunpack.c.l.b16 %v1777
    %v2842 = vunpack.c.h.b16 %v1777
    %v2843 = vunpack.c.l.b16 %v1778
    %v2844 = vunpack.c.h.b16 %v1778
    %v2845 = vunpack.c.l.b16 %v1779
    %v2846 = vunpack.c.h.b16 %v1779
    %v2847 = vunpack.c.l.b16 %v1780
    %v2848 = vunpack.c.h.b16 %v1780
    %v2849 = vunpack.c.l.b16 %v1781
    %v2850 = vunpack.c.h.b16 %v1781
    %v2851 = vunpack.c.l.b16 %v1782
    %v2852 = vunpack.c.h.b16 %v1782
    %v2853 = vunpack.c.l.b16 %v1783
    %v2854 = vunpack.c.h.b16 %v1783
    %v2855 = vunpack.c.l.b16 %v1784
    %v2856 = vunpack.c.h.b16 %v1784
    %v2857 = vunpack.c.l.b16 %v1785
    %v2858 = vunpack.c.h.b16 %v1785
    %v2859 = vunpack.c.l.b16 %v1786
    %v2860 = vunpack.c.h.b16 %v1786
    %v2861 = vunpack.c.l.b16 %v1787
    %v2862 = vunpack.c.h.b16 %v1787
    %v2863 = vunpack.c.l.b16 %v1788
    %v2864 = vunpack.c.h.b16 %v1788
    %v2865 = vunpack.c.l.b16 %v1789
    %v2866 = vunpack.c.h.b16 %v1789
    %v2867 = vunpack.c.l.b16 %v1790
    %v2868 = vunpack.c.h.b16 %v1790
    %v2869 = vunpack.c.l.b16 %v1791
    %v2870 = vunpack.c.h.b16 %v1791
    %v2871 = vunpack.c.l.b16 %v1792
    %v2872 = vunpack.c.h.b16 %v1792
    %v2873 = vunpack.c.l.b16 %v1793
    %v2874 = vunpack.c.h.b16 %v1793
    %v2875 = vunpack.c.l.b16 %v1794
    %v2876 = vunpack.c.h.b16 %v1794
    %v2877 = vunpack.c.l.b16 %v1795
    %v2878 = vunpack.c.h.b16 %v1795
    %v2879 = vunpack.c.l.b16 %v1796
    %v2880 = vunpack.c.h.b16 %v1796
    %v2881 = vunpack.c.l.b16 %v1797
    %v2882 = vunpack.c.h.b16 %v1797
    %v2883 = vunpack.c.l.b16 %v1798
    %v2884 = vunpack.c.h.b16 %v1798
    %v2885 = vunpack.c.l.b16 %v1799
    %v2886 = vunpack.c.h.b16 %v1799
    %v2887 = vunpack.c.l.b16 %v1800
    %v2888 = vunpack.c.h.b16 %v1800
    %v2889 = vunpack.c.l.b16 %v1801
    %v2890 = vunpack.c.h.b16 %v1801
    %v2891 = vunpack.c.l.b16 %v1802
    %v2892 = vunpack.c.h.b16 %v1802
    %v2893 = vunpack.c.l.b16 %v1803
    %v2894 = vunpack.c.h.b16 %v1803
    %v2895 = vunpack.c.l.b16 %v1804
    %v2896 = vunpack.c.h.b16 %v1804
    %v2897 = vunpack.c.l.b16 %v1805
    %v2898 = vunpack.c.h.b16 %v1805
    %v2899 = vunpack.c.l.b16 %v1806
    %v2900 = vunpack.c.h.b16 %v1806
    %v2901 = vunpack.c.l.b16 %v1807
    %v2902 = vunpack.c.h.b16 %v1807
    %v2903 = vunpack.c.l.b16 %v1808
    %v2904 = vunpack.c.h.b16 %v1808
    %v2905 = vunpack.c.l.b16 %v1809
    %v2906 = vunpack.c.h.b16 %v1809
    %v2907 = vunpack.c.l.b16 %v1810
    %v2908 = vunpack.c.h.b16 %v1810
    %v2909 = vunpack.c.l.b16 %v1811
    %v2910 = vunpack.c.h.b16 %v1811
    %v2911 = vunpack.c.l.b16 %v1812
    %v2912 = vunpack.c.h.b16 %v1812
    %v2913 = vunpack.c.l.b16 %v1813
    %v2914 = vunpack.c.h.b16 %v1813
    %v2915 = vunpack.c.l.b16 %v1814
    %v2916 = vunpack.c.h.b16 %v1814
    %v2917 = vunpack.c.l.b16 %v1815
    %v2918 = vunpack.c.h.b16 %v1815
    %v2919 = vunpack.c.l.b16 %v1816
    %v2920 = vunpack.c.h.b16 %v1816
    %v2921 = vunpack.c.l.b16 %v1817
    %v2922 = vunpack.c.h.b16 %v1817
    %v2923 = vunpack.c.l.b16 %v1818
    %v2924 = vunpack.c.h.b16 %v1818
    %v2925 = vunpack.c.l.b16 %v1819
    %v2926 = vunpack.c.h.b16 %v1819
    %v2927 = vunpack.c.l.b16 %v1820
    %v2928 = vunpack.c.h.b16 %v1820
    %v2929 = vunpack.c.l.b16 %v1821
    %v2930 = vunpack.c.h.b16 %v1821
    %v2931 = vunpack.c.l.b16 %v1822
    %v2932 = vunpack.c.h.b16 %v1822
    %v2933 = vunpack.c.l.b16 %v1823
    %v2934 = vunpack.c.h.b16 %v1823
    %v2935 = vunpack.c.l.b16 %v1824
    %v2936 = vunpack.c.h.b16 %v1824
    %v2937 = vunpack.c.l.b16 %v1825
    %v2938 = vunpack.c.h.b16 %v1825
    %v2939 = vunpack.c.l.b16 %v1826
    %v2940 = vunpack.c.h.b16 %v1826
    %v2941 = vunpack.c.l.b16 %v1827
    %v2942 = vunpack.c.h.b16 %v1827
    %v2943 = vunpack.c.l.b16 %v1828
    %v2944 = vunpack.c.h.b16 %v1828
    %v2945 = vunpack.c.l.b16 %v1829
    %v2946 = vunpack.c.h.b16 %v1829
    %v2947 = vunpack.c.l.b16 %v1830
    %v2948 = vunpack.c.h.b16 %v1830
    %v2949 = vunpack.c.l.b16 %v1831
    %v2950 = vunpack.c.h.b16 %v1831
    %v2951 = vunpack.c.l.b16 %v1832
    %v2952 = vunpack.c.h.b16 %v1832
    %v2953 = vunpack.c.l.b16 %v1833
    %v2954 = vunpack.c.h.b16 %v1833
    %v2955 = vunpack.c.l.b16 %v1834
    %v2956 = vunpack.c.h.b16 %v1834
    %v2957 = vunpack.c.l.b16 %v1835
    %v2958 = vunpack.c.h.b16 %v1835
    %v2959 = vunpack.c.l.b16 %v1836
    %v2960 = vunpack.c.h.b16 %v1836
    %v2961 = vunpack.c.l.b16 %v1837
    %v2962 = vunpack.c.h.b16 %v1837
    %v2963 = vunpack.c.l.b16 %v1838
    %v2964 = vunpack.c.h.b16 %v1838
    %v2965 = vunpack.c.l.b16 %v1839
    %v2966 = vunpack.c.h.b16 %v1839
    %v2967 = vunpack.c.l.b16 %v1840
    %v2968 = vunpack.c.h.b16 %v1840
    %v2969 = vunpack.c.l.b16 %v1841
    %v2970 = vunpack.c.h.b16 %v1841
    %v2971 = vunpack.c.l.b16 %v1842
    %v2972 = vunpack.c.h.b16 %v1842
    %v2973 = vunpack.c.l.b16 %v1843
    %v2974 = vunpack.c.h.b16 %v1843
    %v2975 = vunpack.c.l.b16 %v1844
    %v2976 = vunpack.c.h.b16 %v1844
    %v2977 = vunpack.c.l.b16 %v1845
    %v2978 = vunpack.c.h.b16 %v1845
    %v2979 = vunpack.c.l.b16 %v1846
    %v2980 = vunpack.c.h.b16 %v1846
    %v2981 = vunpack.c.l.b16 %v1847
    %v2982 = vunpack.c.h.b16 %v1847
    %v2983 = vunpack.c.l.b16 %v1848
    %v2984 = vunpack.c.h.b16 %v1848
    %v2985 = vunpack.c.l.b16 %v1849
    %v2986 = vunpack.c.h.b16 %v1849
    %v2987 = vunpack.c.l.b16 %v1850
    %v2988 = vunpack.c.h.b16 %v1850
    %v2989 = vunpack.c.l.b16 %v1851
    %v2990 = vunpack.c.h.b16 %v1851
    %v2991 = vunpack.c.l.b16 %v1852
    %v2992 = vunpack.c.h.b16 %v1852
    %v2993 = vunpack.c.l.b16 %v1853
    %v2994 = vunpack.c.h.b16 %v1853
    %v2995 = vunpack.c.l.b16 %v1854
    %v2996 = vunpack.c.h.b16 %v1854
    %v2997 = vunpack.c.l.b16 %v1855
    %v2998 = vunpack.c.h.b16 %v1855
    %v2999 = vunpack.c.l.b16 %v1856
    %v3000 = vunpack.c.h.b16 %v1856
    %v3001 = vunpack.c.l.b16 %v1857
    %v3002 = vunpack.c.h.b16 %v1857
    %v3003 = vunpack.c.l.b16 %v1858
    %v3004 = vunpack.c.h.b16 %v1858
    %v3005 = vunpack.c.l.b16 %v1859
    %v3006 = vunpack.c.h.b16 %v1859
    %v3007 = vunpack.c.l.b16 %v1860
    %v3008 = vunpack.c.h.b16 %v1860
    %v3009 = vunpack.c.l.b16 %v1861
    %v3010 = vunpack.c.h.b16 %v1861
    %v3011 = vunpack.c.l.b16 %v1862
    %v3012 = vunpack.c.h.b16 %v1862
    %v3013 = vunpack.c.l.b16 %v1863
    %v3014 = vunpack.c.h.b16 %v1863
    %v3015 = vunpack.c.l.b16 %v1864
    %v3016 = vunpack.c.h.b16 %v1864
    %v3017 = vunpack.c.l.b16 %v1865
    %v3018 = vunpack.c.h.b16 %v1865
    %v3019 = vunpack.c.l.b16 %v1866
    %v3020 = vunpack.c.h.b16 %v1866
    %v3021 = vunpack.c.l.b16 %v1867
    %v3022 = vunpack.c.h.b16 %v1867
    %v3023 = vunpack.c.l.b16 %v1868
    %v3024 = vunpack.c.h.b16 %v1868
    %v3025 = vunpack.c.l.b16 %v1869
    %v3026 = vunpack.c.h.b16 %v1869
    %v3027 = vunpack.c.l.b16 %v1870
    %v3028 = vunpack.c.h.b16 %v1870
    %v3029 = vunpack.c.l.b16 %v1871
    %v3030 = vunpack.c.h.b16 %v1871
    %v3031 = vunpack.c.l.b16 %v1872
    %v3032 = vunpack.c.h.b16 %v1872
    %v3033 = vunpack.c.l.b16 %v1873
    %v3034 = vunpack.c.h.b16 %v1873
    %v3035 = vunpack.c.l.b16 %v1874
    %v3036 = vunpack.c.h.b16 %v1874
    %v3037 = vunpack.c.l.b16 %v1875
    %v3038 = vunpack.c.h.b16 %v1875
    %v3039 = vunpack.c.l.b16 %v1876
    %v3040 = vunpack.c.h.b16 %v1876
    %v3041 = vunpack.c.l.b16 %v1877
    %v3042 = vunpack.c.h.b16 %v1877
    %v3043 = vunpack.c.l.b16 %v1878
    %v3044 = vunpack.c.h.b16 %v1878
    %v3045 = vunpack.c.l.b16 %v1879
    %v3046 = vunpack.c.h.b16 %v1879
    %v3047 = vunpack.c.l.b16 %v1880
    %v3048 = vunpack.c.h.b16 %v1880
    %v3049 = vunpack.c.l.b16 %v1881
    %v3050 = vunpack.c.h.b16 %v1881
    %v3051 = vunpack.c.l.b16 %v1882
    %v3052 = vunpack.c.h.b16 %v1882
    %v3053 = vunpack.c.l.b16 %v1883
    %v3054 = vunpack.c.h.b16 %v1883
    %v3055 = vunpack.c.l.b16 %v1884
    %v3056 = vunpack.c.h.b16 %v1884
    %v3057 = vunpack.c.l.b16 %v1885
    %v3058 = vunpack.c.h.b16 %v1885
    %v3059 = vunpack.c.l.b16 %v1886
    %v3060 = vunpack.c.h.b16 %v1886
    %v3061 = vunpack.c.l.b16 %v1887
    %v3062 = vunpack.c.h.b16 %v1887
    %v3063 = vunpack.c.l.b16 %v1888
    %v3064 = vunpack.c.h.b16 %v1888
    %v3065 = vunpack.c.l.b16 %v1889
    %v3066 = vunpack.c.h.b16 %v1889
    %v3067 = vunpack.c.l.b16 %v1890
    %v3068 = vunpack.c.h.b16 %v1890
    %v3069 = vunpack.c.l.b16 %v1891
    %v3070 = vunpack.c.h.b16 %v1891
    %v3071 = vunpack.c.l.b16 %v1892
    %v3072 = vunpack.c.h.b16 %v1892
    %v3073 = vunpack.c.l.b16 %v1893
    %v3074 = vunpack.c.h.b16 %v1893
    %v3075 = vunpack.c.l.b16 %v1894
    %v3076 = vunpack.c.h.b16 %v1894
    %v3077 = vunpack.c.l.b16 %v1895
    %v3078 = vunpack.c.h.b16 %v1895
    %v3079 = vunpack.c.l.b16 %v1896
    %v3080 = vunpack.c.h.b16 %v1896
    %v3081 = vpack.c.b16 %v2319, %v2313
    %v3082 = vpack.c.b16 %v2320, %v2314
    %v3083 = vpack.c.b16 %v2321, %v2315
    %v3084 = vpack.c.b16 %v2322, %v2316
    %v3085 = vpack.c.b16 %v2323, %v2317
    %v3086 = vpack.c.b16 %v2324, %v2318
    %v3087 = vpack.c.b16 %v2331, %v2325
    %v3088 = vpack.c.b16 %v2332, %v2326
    %v3089 = vpack.c.b16 %v2333, %v2327
    %v3090 = vpack.c.b16 %v2334, %v2328
    %v3091 = vpack.c.b16 %v2335, %v2329
    %v3092 = vpack.c.b16 %v2336, %v2330
    %v3093 = vpack.c.b16 %v2343, %v2337
    %v3094 = vpack.c.b16 %v2344, %v2338
    %v3095 = vpack.c.b16 %v2345, %v2339
    %v3096 = vpack.c.b16 %v2346, %v2340
    %v3097 = vpack.c.b16 %v2347, %v2341
    %v3098 = vpack.c.b16 %v2348, %v2342
    %v3099 = vpack.c.b16 %v2355, %v2349
    %v3100 = vpack.c.b16 %v2356, %v2350
    %v3101 = vpack.c.b16 %v2357, %v2351
    %v3102 = vpack.c.b16 %v2358, %v2352
    %v3103 = vpack.c.b16 %v2359, %v2353
    %v3104 = vpack.c.b16 %v2360, %v2354
    %v3105 = vpack.c.b16 %v2367, %v2361
    %v3106 = vpack.c.b16 %v2368, %v2362
    %v3107 = vpack.c.b16 %v2369, %v2363
    %v3108 = vpack.c.b16 %v2370, %v2364
    %v3109 = vpack.c.b16 %v2371, %v2365
    %v3110 = vpack.c.b16 %v2372, %v2366
    %v3111 = vpack.c.b16 %v2379, %v2373
    %v3112 = vpack.c.b16 %v2380, %v2374
    %v3113 = vpack.c.b16 %v2381, %v2375
    %v3114 = vpack.c.b16 %v2382, %v2376
    %v3115 = vpack.c.b16 %v2383, %v2377
    %v3116 = vpack.c.b16 %v2384, %v2378
    %v3117 = vpack.c.b16 %v2391, %v2385
    %v3118 = vpack.c.b16 %v2392, %v2386
    %v3119 = vpack.c.b16 %v2393, %v2387
    %v3120 = vpack.c.b16 %v2394, %v2388
    %v3121 = vpack.c.b16 %v2395, %v2389
    %v3122 = vpack.c.b16 %v2396, %v2390
    %v3123 = vpack.c.b16 %v2403, %v2397
    %v3124 = vpack.c.b16 %v2404, %v2398
    %v3125 = vpack.c.b16 %v2405, %v2399
    %v3126 = vpack.c.b16 %v2406, %v2400
    %v3127 = vpack.c.b16 %v2407, %v2401
    %v3128 = vpack.c.b16 %v2408, %v2402
    %v3129 = vpack.c.b16 %v2415, %v2409
    %v3130 = vpack.c.b16 %v2416, %v2410
    %v3131 = vpack.c.b16 %v2417, %v2411
    %v3132 = vpack.c.b16 %v2418, %v2412
    %v3133 = vpack.c.b16 %v2419, %v2413
    %v3134 = vpack.c.b16 %v2420, %v2414
    %v3135 = vpack.c.b16 %v2427, %v2421
    %v3136 = vpack.c.b16 %v2428, %v2422
    %v3137 = vpack.c.b16 %v2429, %v2423
    %v3138 = vpack.c.b16 %v2430, %v2424
    %v3139 = vpack.c.b16 %v2431, %v2425
    %v3140 = vpack.c.b16 %v2432, %v2426
    %v3141 = vpack.c.b16 %v2439, %v2433
    %v3142 = vpack.c.b16 %v2440, %v2434
    %v3143 = vpack.c.b16 %v2441, %v2435
    %v3144 = vpack.c.b16 %v2442, %v2436
    %v3145 = vpack.c.b16 %v2443, %v2437
    %v3146 = vpack.c.b16 %v2444, %v2438
    %v3147 = vpack.c.b16 %v2451, %v2445
    %v3148 = vpack.c.b16 %v2452, %v2446
    %v3149 = vpack.c.b16 %v2453, %v2447
    %v3150 = vpack.c.b16 %v2454, %v2448
    %v3151 = vpack.c.b16 %v2455, %v2449
    %v3152 = vpack.c.b16 %v2456, %v2450
    %v3153 = vpack.c.b16 %v2463, %v2457
    %v3154 = vpack.c.b16 %v2464, %v2458
    %v3155 = vpack.c.b16 %v2465, %v2459
    %v3156 = vpack.c.b16 %v2466, %v2460
    %v3157 = vpack.c.b16 %v2467, %v2461
    %v3158 = vpack.c.b16 %v2468, %v2462
    %v3159 = vpack.c.b16 %v2475, %v2469
    %v3160 = vpack.c.b16 %v2476, %v2470
    %v3161 = vpack.c.b16 %v2477, %v2471
    %v3162 = vpack.c.b16 %v2478, %v2472
    %v3163 = vpack.c.b16 %v2479, %v2473
    %v3164 = vpack.c.b16 %v2480, %v2474
    %v3165 = vpack.c.b16 %v2487, %v2481
    %v3166 = vpack.c.b16 %v2488, %v2482
    %v3167 = vpack.c.b16 %v2489, %v2483
    %v3168 = vpack.c.b16 %v2490, %v2484
    %v3169 = vpack.c.b16 %v2491, %v2485
    %v3170 = vpack.c.b16 %v2492, %v2486
    %v3171 = vpack.c.b16 %v2499, %v2493
    %v3172 = vpack.c.b16 %v2500, %v2494
    %v3173 = vpack.c.b16 %v2501, %v2495
    %v3174 = vpack.c.b16 %v2502, %v2496
    %v3175 = vpack.c.b16 %v2503, %v2497
    %v3176 = vpack.c.b16 %v2504, %v2498
    %v3177 = vpack.c.b16 %v2511, %v2505
    %v3178 = vpack.c.b16 %v2512, %v2506
    %v3179 = vpack.c.b16 %v2513, %v2507
    %v3180 = vpack.c.b16 %v2514, %v2508
    %v3181 = vpack.c.b16 %v2515, %v2509
    %v3182 = vpack.c.b16 %v2516, %v2510
    %v3183 = vpack.c.b16 %v2523, %v2517
    %v3184 = vpack.c.b16 %v2524, %v2518
    %v3185 = vpack.c.b16 %v2525, %v2519
    %v3186 = vpack.c.b16 %v2526, %v2520
    %v3187 = vpack.c.b16 %v2527, %v2521
    %v3188 = vpack.c.b16 %v2528, %v2522
    %v3189 = vpack.c.b16 %v2535, %v2529
    %v3190 = vpack.c.b16 %v2536, %v2530
    %v3191 = vpack.c.b16 %v2537, %v2531
    %v3192 = vpack.c.b16 %v2538, %v2532
    %v3193 = vpack.c.b16 %v2539, %v2533
    %v3194 = vpack.c.b16 %v2540, %v2534
    %v3195 = vpack.c.b16 %v2547, %v2541
    %v3196 = vpack.c.b16 %v2548, %v2542
    %v3197 = vpack.c.b16 %v2549, %v2543
    %v3198 = vpack.c.b16 %v2550, %v2544
    %v3199 = vpack.c.b16 %v2551, %v2545
    %v3200 = vpack.c.b16 %v2552, %v2546
    %v3201 = vpack.c.b16 %v2559, %v2553
    %v3202 = vpack.c.b16 %v2560, %v2554
    %v3203 = vpack.c.b16 %v2561, %v2555
    %v3204 = vpack.c.b16 %v2562, %v2556
    %v3205 = vpack.c.b16 %v2563, %v2557
    %v3206 = vpack.c.b16 %v2564, %v2558
    %v3207 = vpack.c.b16 %v2571, %v2565
    %v3208 = vpack.c.b16 %v2572, %v2566
    %v3209 = vpack.c.b16 %v2573, %v2567
    %v3210 = vpack.c.b16 %v2574, %v2568
    %v3211 = vpack.c.b16 %v2575, %v2569
    %v3212 = vpack.c.b16 %v2576, %v2570
    %v3213 = vpack.c.b16 %v2583, %v2577
    %v3214 = vpack.c.b16 %v2584, %v2578
    %v3215 = vpack.c.b16 %v2585, %v2579
    %v3216 = vpack.c.b16 %v2586, %v2580
    %v3217 = vpack.c.b16 %v2587, %v2581
    %v3218 = vpack.c.b16 %v2588, %v2582
    %v3219 = vpack.c.b16 %v2595, %v2589
    %v3220 = vpack.c.b16 %v2596, %v2590
    %v3221 = vpack.c.b16 %v2597, %v2591
    %v3222 = vpack.c.b16 %v2598, %v2592
    %v3223 = vpack.c.b16 %v2599, %v2593
    %v3224 = vpack.c.b16 %v2600, %v2594
    %v3225 = vpack.c.b16 %v2607, %v2601
    %v3226 = vpack.c.b16 %v2608, %v2602
    %v3227 = vpack.c.b16 %v2609, %v2603
    %v3228 = vpack.c.b16 %v2610, %v2604
    %v3229 = vpack.c.b16 %v2611, %v2605
    %v3230 = vpack.c.b16 %v2612, %v2606
    %v3231 = vpack.c.b16 %v2619, %v2613
    %v3232 = vpack.c.b16 %v2620, %v2614
    %v3233 = vpack.c.b16 %v2621, %v2615
    %v3234 = vpack.c.b16 %v2622, %v2616
    %v3235 = vpack.c.b16 %v2623, %v2617
    %v3236 = vpack.c.b16 %v2624, %v2618
    %v3237 = vpack.c.b16 %v2631, %v2625
    %v3238 = vpack.c.b16 %v2632, %v2626
    %v3239 = vpack.c.b16 %v2633, %v2627
    %v3240 = vpack.c.b16 %v2634, %v2628
    %v3241 = vpack.c.b16 %v2635, %v2629
    %v3242 = vpack.c.b16 %v2636, %v2630
    %v3243 = vpack.c.b16 %v2643, %v2637
    %v3244 = vpack.c.b16 %v2644, %v2638
    %v3245 = vpack.c.b16 %v2645, %v2639
    %v3246 = vpack.c.b16 %v2646, %v2640
    %v3247 = vpack.c.b16 %v2647, %v2641
    %v3248 = vpack.c.b16 %v2648, %v2642
    %v3249 = vpack.c.b16 %v2655, %v2649
    %v3250 = vpack.c.b16 %v2656, %v2650
    %v3251 = vpack.c.b16 %v2657, %v2651
    %v3252 = vpack.c.b16 %v2658, %v2652
    %v3253 = vpack.c.b16 %v2659, %v2653
    %v3254 = vpack.c.b16 %v2660, %v2654
    %v3255 = vpack.c.b16 %v2667, %v2661
    %v3256 = vpack.c.b16 %v2668, %v2662
    %v3257 = vpack.c.b16 %v2669, %v2663
    %v3258 = vpack.c.b16 %v2670, %v2664
    %v3259 = vpack.c.b16 %v2671, %v2665
    %v3260 = vpack.c.b16 %v2672, %v2666
    %v3261 = vpack.c.b16 %v2679, %v2673
    %v3262 = vpack.c.b16 %v2680, %v2674
    %v3263 = vpack.c.b16 %v2681, %v2675
    %v3264 = vpack.c.b16 %v2682, %v2676
    %v3265 = vpack.c.b16 %v2683, %v2677
    %v3266 = vpack.c.b16 %v2684, %v2678
    %v3267 = vpack.c.b16 %v2691, %v2685
    %v3268 = vpack.c.b16 %v2692, %v2686
    %v3269 = vpack.c.b16 %v2693, %v2687
    %v3270 = vpack.c.b16 %v2694, %v2688
    %v3271 = vpack.c.b16 %v2695, %v2689
    %v3272 = vpack.c.b16 %v2696, %v2690
    %v3273 = vpack.c.b16 %v2703, %v2697
    %v3274 = vpack.c.b16 %v2704, %v2698
    %v3275 = vpack.c.b16 %v2705, %v2699
    %v3276 = vpack.c.b16 %v2706, %v2700
    %v3277 = vpack.c.b16 %v2707, %v2701
    %v3278 = vpack.c.b16 %v2708, %v2702
    %v3279 = vpack.c.b16 %v2715, %v2709
    %v3280 = vpack.c.b16 %v2716, %v2710
    %v3281 = vpack.c.b16 %v2717, %v2711
    %v3282 = vpack.c.b16 %v2718, %v2712
    %v3283 = vpack.c.b16 %v2719, %v2713
    %v3284 = vpack.c.b16 %v2720, %v2714
    %v3285 = vpack.c.b16 %v2727, %v2721
    %v3286 = vpack.c.b16 %v2728, %v2722
    %v3287 = vpack.c.b16 %v2729, %v2723
    %v3288 = vpack.c.b16 %v2730, %v2724
    %v3289 = vpack.c.b16 %v2731, %v2725
    %v3290 = vpack.c.b16 %v2732, %v2726
    %v3291 = vpack.c.b16 %v2739, %v2733
    %v3292 = vpack.c.b16 %v2740, %v2734
    %v3293 = vpack.c.b16 %v2741, %v2735
    %v3294 = vpack.c.b16 %v2742, %v2736
    %v3295 = vpack.c.b16 %v2743, %v2737
    %v3296 = vpack.c.b16 %v2744, %v2738
    %v3297 = vpack.c.b16 %v2751, %v2745
    %v3298 = vpack.c.b16 %v2752, %v2746
    %v3299 = vpack.c.b16 %v2753, %v2747
    %v3300 = vpack.c.b16 %v2754, %v2748
    %v3301 = vpack.c.b16 %v2755, %v2749
    %v3302 = vpack.c.b16 %v2756, %v2750
    %v3303 = vpack.c.b16 %v2763, %v2757
    %v3304 = vpack.c.b16 %v2764, %v2758
    %v3305 = vpack.c.b16 %v2765, %v2759
    %v3306 = vpack.c.b16 %v2766, %v2760
    %v3307 = vpack.c.b16 %v2767, %v2761
    %v3308 = vpack.c.b16 %v2768, %v2762
    %v3309 = vpack.c.b16 %v2775, %v2769
    %v3310 = vpack.c.b16 %v2776, %v2770
    %v3311 = vpack.c.b16 %v2777, %v2771
    %v3312 = vpack.c.b16 %v2778, %v2772
    %v3313 = vpack.c.b16 %v2779, %v2773
    %v3314 = vpack.c.b16 %v2780, %v2774
    %v3315 = vpack.c.b16 %v2787, %v2781
    %v3316 = vpack.c.b16 %v2788, %v2782
    %v3317 = vpack.c.b16 %v2789, %v2783
    %v3318 = vpack.c.b16 %v2790, %v2784
    %v3319 = vpack.c.b16 %v2791, %v2785
    %v3320 = vpack.c.b16 %v2792, %v2786
    %v3321 = vpack.c.b16 %v2799, %v2793
    %v3322 = vpack.c.b16 %v2800, %v2794
    %v3323 = vpack.c.b16 %v2801, %v2795
    %v3324 = vpack.c.b16 %v2802, %v2796
    %v3325 = vpack.c.b16 %v2803, %v2797
    %v3326 = vpack.c.b16 %v2804, %v2798
    %v3327 = vpack.c.b16 %v2811, %v2805
    %v3328 = vpack.c.b16 %v2812, %v2806
    %v3329 = vpack.c.b16 %v2813, %v2807
    %v3330 = vpack.c.b16 %v2814, %v2808
    %v3331 = vpack.c.b16 %v2815, %v2809
    %v3332 = vpack.c.b16 %v2816, %v2810
    %v3333 = vpack.c.b16 %v2823, %v2817
    %v3334 = vpack.c.b16 %v2824, %v2818
    %v3335 = vpack.c.b16 %v2825, %v2819
    %v3336 = vpack.c.b16 %v2826, %v2820
    %v3337 = vpack.c.b16 %v2827, %v2821
    %v3338 = vpack.c.b16 %v2828, %v2822
    %v3339 = vpack.c.b16 %v2835, %v2829
    %v3340 = vpack.c.b16 %v2836, %v2830
    %v3341 = vpack.c.b16 %v2837, %v2831
    %v3342 = vpack.c.b16 %v2838, %v2832
    %v3343 = vpack.c.b16 %v2839, %v2833
    %v3344 = vpack.c.b16 %v2840, %v2834
    %v3345 = vpack.c.b16 %v2847, %v2841
    %v3346 = vpack.c.b16 %v2848, %v2842
    %v3347 = vpack.c.b16 %v2849, %v2843
    %v3348 = vpack.c.b16 %v2850, %v2844
    %v3349 = vpack.c.b16 %v2851, %v2845
    %v3350 = vpack.c.b16 %v2852, %v2846
    %v3351 = vpack.c.b16 %v2859, %v2853
    %v3352 = vpack.c.b16 %v2860, %v2854
    %v3353 = vpack.c.b16 %v2861, %v2855
    %v3354 = vpack.c.b16 %v2862, %v2856
    %v3355 = vpack.c.b16 %v2863, %v2857
    %v3356 = vpack.c.b16 %v2864, %v2858
    %v3357 = vpack.c.b16 %v2871, %v2865
    %v3358 = vpack.c.b16 %v2872, %v2866
    %v3359 = vpack.c.b16 %v2873, %v2867
    %v3360 = vpack.c.b16 %v2874, %v2868
    %v3361 = vpack.c.b16 %v2875, %v2869
    %v3362 = vpack.c.b16 %v2876, %v2870
    %v3363 = vpack.c.b16 %v2883, %v2877
    %v3364 = vpack.c.b16 %v2884, %v2878
    %v3365 = vpack.c.b16 %v2885, %v2879
    %v3366 = vpack.c.b16 %v2886, %v2880
    %v3367 = vpack.c.b16 %v2887, %v2881
    %v3368 = vpack.c.b16 %v2888, %v2882
    %v3369 = vpack.c.b16 %v2895, %v2889
    %v3370 = vpack.c.b16 %v2896, %v2890
    %v3371 = vpack.c.b16 %v2897, %v2891
    %v3372 = vpack.c.b16 %v2898, %v2892
    %v3373 = vpack.c.b16 %v2899, %v2893
    %v3374 = vpack.c.b16 %v2900, %v2894
    %v3375 = vpack.c.b16 %v2907, %v2901
    %v3376 = vpack.c.b16 %v2908, %v2902
    %v3377 = vpack.c.b16 %v2909, %v2903
    %v3378 = vpack.c.b16 %v2910, %v2904
    %v3379 = vpack.c.b16 %v2911, %v2905
    %v3380 = vpack.c.b16 %v2912, %v2906
    %v3381 = vpack.c.b16 %v2919, %v2913
    %v3382 = vpack.c.b16 %v2920, %v2914
    %v3383 = vpack.c.b16 %v2921, %v2915
    %v3384 = vpack.c.b16 %v2922, %v2916
    %v3385 = vpack.c.b16 %v2923, %v2917
    %v3386 = vpack.c.b16 %v2924, %v2918
    %v3387 = vpack.c.b16 %v2931, %v2925
    %v3388 = vpack.c.b16 %v2932, %v2926
    %v3389 = vpack.c.b16 %v2933, %v2927
    %v3390 = vpack.c.b16 %v2934, %v2928
    %v3391 = vpack.c.b16 %v2935, %v2929
    %v3392 = vpack.c.b16 %v2936, %v2930
    %v3393 = vpack.c.b16 %v2943, %v2937
    %v3394 = vpack.c.b16 %v2944, %v2938
    %v3395 = vpack.c.b16 %v2945, %v2939
    %v3396 = vpack.c.b16 %v2946, %v2940
    %v3397 = vpack.c.b16 %v2947, %v2941
    %v3398 = vpack.c.b16 %v2948, %v2942
    %v3399 = vpack.c.b16 %v2955, %v2949
    %v3400 = vpack.c.b16 %v2956, %v2950
    %v3401 = vpack.c.b16 %v2957, %v2951
    %v3402 = vpack.c.b16 %v2958, %v2952
    %v3403 = vpack.c.b16 %v2959, %v2953
    %v3404 = vpack.c.b16 %v2960, %v2954
    %v3405 = vpack.c.b16 %v2967, %v2961
    %v3406 = vpack.c.b16 %v2968, %v2962
    %v3407 = vpack.c.b16 %v2969, %v2963
    %v3408 = vpack.c.b16 %v2970, %v2964
    %v3409 = vpack.c.b16 %v2971, %v2965
    %v3410 = vpack.c.b16 %v2972, %v2966
    %v3411 = vpack.c.b16 %v2979, %v2973
    %v3412 = vpack.c.b16 %v2980, %v2974
    %v3413 = vpack.c.b16 %v2981, %v2975
    %v3414 = vpack.c.b16 %v2982, %v2976
    %v3415 = vpack.c.b16 %v2983, %v2977
    %v3416 = vpack.c.b16 %v2984, %v2978
    %v3417 = vpack.c.b16 %v2991, %v2985
    %v3418 = vpack.c.b16 %v2992, %v2986
    %v3419 = vpack.c.b16 %v2993, %v2987
    %v3420 = vpack.c.b16 %v2994, %v2988
    %v3421 = vpack.c.b16 %v2995, %v2989
    %v3422 = vpack.c.b16 %v2996, %v2990
    %v3423 = vpack.c.b16 %v3003, %v2997
    %v3424 = vpack.c.b16 %v3004, %v2998
    %v3425 = vpack.c.b16 %v3005, %v2999
    %v3426 = vpack.c.b16 %v3006, %v3000
    %v3427 = vpack.c.b16 %v3007, %v3001
    %v3428 = vpack.c.b16 %v3008, %v3002
    %v3429 = vpack.c.b16 %v3015, %v3009
    %v3430 = vpack.c.b16 %v3016, %v3010
    %v3431 = vpack.c.b16 %v3017, %v3011
    %v3432 = vpack.c.b16 %v3018, %v3012
    %v3433 = vpack.c.b16 %v3019, %v3013
    %v3434 = vpack.c.b16 %v3020, %v3014
    %v3435 = vpack.c.b16 %v3027, %v3021
    %v3436 = vpack.c.b16 %v3028, %v3022
    %v3437 = vpack.c.b16 %v3029, %v3023
    %v3438 = vpack.c.b16 %v3030, %v3024
    %v3439 = vpack.c.b16 %v3031, %v3025
    %v3440 = vpack.c.b16 %v3032, %v3026
    %v3441 = vpack.c.b16 %v3039, %v3033
    %v3442 = vpack.c.b16 %v3040, %v3034
    %v3443 = vpack.c.b16 %v3041, %v3035
    %v3444 = vpack.c.b16 %v3042, %v3036
    %v3445 = vpack.c.b16 %v3043, %v3037
    %v3446 = vpack.c.b16 %v3044, %v3038
    %v3447 = vpack.c.b16 %v3051, %v3045
    %v3448 = vpack.c.b16 %v3052, %v3046
    %v3449 = vpack.c.b16 %v3053, %v3047
    %v3450 = vpack.c.b16 %v3054, %v3048
    %v3451 = vpack.c.b16 %v3055, %v3049
    %v3452 = vpack.c.b16 %v3056, %v3050
    %v3453 = vpack.c.b16 %v3063, %v3057
    %v3454 = vpack.c.b16 %v3064, %v3058
    %v3455 = vpack.c.b16 %v3065, %v3059
    %v3456 = vpack.c.b16 %v3066, %v3060
    %v3457 = vpack.c.b16 %v3067, %v3061
    %v3458 = vpack.c.b16 %v3068, %v3062
    %v3459 = vpack.c.b16 %v3075, %v3069
    %v3460 = vpack.c.b16 %v3076, %v3070
    %v3461 = vpack.c.b16 %v3077, %v3071
    %v3462 = vpack.c.b16 %v3078, %v3072
    %v3463 = vpack.c.b16 %v3079, %v3073
    %v3464 = vpack.c.b16 %v3080, %v3074
    %3849 = vmatprep.subr.bf16.mxu0 %v3082
    %3850 = vmatpush1.bf16.msra.mxu0 %v3081
    %3851 = vmatprep.subr.bf16.mxu0 %v3088
    %3852 = vmatpush1.bf16.msra.mxu0 %v3087
    %3853 = vmatprep.subr.bf16.mxu0 %v3094
    %3854 = vmatpush1.bf16.msra.mxu0 %v3093
    %3855 = vmatprep.subr.bf16.mxu0 %v3100
    %3856 = vmatpush1.bf16.msra.mxu0 %v3099
    %3857 = vmatprep.subr.bf16.mxu0 %v3106
    %3858 = vmatpush1.bf16.msra.mxu0 %v3105
    %3859 = vmatprep.subr.bf16.mxu0 %v3112
    %3860 = vmatpush1.bf16.msra.mxu0 %v3111
    %3861 = vmatprep.subr.bf16.mxu0 %v3118
    %3862 = vmatpush1.bf16.msra.mxu0 %v3117
    %3863 = vmatprep.subr.bf16.mxu0 %v3124
    %3864 = vmatpush1.bf16.msra.mxu0 %v3123
    %3865 = vmatprep.subr.bf16.mxu0 %v3130
    %3866 = vmatpush1.bf16.msra.mxu0 %v3129
    %3867 = vmatprep.subr.bf16.mxu0 %v3136
    %3868 = vmatpush1.bf16.msra.mxu0 %v3135
    %3869 = vmatprep.subr.bf16.mxu0 %v3142
    %3870 = vmatpush1.bf16.msra.mxu0 %v3141
    %3871 = vmatprep.subr.bf16.mxu0 %v3148
    %3872 = vmatpush1.bf16.msra.mxu0 %v3147
    %3873 = vmatprep.subr.bf16.mxu0 %v3154
    %3874 = vmatpush1.bf16.msra.mxu0 %v3153
    %3875 = vmatprep.subr.bf16.mxu0 %v3160
    %3876 = vmatpush1.bf16.msra.mxu0 %v3159
    %3877 = vmatprep.subr.bf16.mxu0 %v3166
    %3878 = vmatpush1.bf16.msra.mxu0 %v3165
    %3879 = vmatprep.subr.bf16.mxu0 %v3172
    %3880 = vmatpush1.bf16.msra.mxu0 %v3171
    %3881 = vmatprep.mubr.bf16.mxu0 %v1506
    %3882 = vmatmul.mubr.bf16.gmra.mrb[0].mxu0 %v1505
    %v3883 = vpop.f32.mrb[0].mxu0
    %v3884 = vadd.f32 %v1902, %v3883
    %v3885 = vpop.f32.mrb[0].mxu0
    %v3886 = vadd.f32 %v1906, %v3885
    %v3887 = vpop.f32.mrb[0].mxu0
    %v3888 = vpop.f32.mrb[0].mxu0
    %3889 = vdwg.mxu0
    %3890 = vmatprep.subr.bf16.mxu0 %v3178
    %3891 = vmatpush1.bf16.msra.mxu0 %v3177
    %3892 = vmatprep.subr.bf16.mxu0 %v3184
    %3893 = vmatpush1.bf16.msra.mxu0 %v3183
    %3894 = vmatprep.subr.bf16.mxu0 %v3190
    %3895 = vmatpush1.bf16.msra.mxu0 %v3189
    %3896 = vmatprep.subr.bf16.mxu0 %v3196
    %3897 = vmatpush1.bf16.msra.mxu0 %v3195
    %3898 = vmatprep.subr.bf16.mxu0 %v3202
    %3899 = vmatpush1.bf16.msra.mxu0 %v3201
    %3900 = vmatprep.subr.bf16.mxu0 %v3208
    %3901 = vmatpush1.bf16.msra.mxu0 %v3207
    %3902 = vmatprep.subr.bf16.mxu0 %v3214
    %3903 = vmatpush1.bf16.msra.mxu0 %v3213
    %3904 = vmatprep.subr.bf16.mxu0 %v3220
    %3905 = vmatpush1.bf16.msra.mxu0 %v3219
    %3906 = vmatprep.subr.bf16.mxu0 %v3226
    %3907 = vmatpush1.bf16.msra.mxu0 %v3225
    %3908 = vmatprep.subr.bf16.mxu0 %v3232
    %3909 = vmatpush1.bf16.msra.mxu0 %v3231
    %3910 = vmatprep.subr.bf16.mxu0 %v3238
    %3911 = vmatpush1.bf16.msra.mxu0 %v3237
    %3912 = vmatprep.subr.bf16.mxu0 %v3244
    %3913 = vmatpush1.bf16.msra.mxu0 %v3243
    %3914 = vmatprep.subr.bf16.mxu0 %v3250
    %3915 = vmatpush1.bf16.msra.mxu0 %v3249
    %3916 = vmatprep.subr.bf16.mxu0 %v3256
    %3917 = vmatpush1.bf16.msra.mxu0 %v3255
    %3918 = vmatprep.subr.bf16.mxu0 %v3262
    %3919 = vmatpush1.bf16.msra.mxu0 %v3261
    %3920 = vmatprep.subr.bf16.mxu0 %v3268
    %3921 = vmatpush1.bf16.msra.mxu0 %v3267
    %3922 = vmatprep.mubr.bf16.mxu0 %v1508
    %3923 = vmatmul.mubr.bf16.gmra.mrb[0].mxu0 %v1507
    %v3924 = vpop.f32.mrb[0].mxu0
    %v3925 = vadd.f32 %v3884, %v3924
    %v3926 = vpop.f32.mrb[0].mxu0
    %v3927 = vadd.f32 %v3886, %v3926
    %v3928 = vpop.f32.mrb[0].mxu0
    %v3929 = vpop.f32.mrb[0].mxu0
    %3930 = vdwg.mxu0
    %3931 = vmatprep.subr.bf16.mxu0 %v3274
    %3932 = vmatpush1.bf16.msra.mxu0 %v3273
    %3933 = vmatprep.subr.bf16.mxu0 %v3280
    %3934 = vmatpush1.bf16.msra.mxu0 %v3279
    %3935 = vmatprep.subr.bf16.mxu0 %v3286
    %3936 = vmatpush1.bf16.msra.mxu0 %v3285
    %3937 = vmatprep.subr.bf16.mxu0 %v3292
    %3938 = vmatpush1.bf16.msra.mxu0 %v3291
    %3939 = vmatprep.subr.bf16.mxu0 %v3298
    %3940 = vmatpush1.bf16.msra.mxu0 %v3297
    %3941 = vmatprep.subr.bf16.mxu0 %v3304
    %3942 = vmatpush1.bf16.msra.mxu0 %v3303
    %3943 = vmatprep.subr.bf16.mxu0 %v3310
    %3944 = vmatpush1.bf16.msra.mxu0 %v3309
    %3945 = vmatprep.subr.bf16.mxu0 %v3316
    %3946 = vmatpush1.bf16.msra.mxu0 %v3315
    %3947 = vmatprep.subr.bf16.mxu0 %v3322
    %3948 = vmatpush1.bf16.msra.mxu0 %v3321
    %3949 = vmatprep.subr.bf16.mxu0 %v3328
    %3950 = vmatpush1.bf16.msra.mxu0 %v3327
    %3951 = vmatprep.subr.bf16.mxu0 %v3334
    %3952 = vmatpush1.bf16.msra.mxu0 %v3333
    %3953 = vmatprep.subr.bf16.mxu0 %v3340
    %3954 = vmatpush1.bf16.msra.mxu0 %v3339
    %3955 = vmatprep.subr.bf16.mxu0 %v3346
    %3956 = vmatpush1.bf16.msra.mxu0 %v3345
    %3957 = vmatprep.subr.bf16.mxu0 %v3352
    %3958 = vmatpush1.bf16.msra.mxu0 %v3351
    %3959 = vmatprep.subr.bf16.mxu0 %v3358
    %3960 = vmatpush1.bf16.msra.mxu0 %v3357
    %3961 = vmatprep.subr.bf16.mxu0 %v3364
    %3962 = vmatpush1.bf16.msra.mxu0 %v3363
    %3963 = vmatprep.mubr.bf16.mxu0 %v1510
    %3964 = vmatmul.mubr.bf16.gmra.mrb[0].mxu0 %v1509
    %v3965 = vpop.f32.mrb[0].mxu0
    %v3966 = vadd.f32 %v3925, %v3965
    %v3967 = vpop.f32.mrb[0].mxu0
    %v3968 = vadd.f32 %v3927, %v3967
    %v3969 = vpop.f32.mrb[0].mxu0
    %v3970 = vpop.f32.mrb[0].mxu0
    %3971 = vdwg.mxu0
    %3972 = vmatprep.subr.bf16.mxu0 %v3370
    %3973 = vmatpush1.bf16.msra.mxu0 %v3369
    %3974 = vmatprep.subr.bf16.mxu0 %v3376
    %3975 = vmatpush1.bf16.msra.mxu0 %v3375
    %3976 = vmatprep.subr.bf16.mxu0 %v3382
    %3977 = vmatpush1.bf16.msra.mxu0 %v3381
    %3978 = vmatprep.subr.bf16.mxu0 %v3388
    %3979 = vmatpush1.bf16.msra.mxu0 %v3387
    %3980 = vmatprep.subr.bf16.mxu0 %v3394
    %3981 = vmatpush1.bf16.msra.mxu0 %v3393
    %3982 = vmatprep.subr.bf16.mxu0 %v3400
    %3983 = vmatpush1.bf16.msra.mxu0 %v3399
    %3984 = vmatprep.subr.bf16.mxu0 %v3406
    %3985 = vmatpush1.bf16.msra.mxu0 %v3405
    %3986 = vmatprep.subr.bf16.mxu0 %v3412
    %3987 = vmatpush1.bf16.msra.mxu0 %v3411
    %3988 = vmatprep.subr.bf16.mxu0 %v3418
    %3989 = vmatpush1.bf16.msra.mxu0 %v3417
    %3990 = vmatprep.subr.bf16.mxu0 %v3424
    %3991 = vmatpush1.bf16.msra.mxu0 %v3423
    %3992 = vmatprep.subr.bf16.mxu0 %v3430
    %3993 = vmatpush1.bf16.msra.mxu0 %v3429
    %3994 = vmatprep.subr.bf16.mxu0 %v3436
    %3995 = vmatpush1.bf16.msra.mxu0 %v3435
    %3996 = vmatprep.subr.bf16.mxu0 %v3442
    %3997 = vmatpush1.bf16.msra.mxu0 %v3441
    %3998 = vmatprep.subr.bf16.mxu0 %v3448
    %3999 = vmatpush1.bf16.msra.mxu0 %v3447
    %4000 = vmatprep.subr.bf16.mxu0 %v3454
    %4001 = vmatpush1.bf16.msra.mxu0 %v3453
    %4002 = vmatprep.subr.bf16.mxu0 %v3460
    %4003 = vmatpush1.bf16.msra.mxu0 %v3459
    %4004 = vmatprep.mubr.bf16.mxu0 %v1512
    %4005 = vmatmul.mubr.bf16.gmra.mrb[0].mxu0 %v1511
    %v4006 = vpop.f32.mrb[0].mxu0
    %v4007 = vadd.f32 %v3966, %v4006
    %v4008 = vpop.f32.mrb[0].mxu0
    %v4009 = vadd.f32 %v3968, %v4008
    %v4010 = vpop.f32.mrb[0].mxu0
    %v4011 = vpop.f32.mrb[0].mxu0
    %4012 = vdwg.mxu0
    %4013 = vmatprep.subr.bf16.mxu0 %v3084
    %4014 = vmatpush1.bf16.msra.mxu0 %v3083
    %4015 = vmatprep.subr.bf16.mxu0 %v3090
    %4016 = vmatpush1.bf16.msra.mxu0 %v3089
    %4017 = vmatprep.subr.bf16.mxu0 %v3096
    %4018 = vmatpush1.bf16.msra.mxu0 %v3095
    %4019 = vmatprep.subr.bf16.mxu0 %v3102
    %4020 = vmatpush1.bf16.msra.mxu0 %v3101
    %4021 = vmatprep.subr.bf16.mxu0 %v3108
    %4022 = vmatpush1.bf16.msra.mxu0 %v3107
    %4023 = vmatprep.subr.bf16.mxu0 %v3114
    %4024 = vmatpush1.bf16.msra.mxu0 %v3113
    %4025 = vmatprep.subr.bf16.mxu0 %v3120
    %4026 = vmatpush1.bf16.msra.mxu0 %v3119
    %4027 = vmatprep.subr.bf16.mxu0 %v3126
    %4028 = vmatpush1.bf16.msra.mxu0 %v3125
    %4029 = vmatprep.subr.bf16.mxu0 %v3132
    %4030 = vmatpush1.bf16.msra.mxu0 %v3131
    %4031 = vmatprep.subr.bf16.mxu0 %v3138
    %4032 = vmatpush1.bf16.msra.mxu0 %v3137
    %4033 = vmatprep.subr.bf16.mxu0 %v3144
    %4034 = vmatpush1.bf16.msra.mxu0 %v3143
    %4035 = vmatprep.subr.bf16.mxu0 %v3150
    %4036 = vmatpush1.bf16.msra.mxu0 %v3149
    %4037 = vmatprep.subr.bf16.mxu0 %v3156
    %4038 = vmatpush1.bf16.msra.mxu0 %v3155
    %4039 = vmatprep.subr.bf16.mxu0 %v3162
    %4040 = vmatpush1.bf16.msra.mxu0 %v3161
    %4041 = vmatprep.subr.bf16.mxu0 %v3168
    %4042 = vmatpush1.bf16.msra.mxu0 %v3167
    %4043 = vmatprep.subr.bf16.mxu0 %v3174
    %4044 = vmatpush1.bf16.msra.mxu0 %v3173
    %4045 = vmatprep.mubr.bf16.mxu0 %v1506
    %4046 = vmatmul.mubr.bf16.gmra.mrb[0].mxu0 %v1505
    %v4047 = vpop.f32.mrb[0].mxu0
    %v4048 = vadd.f32 %v1910, %v4047
    %v4049 = vpop.f32.mrb[0].mxu0
    %v4050 = vadd.f32 %v1914, %v4049
    %v4051 = vpop.f32.mrb[0].mxu0
    %v4052 = vpop.f32.mrb[0].mxu0
    %4053 = vdwg.mxu0
    %4054 = vmatprep.subr.bf16.mxu0 %v3180
    %4055 = vmatpush1.bf16.msra.mxu0 %v3179
    %4056 = vmatprep.subr.bf16.mxu0 %v3186
    %4057 = vmatpush1.bf16.msra.mxu0 %v3185
    %4058 = vmatprep.subr.bf16.mxu0 %v3192
    %4059 = vmatpush1.bf16.msra.mxu0 %v3191
    %4060 = vmatprep.subr.bf16.mxu0 %v3198
    %4061 = vmatpush1.bf16.msra.mxu0 %v3197
    %4062 = vmatprep.subr.bf16.mxu0 %v3204
    %4063 = vmatpush1.bf16.msra.mxu0 %v3203
    %4064 = vmatprep.subr.bf16.mxu0 %v3210
    %4065 = vmatpush1.bf16.msra.mxu0 %v3209
    %4066 = vmatprep.subr.bf16.mxu0 %v3216
    %4067 = vmatpush1.bf16.msra.mxu0 %v3215
    %4068 = vmatprep.subr.bf16.mxu0 %v3222
    %4069 = vmatpush1.bf16.msra.mxu0 %v3221
    %4070 = vmatprep.subr.bf16.mxu0 %v3228
    %4071 = vmatpush1.bf16.msra.mxu0 %v3227
    %4072 = vmatprep.subr.bf16.mxu0 %v3234
    %4073 = vmatpush1.bf16.msra.mxu0 %v3233
    %4074 = vmatprep.subr.bf16.mxu0 %v3240
    %4075 = vmatpush1.bf16.msra.mxu0 %v3239
    %4076 = vmatprep.subr.bf16.mxu0 %v3246
    %4077 = vmatpush1.bf16.msra.mxu0 %v3245
    %4078 = vmatprep.subr.bf16.mxu0 %v3252
    %4079 = vmatpush1.bf16.msra.mxu0 %v3251
    %4080 = vmatprep.subr.bf16.mxu0 %v3258
    %4081 = vmatpush1.bf16.msra.mxu0 %v3257
    %4082 = vmatprep.subr.bf16.mxu0 %v3264
    %4083 = vmatpush1.bf16.msra.mxu0 %v3263
    %4084 = vmatprep.subr.bf16.mxu0 %v3270
    %4085 = vmatpush1.bf16.msra.mxu0 %v3269
    %4086 = vmatprep.mubr.bf16.mxu0 %v1508
    %4087 = vmatmul.mubr.bf16.gmra.mrb[0].mxu0 %v1507
    %v4088 = vpop.f32.mrb[0].mxu0
    %v4089 = vadd.f32 %v4048, %v4088
    %v4090 = vpop.f32.mrb[0].mxu0
    %v4091 = vadd.f32 %v4050, %v4090
    %v4092 = vpop.f32.mrb[0].mxu0
    %v4093 = vpop.f32.mrb[0].mxu0
    %4094 = vdwg.mxu0
    %4095 = vmatprep.subr.bf16.mxu0 %v3276
    %4096 = vmatpush1.bf16.msra.mxu0 %v3275
    %4097 = vmatprep.subr.bf16.mxu0 %v3282
    %4098 = vmatpush1.bf16.msra.mxu0 %v3281
    %4099 = vmatprep.subr.bf16.mxu0 %v3288
    %4100 = vmatpush1.bf16.msra.mxu0 %v3287
    %4101 = vmatprep.subr.bf16.mxu0 %v3294
    %4102 = vmatpush1.bf16.msra.mxu0 %v3293
    %4103 = vmatprep.subr.bf16.mxu0 %v3300
    %4104 = vmatpush1.bf16.msra.mxu0 %v3299
    %4105 = vmatprep.subr.bf16.mxu0 %v3306
    %4106 = vmatpush1.bf16.msra.mxu0 %v3305
    %4107 = vmatprep.subr.bf16.mxu0 %v3312
    %4108 = vmatpush1.bf16.msra.mxu0 %v3311
    %4109 = vmatprep.subr.bf16.mxu0 %v3318
    %4110 = vmatpush1.bf16.msra.mxu0 %v3317
    %4111 = vmatprep.subr.bf16.mxu0 %v3324
    %4112 = vmatpush1.bf16.msra.mxu0 %v3323
    %4113 = vmatprep.subr.bf16.mxu0 %v3330
    %4114 = vmatpush1.bf16.msra.mxu0 %v3329
    %4115 = vmatprep.subr.bf16.mxu0 %v3336
    %4116 = vmatpush1.bf16.msra.mxu0 %v3335
    %4117 = vmatprep.subr.bf16.mxu0 %v3342
    %4118 = vmatpush1.bf16.msra.mxu0 %v3341
    %4119 = vmatprep.subr.bf16.mxu0 %v3348
    %4120 = vmatpush1.bf16.msra.mxu0 %v3347
    %4121 = vmatprep.subr.bf16.mxu0 %v3354
    %4122 = vmatpush1.bf16.msra.mxu0 %v3353
    %4123 = vmatprep.subr.bf16.mxu0 %v3360
    %4124 = vmatpush1.bf16.msra.mxu0 %v3359
    %4125 = vmatprep.subr.bf16.mxu0 %v3366
    %4126 = vmatpush1.bf16.msra.mxu0 %v3365
    %4127 = vmatprep.mubr.bf16.mxu0 %v1510
    %4128 = vmatmul.mubr.bf16.gmra.mrb[0].mxu0 %v1509
    %v4129 = vpop.f32.mrb[0].mxu0
    %v4130 = vadd.f32 %v4089, %v4129
    %v4131 = vpop.f32.mrb[0].mxu0
    %v4132 = vadd.f32 %v4091, %v4131
    %v4133 = vpop.f32.mrb[0].mxu0
    %v4134 = vpop.f32.mrb[0].mxu0
    %4135 = vdwg.mxu0
    %4136 = vmatprep.subr.bf16.mxu0 %v3372
    %4137 = vmatpush1.bf16.msra.mxu0 %v3371
    %4138 = vmatprep.subr.bf16.mxu0 %v3378
    %4139 = vmatpush1.bf16.msra.mxu0 %v3377
    %4140 = vmatprep.subr.bf16.mxu0 %v3384
    %4141 = vmatpush1.bf16.msra.mxu0 %v3383
    %4142 = vmatprep.subr.bf16.mxu0 %v3390
    %4143 = vmatpush1.bf16.msra.mxu0 %v3389
    %4144 = vmatprep.subr.bf16.mxu0 %v3396
    %4145 = vmatpush1.bf16.msra.mxu0 %v3395
    %4146 = vmatprep.subr.bf16.mxu0 %v3402
    %4147 = vmatpush1.bf16.msra.mxu0 %v3401
    %4148 = vmatprep.subr.bf16.mxu0 %v3408
    %4149 = vmatpush1.bf16.msra.mxu0 %v3407
    %4150 = vmatprep.subr.bf16.mxu0 %v3414
    %4151 = vmatpush1.bf16.msra.mxu0 %v3413
    %4152 = vmatprep.subr.bf16.mxu0 %v3420
    %4153 = vmatpush1.bf16.msra.mxu0 %v3419
    %4154 = vmatprep.subr.bf16.mxu0 %v3426
    %4155 = vmatpush1.bf16.msra.mxu0 %v3425
    %4156 = vmatprep.subr.bf16.mxu0 %v3432
    %4157 = vmatpush1.bf16.msra.mxu0 %v3431
    %4158 = vmatprep.subr.bf16.mxu0 %v3438
    %4159 = vmatpush1.bf16.msra.mxu0 %v3437
    %4160 = vmatprep.subr.bf16.mxu0 %v3444
    %4161 = vmatpush1.bf16.msra.mxu0 %v3443
    %4162 = vmatprep.subr.bf16.mxu0 %v3450
    %4163 = vmatpush1.bf16.msra.mxu0 %v3449
    %4164 = vmatprep.subr.bf16.mxu0 %v3456
    %4165 = vmatpush1.bf16.msra.mxu0 %v3455
    %4166 = vmatprep.subr.bf16.mxu0 %v3462
    %4167 = vmatpush1.bf16.msra.mxu0 %v3461
    %4168 = vmatprep.mubr.bf16.mxu0 %v1512
    %4169 = vmatmul.mubr.bf16.gmra.mrb[0].mxu0 %v1511
    %v4170 = vpop.f32.mrb[0].mxu0
    %v4171 = vadd.f32 %v4130, %v4170
    %v4172 = vpop.f32.mrb[0].mxu0
    %v4173 = vadd.f32 %v4132, %v4172
    %v4174 = vpop.f32.mrb[0].mxu0
    %v4175 = vpop.f32.mrb[0].mxu0
    %4176 = vdwg.mxu0
    %4177 = vmatprep.subr.bf16.mxu0 %v3086
    %4178 = vmatpush1.bf16.msra.mxu0 %v3085
    %4179 = vmatprep.subr.bf16.mxu0 %v3092
    %4180 = vmatpush1.bf16.msra.mxu0 %v3091
    %4181 = vmatprep.subr.bf16.mxu0 %v3098
    %4182 = vmatpush1.bf16.msra.mxu0 %v3097
    %4183 = vmatprep.subr.bf16.mxu0 %v3104
    %4184 = vmatpush1.bf16.msra.mxu0 %v3103
    %4185 = vmatprep.subr.bf16.mxu0 %v3110
    %4186 = vmatpush1.bf16.msra.mxu0 %v3109
    %4187 = vmatprep.subr.bf16.mxu0 %v3116
    %4188 = vmatpush1.bf16.msra.mxu0 %v3115
    %4189 = vmatprep.subr.bf16.mxu0 %v3122
    %4190 = vmatpush1.bf16.msra.mxu0 %v3121
    %4191 = vmatprep.subr.bf16.mxu0 %v3128
    %4192 = vmatpush1.bf16.msra.mxu0 %v3127
    %4193 = vmatprep.subr.bf16.mxu0 %v3134
    %4194 = vmatpush1.bf16.msra.mxu0 %v3133
    %4195 = vmatprep.subr.bf16.mxu0 %v3140
    %4196 = vmatpush1.bf16.msra.mxu0 %v3139
    %4197 = vmatprep.subr.bf16.mxu0 %v3146
    %4198 = vmatpush1.bf16.msra.mxu0 %v3145
    %4199 = vmatprep.subr.bf16.mxu0 %v3152
    %4200 = vmatpush1.bf16.msra.mxu0 %v3151
    %4201 = vmatprep.subr.bf16.mxu0 %v3158
    %4202 = vmatpush1.bf16.msra.mxu0 %v3157
    %4203 = vmatprep.subr.bf16.mxu0 %v3164
    %4204 = vmatpush1.bf16.msra.mxu0 %v3163
    %4205 = vmatprep.subr.bf16.mxu0 %v3170
    %4206 = vmatpush1.bf16.msra.mxu0 %v3169
    %4207 = vmatprep.subr.bf16.mxu0 %v3176
    %4208 = vmatpush1.bf16.msra.mxu0 %v3175
    %4209 = vmatprep.mubr.bf16.mxu0 %v1506
    %4210 = vmatmul.mubr.bf16.gmra.mrb[0].mxu0 %v1505
    %v4211 = vpop.f32.mrb[0].mxu0
    %v4212 = vadd.f32 %v1918, %v4211
    %v4213 = vpop.f32.mrb[0].mxu0
    %v4214 = vadd.f32 %v1922, %v4213
    %v4215 = vpop.f32.mrb[0].mxu0
    %v4216 = vpop.f32.mrb[0].mxu0
    %4217 = vdwg.mxu0
    %4218 = vmatprep.subr.bf16.mxu0 %v3182
    %4219 = vmatpush1.bf16.msra.mxu0 %v3181
    %4220 = vmatprep.subr.bf16.mxu0 %v3188
    %4221 = vmatpush1.bf16.msra.mxu0 %v3187
    %4222 = vmatprep.subr.bf16.mxu0 %v3194
    %4223 = vmatpush1.bf16.msra.mxu0 %v3193
    %4224 = vmatprep.subr.bf16.mxu0 %v3200
    %4225 = vmatpush1.bf16.msra.mxu0 %v3199
    %4226 = vmatprep.subr.bf16.mxu0 %v3206
    %4227 = vmatpush1.bf16.msra.mxu0 %v3205
    %4228 = vmatprep.subr.bf16.mxu0 %v3212
    %4229 = vmatpush1.bf16.msra.mxu0 %v3211
    %4230 = vmatprep.subr.bf16.mxu0 %v3218
    %4231 = vmatpush1.bf16.msra.mxu0 %v3217
    %4232 = vmatprep.subr.bf16.mxu0 %v3224
    %4233 = vmatpush1.bf16.msra.mxu0 %v3223
    %4234 = vmatprep.subr.bf16.mxu0 %v3230
    %4235 = vmatpush1.bf16.msra.mxu0 %v3229
    %4236 = vmatprep.subr.bf16.mxu0 %v3236
    %4237 = vmatpush1.bf16.msra.mxu0 %v3235
    %4238 = vmatprep.subr.bf16.mxu0 %v3242
    %4239 = vmatpush1.bf16.msra.mxu0 %v3241
    %4240 = vmatprep.subr.bf16.mxu0 %v3248
    %4241 = vmatpush1.bf16.msra.mxu0 %v3247
    %4242 = vmatprep.subr.bf16.mxu0 %v3254
    %4243 = vmatpush1.bf16.msra.mxu0 %v3253
    %4244 = vmatprep.subr.bf16.mxu0 %v3260
    %4245 = vmatpush1.bf16.msra.mxu0 %v3259
    %4246 = vmatprep.subr.bf16.mxu0 %v3266
    %4247 = vmatpush1.bf16.msra.mxu0 %v3265
    %4248 = vmatprep.subr.bf16.mxu0 %v3272
    %4249 = vmatpush1.bf16.msra.mxu0 %v3271
    %4250 = vmatprep.mubr.bf16.mxu0 %v1508
    %4251 = vmatmul.mubr.bf16.gmra.mrb[0].mxu0 %v1507
    %v4252 = vpop.f32.mrb[0].mxu0
    %v4253 = vadd.f32 %v4212, %v4252
    %v4254 = vpop.f32.mrb[0].mxu0
    %v4255 = vadd.f32 %v4214, %v4254
    %v4256 = vpop.f32.mrb[0].mxu0
    %v4257 = vpop.f32.mrb[0].mxu0
    %4258 = vdwg.mxu0
    %4259 = vmatprep.subr.bf16.mxu0 %v3278
    %4260 = vmatpush1.bf16.msra.mxu0 %v3277
    %4261 = vmatprep.subr.bf16.mxu0 %v3284
    %4262 = vmatpush1.bf16.msra.mxu0 %v3283
    %4263 = vmatprep.subr.bf16.mxu0 %v3290
    %4264 = vmatpush1.bf16.msra.mxu0 %v3289
    %4265 = vmatprep.subr.bf16.mxu0 %v3296
    %4266 = vmatpush1.bf16.msra.mxu0 %v3295
    %4267 = vmatprep.subr.bf16.mxu0 %v3302
    %4268 = vmatpush1.bf16.msra.mxu0 %v3301
    %4269 = vmatprep.subr.bf16.mxu0 %v3308
    %4270 = vmatpush1.bf16.msra.mxu0 %v3307
    %4271 = vmatprep.subr.bf16.mxu0 %v3314
    %4272 = vmatpush1.bf16.msra.mxu0 %v3313
    %4273 = vmatprep.subr.bf16.mxu0 %v3320
    %4274 = vmatpush1.bf16.msra.mxu0 %v3319
    %4275 = vmatprep.subr.bf16.mxu0 %v3326
    %4276 = vmatpush1.bf16.msra.mxu0 %v3325
    %4277 = vmatprep.subr.bf16.mxu0 %v3332
    %4278 = vmatpush1.bf16.msra.mxu0 %v3331
    %4279 = vmatprep.subr.bf16.mxu0 %v3338
    %4280 = vmatpush1.bf16.msra.mxu0 %v3337
    %4281 = vmatprep.subr.bf16.mxu0 %v3344
    %4282 = vmatpush1.bf16.msra.mxu0 %v3343
    %4283 = vmatprep.subr.bf16.mxu0 %v3350
    %4284 = vmatpush1.bf16.msra.mxu0 %v3349
    %4285 = vmatprep.subr.bf16.mxu0 %v3356
    %4286 = vmatpush1.bf16.msra.mxu0 %v3355
    %4287 = vmatprep.subr.bf16.mxu0 %v3362
    %4288 = vmatpush1.bf16.msra.mxu0 %v3361
    %4289 = vmatprep.subr.bf16.mxu0 %v3368
    %4290 = vmatpush1.bf16.msra.mxu0 %v3367
    %4291 = vmatprep.mubr.bf16.mxu0 %v1510
    %4292 = vmatmul.mubr.bf16.gmra.mrb[0].mxu0 %v1509
    %v4293 = vpop.f32.mrb[0].mxu0
    %v4294 = vadd.f32 %v4253, %v4293
    %v4295 = vpop.f32.mrb[0].mxu0
    %v4296 = vadd.f32 %v4255, %v4295
    %v4297 = vpop.f32.mrb[0].mxu0
    %v4298 = vpop.f32.mrb[0].mxu0
    %4299 = vdwg.mxu0
    %4300 = vmatprep.subr.bf16.mxu0 %v3374
    %4301 = vmatpush1.bf16.msra.mxu0 %v3373
    %4302 = vmatprep.subr.bf16.mxu0 %v3380
    %4303 = vmatpush1.bf16.msra.mxu0 %v3379
    %4304 = vmatprep.subr.bf16.mxu0 %v3386
    %4305 = vmatpush1.bf16.msra.mxu0 %v3385
    %4306 = vmatprep.subr.bf16.mxu0 %v3392
    %4307 = vmatpush1.bf16.msra.mxu0 %v3391
    %4308 = vmatprep.subr.bf16.mxu0 %v3398
    %4309 = vmatpush1.bf16.msra.mxu0 %v3397
    %4310 = vmatprep.subr.bf16.mxu0 %v3404
    %4311 = vmatpush1.bf16.msra.mxu0 %v3403
    %4312 = vmatprep.subr.bf16.mxu0 %v3410
    %4313 = vmatpush1.bf16.msra.mxu0 %v3409
    %4314 = vmatprep.subr.bf16.mxu0 %v3416
    %4315 = vmatpush1.bf16.msra.mxu0 %v3415
    %4316 = vmatprep.subr.bf16.mxu0 %v3422
    %4317 = vmatpush1.bf16.msra.mxu0 %v3421
    %4318 = vmatprep.subr.bf16.mxu0 %v3428
    %4319 = vmatpush1.bf16.msra.mxu0 %v3427
    %4320 = vmatprep.subr.bf16.mxu0 %v3434
    %4321 = vmatpush1.bf16.msra.mxu0 %v3433
    %4322 = vmatprep.subr.bf16.mxu0 %v3440
    %4323 = vmatpush1.bf16.msra.mxu0 %v3439
    %4324 = vmatprep.subr.bf16.mxu0 %v3446
    %4325 = vmatpush1.bf16.msra.mxu0 %v3445
    %4326 = vmatprep.subr.bf16.mxu0 %v3452
    %4327 = vmatpush1.bf16.msra.mxu0 %v3451
    %4328 = vmatprep.subr.bf16.mxu0 %v3458
    %4329 = vmatpush1.bf16.msra.mxu0 %v3457
    %4330 = vmatprep.subr.bf16.mxu0 %v3464
    %4331 = vmatpush1.bf16.msra.mxu0 %v3463
    %4332 = vmatprep.mubr.bf16.mxu0 %v1512
    %4333 = vmatmul.mubr.bf16.gmra.mrb[0].mxu0 %v1511
    %v4334 = vpop.f32.mrb[0].mxu0
    %v4335 = vadd.f32 %v4294, %v4334
    %v4336 = vpop.f32.mrb[0].mxu0
    %v4337 = vadd.f32 %v4296, %v4336
    %v4338 = vpop.f32.mrb[0].mxu0
    %v4339 = vpop.f32.mrb[0].mxu0
    %4340 = vdwg.mxu0
    %4341 = vst [vmem:[%s7] sm:$0xff] %v4007
    %4342 = vst [vmem:[%s7 + $0x8] sm:$0xff] %v4009
    %4343 = vst [vmem:[%s7 + $0x10] sm:$0xff] %v4171
    %4344 = vst [vmem:[%s7 + $0x18] sm:$0xff] %v4173
    %4345 = vst [vmem:[%s7 + $0x20] sm:$0xff] %v4335
    %4346 = vst [vmem:[%s7 + $0x28] sm:$0xff] %v4337
    // Predicated region
    $region34: #{_forward_fused.1} parent=1 // pred_check
      _
    $region35: #{_forward_fused.1} parent=1 // pred_check_branch
      %4348 = sbr.rel (0) target = $region37
    $region36: #{_forward_fused.1} parent=1 // pred_region
      _
    $region37: #{_forward_fused.1} parent=1 // pred_fallthru
      _
    // Predicated region
    $region38: #{_forward_fused.1} parent=1 // pred_check
      _
    $region39: #{_forward_fused.1} parent=1 // pred_check_branch
      %4350 = sbr.rel (0) target = $region41
    $region40: #{_forward_fused.1} parent=1 // pred_region
      _
    $region41: #{_forward_fused.1} parent=1 // pred_fallthru
      _
    // Predicated region
    $region42: #{_forward_fused.1} parent=1 // pred_check
      _
    $region43: #{_forward_fused.1} parent=1 // pred_check_branch
      %4352 = sbr.rel (0) target = $region45
    $region44: #{_forward_fused.1} parent=1 // pred_region
      _
    $region45: #{_forward_fused.1} parent=1 // pred_fallthru
      _
    // Predicated region
    $region46: #{_forward_fused.1} parent=1 // pred_check
      _
    $region47: #{_forward_fused.1} parent=1 // pred_check_branch
      %4354 = sbr.rel (0) target = $region49
    $region48: #{_forward_fused.1} parent=1 // pred_region
      _
    $region49: #{_forward_fused.1} parent=1 // pred_fallthru
      _
    %4355 = vsyncpa [#allocation3], 1
    %4356 = vsyncpa [#allocation5], 1

</llo_original>
